<compile_context>
chip_gen: v7x
topology: tpu7x:2x2x1
jax: 0.10.0
libtpu: 0.0.40
codegen_flags: <defaults>
</compile_context>

<pallas_src>
import jax
import jax.numpy as jnp
from jax import lax
from jax.experimental import pallas as pl
from jax.experimental.pallas import tpu as pltpu


def _quantize_kernel(x_ref, e_ref, et_ref, e2h_ref, q_ref, ind_ref, sse_ref):
    # x_ref   : (tm, dim_p)       block of flattened (zero-padded) input rows
    # e_ref   : (dim_p, n_embed)  codebook, resident (constant index_map)
    # et_ref  : (n_embed, dim_p)  pre-transposed codebook, resident
    # e2h_ref : (1, n_embed)      0.5 * ||e_j||^2 per code, resident, f32
    # q_ref   : (tm, dim_p)       quantized rows
    # ind_ref : (1, tm)           lane-dense code indices
    # sse_ref : (1, tm)           lane-dense per-row sum of squared error
    x = x_ref[...]

    # argmin_j ||x - e_j||^2 == argmin_j (0.5*||e_j||^2 - x . e_j)
    xe = jnp.dot(x, e_ref[...], preferred_element_type=jnp.float32)      # MXU
    score = e2h_ref[...] - xe                                            # (tm, n_embed)
    ind = jnp.argmin(score, axis=1).astype(jnp.int32)                    # (tm,)
    ind_ref[...] = ind[None, :]

    # Gather selected codebook rows via one-hot matmul (MXU-friendly gather);
    # contraction-major RHS (n_embed, dim_p) avoids a per-step transpose.
    onehot = (lax.broadcasted_iota(jnp.int32, score.shape, 1)
              == ind[:, None]).astype(et_ref.dtype)                      # 0/1 exact
    q = jnp.dot(onehot, et_ref[...], preferred_element_type=jnp.float32) # (tm, dim_p)
    q_ref[...] = q.astype(q_ref.dtype)

    # Per-row sum of squared error for `diff = mean((q - x)^2)`.
    d = q - x.astype(jnp.float32)
    sse_ref[...] = jnp.sum(d * d, axis=1)[None, :]


def quantize_forward(x, embed, *, tm=256):
    """Eval-mode forward of the VQ-VAE `Quantize` module.

    Returns (quantize, diff, embed_ind) matching the PyTorch module.
    """
    # TODO(synk): training-mode EMA codebook update + dist.all_reduce not
    #             implemented (buffer mutation / cross-device collective);
    #             also no custom_vjp, so gradients of `diff` w.r.t. x are not
    #             provided — eval-only forward.
    assert tm % 8 == 0, "tm must be a multiple of 8 (128-multiple recommended)"
    dim = x.shape[-1]
    n_embed = embed.shape[1]
    lead_shape = x.shape[:-1]

    flat = x.reshape(-1, dim)
    n = flat.shape[0]

    # Pad rows to a multiple of tm and the embedding dim to a multiple of 128
    # (zero padding changes neither the argmin nor the per-row SSE of real rows).
    n_blocks = pl.cdiv(n, tm)
    n_pad = n_blocks * tm
    dim_p = pl.cdiv(dim, 128) * 128

    flat_p = jnp.pad(flat, ((0, n_pad - n), (0, dim_p - dim)))
    embed_p = jnp.pad(embed, ((0, dim_p - dim), (0, 0)))                # (dim_p, n_embed)
    embed_t = embed_p.T                                                 # (n_embed, dim_p)
    e2_half = 0.5 * jnp.sum(jnp.square(embed.astype(jnp.float32)),
                            axis=0, keepdims=True)                      # (1, n_embed) f32

    # Rough VMEM budget (double-buffered streams + resident codebook copies +
    # in-register (tm, n_embed) intermediates); capped for v7x's 64 MiB VMEM.
    isz = jnp.dtype(x.dtype).itemsize
    vmem_est = (4 * tm * dim_p * isz                 # x in + q out, 2 buffers each
                + 4 * dim_p * n_embed * isz          # codebook + transposed copy
                + 2 * n_embed * 4                    # e2_half
                + 8 * tm * 4                         # ind + sse blocks
                + 6 * tm * n_embed * 4)              # score / onehot intermediates
    vmem_limit = int(min(max(2 * vmem_est, 32 * 1024 * 1024), 64 * 1024 * 1024))

    q, ind, sse = pl.pallas_call(
        _quantize_kernel,
        out_shape=(
            jax.ShapeDtypeStruct((n_pad, dim_p), x.dtype),   # quantize (flat, padded)
            jax.ShapeDtypeStruct((n_blocks, tm), jnp.int32), # embed_ind (lane-dense)
            jax.ShapeDtypeStruct((n_blocks, tm), jnp.float32),  # per-row SSE
        ),
        grid_spec=pltpu.PrefetchScalarGridSpec(
            num_scalar_prefetch=0,
            grid=(n_blocks,),
            in_specs=[
                pl.BlockSpec((tm, dim_p), lambda i: (i, 0)),
                pl.BlockSpec((dim_p, n_embed), lambda i: (0, 0)),   # resident codebook
                pl.BlockSpec((n_embed, dim_p), lambda i: (0, 0)),   # resident codebook^T
                pl.BlockSpec((1, n_embed), lambda i: (0, 0)),       # resident 0.5*||e||^2
            ],
            out_specs=(
                pl.BlockSpec((tm, dim_p), lambda i: (i, 0)),
                pl.BlockSpec((1, tm), lambda i: (i, 0)),
                pl.BlockSpec((1, tm), lambda i: (i, 0)),
            ),
        ),
        compiler_params=pltpu.CompilerParams(
            dimension_semantics=("parallel",),   # no resident accumulator -> safe
            vmem_limit_bytes=vmem_limit,
        ),
    )(flat_p, embed_p, embed_t, e2_half)

    quantize = q[:n, :dim].reshape(x.shape)
    embed_ind = ind.reshape(-1)[:n].reshape(lead_shape)
    diff = jnp.sum(sse.reshape(-1)[:n]) / jnp.float32(flat.size)

    # straight-through estimator: forward value == quantize, gradient == identity
    quantize = x + lax.stop_gradient(quantize - x)
    return quantize, diff, embed_ind


if __name__ == "__main__":
    key = jax.random.PRNGKey(0)
    k_x, k_e = jax.random.split(key)

    B, H, W = 2, 4, 4
    dim, n_embed = 64, 256

    x = jax.random.normal(k_x, (B, H, W, dim), dtype=jnp.float32)
    # deterministic stand-in for the torch.randn(dim, n_embed) buffer
    embed = jax.random.normal(k_e, (dim, n_embed), dtype=jnp.float32)

    quantize, diff, embed_ind = quantize_forward(x, embed)
    jax.block_until_ready((quantize, diff, embed_ind))

    assert quantize.shape == x.shape
    assert embed_ind.shape == (B, H, W)
    assert diff.shape == ()

    # Internal-consistency / reference checks (robust to argmin tie-breaking).
    flat = x.reshape(-1, dim)
    codes = embed.T[embed_ind.reshape(-1)]                       # (N, dim)
    # chosen codes must be (near-)optimal w.r.t. exact distances
    ref_dist = jnp.sum((flat[:, None, :] - embed.T[None, :, :]) ** 2, axis=-1)
    chosen = jnp.take_along_axis(ref_dist, embed_ind.reshape(-1, 1), axis=1)[:, 0]
    assert bool(jnp.all(chosen <= ref_dist.min(axis=1) + 1e-3))
    # quantize rows equal the selected codebook rows; diff matches its definition
    assert bool(jnp.allclose(quantize.reshape(-1, dim), codes, atol=1e-4))
    assert bool(jnp.allclose(diff, jnp.mean((codes - flat) ** 2), rtol=1e-4, atol=1e-5))

    print("KERNEL_OK")
</pallas_src>

<mosaic_0001>
module attributes {stable_mosaic.version = 11 : i64} {
  func.func @_quantize_kernel(%arg0: i32, %arg1: memref<256x128xf32, #tpu.memory_space<vmem>>, %arg2: memref<128x256xf32, #tpu.memory_space<vmem>>, %arg3: memref<256x128xf32, #tpu.memory_space<vmem>>, %arg4: memref<1x256xf32, #tpu.memory_space<vmem>>, %arg5: memref<256x128xf32, #tpu.memory_space<vmem>>, %arg6: memref<1x256xi32, #tpu.memory_space<vmem>>, %arg7: memref<1x256xf32, #tpu.memory_space<vmem>>) attributes {dimension_semantics = [#tpu.dimension_semantics<parallel>], iteration_bounds = array<i64: 1>, scalar_prefetch = 0 : i64, scratch_operands = 0 : i64, tpu.core_type = #tpu.core_type<tc>, window_params = [{transform_indices = @transform_0, window_bounds = array<i64: 256, 128>}, {pipeline_mode = #tpu.pipeline_mode<synchronous>, transform_indices = @transform_1, window_bounds = array<i64: 128, 256>}, {pipeline_mode = #tpu.pipeline_mode<synchronous>, transform_indices = @transform_2, window_bounds = array<i64: 256, 128>}, {pipeline_mode = #tpu.pipeline_mode<synchronous>, transform_indices = @transform_3, window_bounds = array<i64: 1, 256>}, {transform_indices = @transform_4, window_bounds = array<i64: 256, 128>}, {transform_indices = @transform_5, window_bounds = array<i64: 1, 256>}, {transform_indices = @transform_6, window_bounds = array<i64: 1, 256>}]} {
    %c0 = arith.constant 0 : index
    %c0_0 = arith.constant 0 : index
    %0 = vector.load %arg1[%c0, %c0_0] : memref<256x128xf32, #tpu.memory_space<vmem>>, vector<256x128xf32>
    %c0_1 = arith.constant 0 : index
    %c0_2 = arith.constant 0 : index
    %1 = vector.load %arg2[%c0_1, %c0_2] : memref<128x256xf32, #tpu.memory_space<vmem>>, vector<128x256xf32>
    %cst = arith.constant dense<0.000000e+00> : vector<256x256xf32>
    %2 = tpu.matmul %0, %1, %cst {dimension_numbers = #tpu.dot_dimension_numbers<[1], [0], [0], [1], [0, 0, 1, 1], [], []>} : vector<256x128xf32>, vector<128x256xf32>, vector<256x256xf32> -> vector<256x256xf32>
    %c0_3 = arith.constant 0 : index
    %c0_4 = arith.constant 0 : index
    %3 = vector.load %arg4[%c0_3, %c0_4] : memref<1x256xf32, #tpu.memory_space<vmem>>, vector<1x256xf32>
    %4 = vector.broadcast %3 : vector<1x256xf32> to vector<256x256xf32>
    %5 = arith.subf %4, %2 : vector<256x256xf32>
    %6 = tpu.reduce_index %5 {axis = 1 : i32, kind = #tpu.reduction_kind<arg_min>} : vector<256x256xf32> -> vector<256xi32>
    %7 = vector.shape_cast %6 : vector<256xi32> to vector<1x256xi32>
    %c0_5 = arith.constant 0 : index
    %c0_6 = arith.constant 0 : index
    %8 = vector.load %arg6[%c0_5, %c0_6] : memref<1x256xi32, #tpu.memory_space<vmem>>, vector<1x256xi32>
    tpu.vector_store %arg6[%c0_5, %c0_6], %7 {strides = array<i32>} : memref<1x256xi32, #tpu.memory_space<vmem>>, vector<1x256xi32>,
    %9 = tpu.iota {dimensions = array<i32: 1>} : vector<256x256xi32>
    %10 = vector.shape_cast %6 : vector<256xi32> to vector<256x1xi32>
    %11 = vector.broadcast %10 : vector<256x1xi32> to vector<256x256xi32>
    %12 = arith.cmpi eq, %9, %11 : vector<256x256xi32>
    %13 = arith.extui %12 : vector<256x256xi1> to vector<256x256xi32>
    %14 = arith.sitofp %13 : vector<256x256xi32> to vector<256x256xf32>
    %c0_7 = arith.constant 0 : index
    %c0_8 = arith.constant 0 : index
    %15 = vector.load %arg3[%c0_7, %c0_8] : memref<256x128xf32, #tpu.memory_space<vmem>>, vector<256x128xf32>
    %cst_9 = arith.constant dense<0.000000e+00> : vector<256x128xf32>
    %16 = tpu.matmul %14, %15, %cst_9 {dimension_numbers = #tpu.dot_dimension_numbers<[1], [0], [0], [1], [0, 0, 1, 1], [], []>} : vector<256x256xf32>, vector<256x128xf32>, vector<256x128xf32> -> vector<256x128xf32>
    %c0_10 = arith.constant 0 : index
    %c0_11 = arith.constant 0 : index
    %17 = vector.load %arg5[%c0_10, %c0_11] : memref<256x128xf32, #tpu.memory_space<vmem>>, vector<256x128xf32>
    tpu.vector_store %arg5[%c0_10, %c0_11], %16 {strides = array<i32>} : memref<256x128xf32, #tpu.memory_space<vmem>>, vector<256x128xf32>,
    %18 = arith.subf %16, %0 : vector<256x128xf32>
    %19 = arith.mulf %18, %18 : vector<256x128xf32>
    %cst_12 = arith.constant dense<0.000000e+00> : vector<256xf32>
    %20 = vector.multi_reduction <add>, %19, %cst_12 [1] : vector<256x128xf32> to vector<256xf32>
    %21 = vector.shape_cast %20 : vector<256xf32> to vector<1x256xf32>
    %c0_13 = arith.constant 0 : index
    %c0_14 = arith.constant 0 : index
    %22 = vector.load %arg7[%c0_13, %c0_14] : memref<1x256xf32, #tpu.memory_space<vmem>>, vector<1x256xf32>
    tpu.vector_store %arg7[%c0_13, %c0_14], %21 {strides = array<i32>} : memref<1x256xf32, #tpu.memory_space<vmem>>, vector<1x256xf32>,
    return
  }
  func.func @transform_0(%arg0: i32) -> (i32, i32) {
    %c0_i32 = arith.constant 0 : i32
    %c0_i32_0 = arith.constant 0 : i32
    return %arg0, %c0_i32 : i32, i32
  }
  func.func @transform_1(%arg0: i32) -> (i32, i32) {
    %c0_i32 = arith.constant 0 : i32
    %c0_i32_0 = arith.constant 0 : i32
    %c0_i32_1 = arith.constant 0 : i32
    return %c0_i32, %c0_i32_0 : i32, i32
  }
  func.func @transform_2(%arg0: i32) -> (i32, i32) {
    %c0_i32 = arith.constant 0 : i32
    %c0_i32_0 = arith.constant 0 : i32
    %c0_i32_1 = arith.constant 0 : i32
    return %c0_i32, %c0_i32_0 : i32, i32
  }
  func.func @transform_3(%arg0: i32) -> (i32, i32) {
    %c0_i32 = arith.constant 0 : i32
    %c0_i32_0 = arith.constant 0 : i32
    %c0_i32_1 = arith.constant 0 : i32
    return %c0_i32, %c0_i32_0 : i32, i32
  }
  func.func @transform_4(%arg0: i32) -> (i32, i32) {
    %c0_i32 = arith.constant 0 : i32
    %c0_i32_0 = arith.constant 0 : i32
    return %arg0, %c0_i32 : i32, i32
  }
  func.func @transform_5(%arg0: i32) -> (i32, i32) {
    %c0_i32 = arith.constant 0 : i32
    %c0_i32_0 = arith.constant 0 : i32
    return %arg0, %c0_i32 : i32, i32
  }
  func.func @transform_6(%arg0: i32) -> (i32, i32) {
    %c0_i32 = arith.constant 0 : i32
    %c0_i32_0 = arith.constant 0 : i32
    return %arg0, %c0_i32 : i32, i32
  }
}

</mosaic_0001>

<llo_original>
// kernel: tpu_custom_call.1
$region0: #{tpu_custom_call.1}
  #allocation0 [shape = 'u32[]', space=smem, size = 0x4, offset = 0x4, fixed_abs, tag = 'smem constant byte address 0x4 - core index']
  #allocation1 [shape = 'u32[144,128]{1,0:T(1,128)}', space=vmem, size = 0x12000, scoped, tag = 'internal scratch']
  %s0 = inlined_call_operand.hbm [shape: f32[256,128], index: 0, kind: input, shape index: {}]
  %s1 = inlined_call_operand.hbm [shape: f32[128,256], index: 1, kind: input, shape index: {}]
  %s2 = inlined_call_operand.hbm [shape: f32[256,128], index: 2, kind: input, shape index: {}]
  %s3 = inlined_call_operand.vmem [shape: f32[1,256], index: 3, kind: input, shape index: {}]
  %s4 = inlined_call_operand.hbm [shape: f32[256,128], index: 4, kind: output, shape index: {0}]
  %s5 = inlined_call_operand.hbm [shape: s32[1,256], index: 5, kind: output, shape index: {1}]
  %s6 = inlined_call_operand.hbm [shape: f32[1,256], index: 6, kind: output, shape index: {2}]
  %7 = xla_tuple %s4, %s5, %s6
  %s8 = sld [smem:[#allocation0]]
  $region54: #{tpu_custom_call.1} parent=0
    _
  %s10 = ssub.s32 1, %s8
  %s11 = scalar_select 0, %s10, %s8
  $region1: #{tpu_custom_call.1} parent=0
    #allocation2 [shape = 'u8[131072]{0}', space=vmem, size = 0x20000, scoped, tag = 'input window, operand 0, single buffered']
    #allocation3 [shape = 's32[1]{0}', space=sflag, size = 0x4, scoped, tag = 'scoped memory for tpu_custom_call.1']
    #allocation4 [shape = 's32[1]{0}', space=sflag, size = 0x4, scoped, tag = 'scoped memory for tpu_custom_call.1']
    #allocation5 [shape = 'u8[131072]{0}', space=vmem, size = 0x20000, scoped, tag = 'input window, operand 1, single buffered']
    #allocation6 [shape = 's32[1]{0}', space=sflag, size = 0x4, scoped, tag = 'scoped memory for tpu_custom_call.1']
    #allocation7 [shape = 'u8[131072]{0}', space=vmem, size = 0x20000, scoped, tag = 'input window, operand 2, single buffered']
    #allocation8 [shape = 'u8[131072]{0}', space=vmem, size = 0x20000, scoped, tag = 'output window, operand 0, single buffered']
    #allocation9 [shape = 'u8[1024]{0}', space=vmem, size = 0x400, scoped, tag = 'output window, operand 1, single buffered']
    #allocation10 [shape = 's32[1]{0}', space=sflag, size = 0x4, scoped, tag = 'scoped memory for tpu_custom_call.1']
    #allocation11 [shape = 'u8[1024]{0}', space=vmem, size = 0x400, scoped, tag = 'output window, operand 2, single buffered']
    %12 = vsyncpa [#allocation3], 0
    %13 = vsyncpa [#allocation6], 0
    %14 = vsyncpa [#allocation4], 0
    %15 = vsyncpa [#allocation10], 0
    // Predicated region
    $region2: #{tpu_custom_call.1} parent=1 // pred_check
      _
    $region3: #{tpu_custom_call.1} parent=1 // pred_check_branch
      %17 = sbr.rel (0) target = $region5
    $region4: #{tpu_custom_call.1} parent=1 // pred_region
      %s19 = ssub.s32 4096, 4096
      %20 = vsyncadd [#allocation3], %s19
      %s21 = sshll.u32 [#allocation2], 4
      %s22 = int_to_ptr.vmem [resolvable:$true] %s21
      %27 = dma.hbm_to_vmem [thread:$0]  %s0, 4096, %s22, [#allocation3], 128, 128, 8
    $region5: #{tpu_custom_call.1} parent=1 // pred_fallthru
      _
    // Predicated region
    $region6: #{tpu_custom_call.1} parent=1 // pred_check
      _
    $region7: #{tpu_custom_call.1} parent=1 // pred_check_branch
      %29 = sbr.rel (0) target = $region9
    $region8: #{tpu_custom_call.1} parent=1 // pred_region
      %s31 = ssub.s32 4096, 4096
      %32 = vsyncadd [#allocation6], %s31
      %s33 = sshll.u32 [#allocation5], 4
      %s34 = int_to_ptr.vmem [resolvable:$true] %s33
      %39 = dma.hbm_to_vmem [thread:$0]  %s1, 4096, %s34, [#allocation6], 256, 256, 16
    $region9: #{tpu_custom_call.1} parent=1 // pred_fallthru
      _
    // Predicated region
    $region10: #{tpu_custom_call.1} parent=1 // pred_check
      _
    $region11: #{tpu_custom_call.1} parent=1 // pred_check_branch
      %41 = sbr.rel (0) target = $region13
    $region12: #{tpu_custom_call.1} parent=1 // pred_region
      %s43 = ssub.s32 4096, 4096
      %44 = vsyncadd [#allocation6], %s43
      %s45 = sshll.u32 [#allocation7], 4
      %s46 = int_to_ptr.vmem [resolvable:$true] %s45
      %51 = dma.hbm_to_vmem [thread:$0]  %s2, 4096, %s46, [#allocation6], 128, 128, 8
    $region13: #{tpu_custom_call.1} parent=1 // pred_fallthru
      _
    // Predicated region
    $region14: #{tpu_custom_call.1} parent=1 // pred_check
      _
    $region15: #{tpu_custom_call.1} parent=1 // pred_check_branch
      %53 = sbr.rel (0) target = $region17
    $region16: #{tpu_custom_call.1} parent=1 // pred_region
      _
    $region17: #{tpu_custom_call.1} parent=1 // pred_fallthru
      _
    // Predicated region
    $region18: #{tpu_custom_call.1} parent=1 // pred_check
      _
    $region19: #{tpu_custom_call.1} parent=1 // pred_check_branch
      %55 = sbr.rel (0) target = $region21
    $region20: #{tpu_custom_call.1} parent=1 // pred_region
      %56 = dma.done [#allocation3], 4096
    $region21: #{tpu_custom_call.1} parent=1 // pred_fallthru
      _
    // Predicated region
    $region22: #{tpu_custom_call.1} parent=1 // pred_check
      _
    $region23: #{tpu_custom_call.1} parent=1 // pred_check_branch
      %58 = sbr.rel (0) target = $region25
    $region24: #{tpu_custom_call.1} parent=1 // pred_region
      %59 = dma.done [#allocation6], 4096
    $region25: #{tpu_custom_call.1} parent=1 // pred_fallthru
      _
    // Predicated region
    $region26: #{tpu_custom_call.1} parent=1 // pred_check
      _
    $region27: #{tpu_custom_call.1} parent=1 // pred_check_branch
      %61 = sbr.rel (0) target = $region29
    $region28: #{tpu_custom_call.1} parent=1 // pred_region
      %62 = dma.done [#allocation6], 4096
    $region29: #{tpu_custom_call.1} parent=1 // pred_fallthru
      _
    %v63 = vld [vmem:[#allocation2] sm:$0xff]
    %v64 = vld [vmem:[#allocation2 + $0x8] sm:$0xff]
    %v65 = vld [vmem:[#allocation2 + $0x10] sm:$0xff]
    %v66 = vld [vmem:[#allocation2 + $0x18] sm:$0xff]
    %v67 = vld [vmem:[#allocation2 + $0x20] sm:$0xff]
    %v68 = vld [vmem:[#allocation2 + $0x28] sm:$0xff]
    %v69 = vld [vmem:[#allocation2 + $0x30] sm:$0xff]
    %v70 = vld [vmem:[#allocation2 + $0x38] sm:$0xff]
    %v71 = vld [vmem:[#allocation2 + $0x40] sm:$0xff]
    %v72 = vld [vmem:[#allocation2 + $0x48] sm:$0xff]
    %v73 = vld [vmem:[#allocation2 + $0x50] sm:$0xff]
    %v74 = vld [vmem:[#allocation2 + $0x58] sm:$0xff]
    %v75 = vld [vmem:[#allocation2 + $0x60] sm:$0xff]
    %v76 = vld [vmem:[#allocation2 + $0x68] sm:$0xff]
    %v77 = vld [vmem:[#allocation2 + $0x70] sm:$0xff]
    %v78 = vld [vmem:[#allocation2 + $0x78] sm:$0xff]
    %v79 = vld [vmem:[#allocation2 + $0x80] sm:$0xff]
    %v80 = vld [vmem:[#allocation2 + $0x88] sm:$0xff]
    %v81 = vld [vmem:[#allocation2 + $0x90] sm:$0xff]
    %v82 = vld [vmem:[#allocation2 + $0x98] sm:$0xff]
    %v83 = vld [vmem:[#allocation2 + $0xa0] sm:$0xff]
    %v84 = vld [vmem:[#allocation2 + $0xa8] sm:$0xff]
    %v85 = vld [vmem:[#allocation2 + $0xb0] sm:$0xff]
    %v86 = vld [vmem:[#allocation2 + $0xb8] sm:$0xff]
    %v87 = vld [vmem:[#allocation2 + $0xc0] sm:$0xff]
    %v88 = vld [vmem:[#allocation2 + $0xc8] sm:$0xff]
    %v89 = vld [vmem:[#allocation2 + $0xd0] sm:$0xff]
    %v90 = vld [vmem:[#allocation2 + $0xd8] sm:$0xff]
    %v91 = vld [vmem:[#allocation2 + $0xe0] sm:$0xff]
    %v92 = vld [vmem:[#allocation2 + $0xe8] sm:$0xff]
    %v93 = vld [vmem:[#allocation2 + $0xf0] sm:$0xff]
    %v94 = vld [vmem:[#allocation2 + $0xf8] sm:$0xff]
    %v95 = vld [vmem:[#allocation5] sm:$0xff]
    %v96 = vld [vmem:[#allocation5 + $0x8] sm:$0xff]
    %v97 = vld [vmem:[#allocation5 + $0x10] sm:$0xff]
    %v98 = vld [vmem:[#allocation5 + $0x18] sm:$0xff]
    %v99 = vld [vmem:[#allocation5 + $0x20] sm:$0xff]
    %v100 = vld [vmem:[#allocation5 + $0x28] sm:$0xff]
    %v101 = vld [vmem:[#allocation5 + $0x30] sm:$0xff]
    %v102 = vld [vmem:[#allocation5 + $0x38] sm:$0xff]
    %v103 = vld [vmem:[#allocation5 + $0x40] sm:$0xff]
    %v104 = vld [vmem:[#allocation5 + $0x48] sm:$0xff]
    %v105 = vld [vmem:[#allocation5 + $0x50] sm:$0xff]
    %v106 = vld [vmem:[#allocation5 + $0x58] sm:$0xff]
    %v107 = vld [vmem:[#allocation5 + $0x60] sm:$0xff]
    %v108 = vld [vmem:[#allocation5 + $0x68] sm:$0xff]
    %v109 = vld [vmem:[#allocation5 + $0x70] sm:$0xff]
    %v110 = vld [vmem:[#allocation5 + $0x78] sm:$0xff]
    %v111 = vld [vmem:[#allocation5 + $0x80] sm:$0xff]
    %v112 = vld [vmem:[#allocation5 + $0x88] sm:$0xff]
    %v113 = vld [vmem:[#allocation5 + $0x90] sm:$0xff]
    %v114 = vld [vmem:[#allocation5 + $0x98] sm:$0xff]
    %v115 = vld [vmem:[#allocation5 + $0xa0] sm:$0xff]
    %v116 = vld [vmem:[#allocation5 + $0xa8] sm:$0xff]
    %v117 = vld [vmem:[#allocation5 + $0xb0] sm:$0xff]
    %v118 = vld [vmem:[#allocation5 + $0xb8] sm:$0xff]
    %v119 = vld [vmem:[#allocation5 + $0xc0] sm:$0xff]
    %v120 = vld [vmem:[#allocation5 + $0xc8] sm:$0xff]
    %v121 = vld [vmem:[#allocation5 + $0xd0] sm:$0xff]
    %v122 = vld [vmem:[#allocation5 + $0xd8] sm:$0xff]
    %v123 = vld [vmem:[#allocation5 + $0xe0] sm:$0xff]
    %v124 = vld [vmem:[#allocation5 + $0xe8] sm:$0xff]
    %v125 = vld [vmem:[#allocation5 + $0xf0] sm:$0xff]
    %v126 = vld [vmem:[#allocation5 + $0xf8] sm:$0xff]
    %127 = vmatprep.subr.mxu0 %v96
    %128 = vmatpush1.msra.mxu0 %v95
    %129 = vmatprep.subr.mxu0 %v98
    %130 = vmatpush1.msra.mxu0 %v97
    %131 = vmatprep.subr.mxu0 %v100
    %132 = vmatpush1.msra.mxu0 %v99
    %133 = vmatprep.subr.mxu0 %v102
    %134 = vmatpush1.msra.mxu0 %v101
    %135 = vmatprep.subr.mxu0 %v104
    %136 = vmatpush1.msra.mxu0 %v103
    %137 = vmatprep.subr.mxu0 %v106
    %138 = vmatpush1.msra.mxu0 %v105
    %139 = vmatprep.subr.mxu0 %v108
    %140 = vmatpush1.msra.mxu0 %v107
    %141 = vmatprep.subr.mxu0 %v110
    %142 = vmatpush1.msra.mxu0 %v109
    %143 = vmatprep.subr.mxu0 %v112
    %144 = vmatpush1.msra.mxu0 %v111
    %145 = vmatprep.subr.mxu0 %v114
    %146 = vmatpush1.msra.mxu0 %v113
    %147 = vmatprep.subr.mxu0 %v116
    %148 = vmatpush1.msra.mxu0 %v115
    %149 = vmatprep.subr.mxu0 %v118
    %150 = vmatpush1.msra.mxu0 %v117
    %151 = vmatprep.subr.mxu0 %v120
    %152 = vmatpush1.msra.mxu0 %v119
    %153 = vmatprep.subr.mxu0 %v122
    %154 = vmatpush1.msra.mxu0 %v121
    %155 = vmatprep.subr.mxu0 %v124
    %156 = vmatpush1.msra.mxu0 %v123
    %157 = vmatprep.subr.mxu0 %v126
    %158 = vmatpush1.msra.mxu0 %v125
    %159 = vmatprep.subr.mxu0 0.0
    %160 = vmatpush1.msra.mxu0 0.0
    %161 = vmatprep.subr.mxu0 0.0
    %162 = vmatpush1.msra.mxu0 0.0
    %163 = vmatprep.subr.mxu0 0.0
    %164 = vmatpush1.msra.mxu0 0.0
    %165 = vmatprep.subr.mxu0 0.0
    %166 = vmatpush1.msra.mxu0 0.0
    %167 = vmatprep.subr.mxu0 0.0
    %168 = vmatpush1.msra.mxu0 0.0
    %169 = vmatprep.subr.mxu0 0.0
    %170 = vmatpush1.msra.mxu0 0.0
    %171 = vmatprep.subr.mxu0 0.0
    %172 = vmatpush1.msra.mxu0 0.0
    %173 = vmatprep.subr.mxu0 0.0
    %174 = vmatpush1.msra.mxu0 0.0
    %175 = vmatprep.subr.mxu0 0.0
    %176 = vmatpush1.msra.mxu0 0.0
    %177 = vmatprep.subr.mxu0 0.0
    %178 = vmatpush1.msra.mxu0 0.0
    %179 = vmatprep.subr.mxu0 0.0
    %180 = vmatpush1.msra.mxu0 0.0
    %181 = vmatprep.subr.mxu0 0.0
    %182 = vmatpush1.msra.mxu0 0.0
    %183 = vmatprep.subr.mxu0 0.0
    %184 = vmatpush1.msra.mxu0 0.0
    %185 = vmatprep.subr.mxu0 0.0
    %186 = vmatpush1.msra.mxu0 0.0
    %187 = vmatprep.subr.mxu0 0.0
    %188 = vmatpush1.msra.mxu0 0.0
    %189 = vmatprep.subr.mxu0 0.0
    %190 = vmatpush1.msra.mxu0 0.0
    %191 = vmatprep.mubr.f32.mxu0 0.0
    %192 = vmatmul.mubr.f32.gmra.mrb[0].mxu0 %v63
    %v193 = vpop.f32.mrb[0].mxu0
    %v194 = vadd.f32 0.0, %v193
    %v195 = vpop.f32.mrb[0].mxu0
    %v196 = vadd.f32 0.0, %v195
    %197 = vmatprep.mubr.f32.mxu0 0.0
    %198 = vmatmul.mubr.f32.gmra.mrb[0].mxu0 %v64
    %v199 = vpop.f32.mrb[0].mxu0
    %v200 = vadd.f32 0.0, %v199
    %v201 = vpop.f32.mrb[0].mxu0
    %v202 = vadd.f32 0.0, %v201
    %203 = vmatprep.mubr.f32.mxu0 0.0
    %204 = vmatmul.mubr.f32.gmra.mrb[0].mxu0 %v65
    %v205 = vpop.f32.mrb[0].mxu0
    %v206 = vadd.f32 0.0, %v205
    %v207 = vpop.f32.mrb[0].mxu0
    %v208 = vadd.f32 0.0, %v207
    %209 = vmatprep.mubr.f32.mxu0 0.0
    %210 = vmatmul.mubr.f32.gmra.mrb[0].mxu0 %v66
    %v211 = vpop.f32.mrb[0].mxu0
    %v212 = vadd.f32 0.0, %v211
    %v213 = vpop.f32.mrb[0].mxu0
    %v214 = vadd.f32 0.0, %v213
    %215 = vmatprep.mubr.f32.mxu0 0.0
    %216 = vmatmul.mubr.f32.gmra.mrb[0].mxu0 %v67
    %v217 = vpop.f32.mrb[0].mxu0
    %v218 = vadd.f32 0.0, %v217
    %v219 = vpop.f32.mrb[0].mxu0
    %v220 = vadd.f32 0.0, %v219
    %221 = vmatprep.mubr.f32.mxu0 0.0
    %222 = vmatmul.mubr.f32.gmra.mrb[0].mxu0 %v68
    %v223 = vpop.f32.mrb[0].mxu0
    %v224 = vadd.f32 0.0, %v223
    %v225 = vpop.f32.mrb[0].mxu0
    %v226 = vadd.f32 0.0, %v225
    %227 = vmatprep.mubr.f32.mxu0 0.0
    %228 = vmatmul.mubr.f32.gmra.mrb[0].mxu0 %v69
    %v229 = vpop.f32.mrb[0].mxu0
    %v230 = vadd.f32 0.0, %v229
    %v231 = vpop.f32.mrb[0].mxu0
    %v232 = vadd.f32 0.0, %v231
    %233 = vmatprep.mubr.f32.mxu0 0.0
    %234 = vmatmul.mubr.f32.gmra.mrb[0].mxu0 %v70
    %v235 = vpop.f32.mrb[0].mxu0
    %v236 = vadd.f32 0.0, %v235
    %v237 = vpop.f32.mrb[0].mxu0
    %v238 = vadd.f32 0.0, %v237
    %239 = vmatprep.mubr.f32.mxu0 0.0
    %240 = vmatmul.mubr.f32.gmra.mrb[0].mxu0 %v71
    %v241 = vpop.f32.mrb[0].mxu0
    %v242 = vadd.f32 0.0, %v241
    %v243 = vpop.f32.mrb[0].mxu0
    %v244 = vadd.f32 0.0, %v243
    %245 = vmatprep.mubr.f32.mxu0 0.0
    %246 = vmatmul.mubr.f32.gmra.mrb[0].mxu0 %v72
    %v247 = vpop.f32.mrb[0].mxu0
    %v248 = vadd.f32 0.0, %v247
    %v249 = vpop.f32.mrb[0].mxu0
    %v250 = vadd.f32 0.0, %v249
    %251 = vmatprep.mubr.f32.mxu0 0.0
    %252 = vmatmul.mubr.f32.gmra.mrb[0].mxu0 %v73
    %v253 = vpop.f32.mrb[0].mxu0
    %v254 = vadd.f32 0.0, %v253
    %v255 = vpop.f32.mrb[0].mxu0
    %v256 = vadd.f32 0.0, %v255
    %257 = vmatprep.mubr.f32.mxu0 0.0
    %258 = vmatmul.mubr.f32.gmra.mrb[0].mxu0 %v74
    %v259 = vpop.f32.mrb[0].mxu0
    %v260 = vadd.f32 0.0, %v259
    %v261 = vpop.f32.mrb[0].mxu0
    %v262 = vadd.f32 0.0, %v261
    %263 = vmatprep.mubr.f32.mxu0 0.0
    %264 = vmatmul.mubr.f32.gmra.mrb[0].mxu0 %v75
    %v265 = vpop.f32.mrb[0].mxu0
    %v266 = vadd.f32 0.0, %v265
    %v267 = vpop.f32.mrb[0].mxu0
    %v268 = vadd.f32 0.0, %v267
    %269 = vmatprep.mubr.f32.mxu0 0.0
    %270 = vmatmul.mubr.f32.gmra.mrb[0].mxu0 %v76
    %v271 = vpop.f32.mrb[0].mxu0
    %v272 = vadd.f32 0.0, %v271
    %v273 = vpop.f32.mrb[0].mxu0
    %v274 = vadd.f32 0.0, %v273
    %275 = vmatprep.mubr.f32.mxu0 0.0
    %276 = vmatmul.mubr.f32.gmra.mrb[0].mxu0 %v77
    %v277 = vpop.f32.mrb[0].mxu0
    %v278 = vadd.f32 0.0, %v277
    %v279 = vpop.f32.mrb[0].mxu0
    %v280 = vadd.f32 0.0, %v279
    %281 = vmatprep.mubr.f32.mxu0 0.0
    %282 = vmatmul.mubr.f32.gmra.mrb[0].mxu0 %v78
    %v283 = vpop.f32.mrb[0].mxu0
    %v284 = vadd.f32 0.0, %v283
    %v285 = vpop.f32.mrb[0].mxu0
    %v286 = vadd.f32 0.0, %v285
    %287 = vmatprep.mubr.f32.mxu0 0.0
    %288 = vmatmul.mubr.f32.gmra.mrb[0].mxu0 %v79
    %v289 = vpop.f32.mrb[0].mxu0
    %v290 = vadd.f32 0.0, %v289
    %v291 = vpop.f32.mrb[0].mxu0
    %v292 = vadd.f32 0.0, %v291
    %293 = vmatprep.mubr.f32.mxu0 0.0
    %294 = vmatmul.mubr.f32.gmra.mrb[0].mxu0 %v80
    %v295 = vpop.f32.mrb[0].mxu0
    %v296 = vadd.f32 0.0, %v295
    %v297 = vpop.f32.mrb[0].mxu0
    %v298 = vadd.f32 0.0, %v297
    %299 = vmatprep.mubr.f32.mxu0 0.0
    %300 = vmatmul.mubr.f32.gmra.mrb[0].mxu0 %v81
    %v301 = vpop.f32.mrb[0].mxu0
    %v302 = vadd.f32 0.0, %v301
    %v303 = vpop.f32.mrb[0].mxu0
    %v304 = vadd.f32 0.0, %v303
    %305 = vmatprep.mubr.f32.mxu0 0.0
    %306 = vmatmul.mubr.f32.gmra.mrb[0].mxu0 %v82
    %v307 = vpop.f32.mrb[0].mxu0
    %v308 = vadd.f32 0.0, %v307
    %v309 = vpop.f32.mrb[0].mxu0
    %v310 = vadd.f32 0.0, %v309
    %311 = vmatprep.mubr.f32.mxu0 0.0
    %312 = vmatmul.mubr.f32.gmra.mrb[0].mxu0 %v83
    %v313 = vpop.f32.mrb[0].mxu0
    %v314 = vadd.f32 0.0, %v313
    %v315 = vpop.f32.mrb[0].mxu0
    %v316 = vadd.f32 0.0, %v315
    %317 = vmatprep.mubr.f32.mxu0 0.0
    %318 = vmatmul.mubr.f32.gmra.mrb[0].mxu0 %v84
    %v319 = vpop.f32.mrb[0].mxu0
    %v320 = vadd.f32 0.0, %v319
    %v321 = vpop.f32.mrb[0].mxu0
    %v322 = vadd.f32 0.0, %v321
    %323 = vmatprep.mubr.f32.mxu0 0.0
    %324 = vmatmul.mubr.f32.gmra.mrb[0].mxu0 %v85
    %v325 = vpop.f32.mrb[0].mxu0
    %v326 = vadd.f32 0.0, %v325
    %v327 = vpop.f32.mrb[0].mxu0
    %v328 = vadd.f32 0.0, %v327
    %329 = vmatprep.mubr.f32.mxu0 0.0
    %330 = vmatmul.mubr.f32.gmra.mrb[0].mxu0 %v86
    %v331 = vpop.f32.mrb[0].mxu0
    %v332 = vadd.f32 0.0, %v331
    %v333 = vpop.f32.mrb[0].mxu0
    %v334 = vadd.f32 0.0, %v333
    %335 = vmatprep.mubr.f32.mxu0 0.0
    %336 = vmatmul.mubr.f32.gmra.mrb[0].mxu0 %v87
    %v337 = vpop.f32.mrb[0].mxu0
    %v338 = vadd.f32 0.0, %v337
    %v339 = vpop.f32.mrb[0].mxu0
    %v340 = vadd.f32 0.0, %v339
    %341 = vmatprep.mubr.f32.mxu0 0.0
    %342 = vmatmul.mubr.f32.gmra.mrb[0].mxu0 %v88
    %v343 = vpop.f32.mrb[0].mxu0
    %v344 = vadd.f32 0.0, %v343
    %v345 = vpop.f32.mrb[0].mxu0
    %v346 = vadd.f32 0.0, %v345
    %347 = vmatprep.mubr.f32.mxu0 0.0
    %348 = vmatmul.mubr.f32.gmra.mrb[0].mxu0 %v89
    %v349 = vpop.f32.mrb[0].mxu0
    %v350 = vadd.f32 0.0, %v349
    %v351 = vpop.f32.mrb[0].mxu0
    %v352 = vadd.f32 0.0, %v351
    %353 = vmatprep.mubr.f32.mxu0 0.0
    %354 = vmatmul.mubr.f32.gmra.mrb[0].mxu0 %v90
    %v355 = vpop.f32.mrb[0].mxu0
    %v356 = vadd.f32 0.0, %v355
    %v357 = vpop.f32.mrb[0].mxu0
    %v358 = vadd.f32 0.0, %v357
    %359 = vmatprep.mubr.f32.mxu0 0.0
    %360 = vmatmul.mubr.f32.gmra.mrb[0].mxu0 %v91
    %v361 = vpop.f32.mrb[0].mxu0
    %v362 = vadd.f32 0.0, %v361
    %v363 = vpop.f32.mrb[0].mxu0
    %v364 = vadd.f32 0.0, %v363
    %365 = vmatprep.mubr.f32.mxu0 0.0
    %366 = vmatmul.mubr.f32.gmra.mrb[0].mxu0 %v92
    %v367 = vpop.f32.mrb[0].mxu0
    %v368 = vadd.f32 0.0, %v367
    %v369 = vpop.f32.mrb[0].mxu0
    %v370 = vadd.f32 0.0, %v369
    %371 = vmatprep.mubr.f32.mxu0 0.0
    %372 = vmatmul.mubr.f32.gmra.mrb[0].mxu0 %v93
    %v373 = vpop.f32.mrb[0].mxu0
    %v374 = vadd.f32 0.0, %v373
    %v375 = vpop.f32.mrb[0].mxu0
    %v376 = vadd.f32 0.0, %v375
    %377 = vmatprep.mubr.f32.mxu0 0.0
    %378 = vmatmul.mubr.f32.gmra.mrb[0].mxu0 %v94
    %v379 = vpop.f32.mrb[0].mxu0
    %v380 = vadd.f32 0.0, %v379
    %v381 = vpop.f32.mrb[0].mxu0
    %v382 = vadd.f32 0.0, %v381
    %383 = vdwg.mxu0
    %v384 = vld [vmem:[%s3] sm:$0x3]
    %v386 = vlaneseq
    %v387 = vshrl.u32 %v386, 7
    %v388 = vsub.s32 0, %v387
    %v389 = vrot.slane %v384, %v388
    %v390 = vlaneseq
    %v391 = vshrl.u32 %v390, 7
    %v392 = vsub.s32 1, %v391
    %v393 = vrot.slane %v384, %v392
    %v396 = vsub.f32 %v389, %v194
    %v397 = vsub.f32 %v393, %v196
    %v398 = vsub.f32 %v389, %v200
    %v399 = vsub.f32 %v393, %v202
    %v400 = vsub.f32 %v389, %v206
    %v401 = vsub.f32 %v393, %v208
    %v402 = vsub.f32 %v389, %v212
    %v403 = vsub.f32 %v393, %v214
    %v404 = vsub.f32 %v389, %v218
    %v405 = vsub.f32 %v393, %v220
    %v406 = vsub.f32 %v389, %v224
    %v407 = vsub.f32 %v393, %v226
    %v408 = vsub.f32 %v389, %v230
    %v409 = vsub.f32 %v393, %v232
    %v410 = vsub.f32 %v389, %v236
    %v411 = vsub.f32 %v393, %v238
    %v412 = vsub.f32 %v389, %v242
    %v413 = vsub.f32 %v393, %v244
    %v414 = vsub.f32 %v389, %v248
    %v415 = vsub.f32 %v393, %v250
    %v416 = vsub.f32 %v389, %v254
    %v417 = vsub.f32 %v393, %v256
    %v418 = vsub.f32 %v389, %v260
    %v419 = vsub.f32 %v393, %v262
    %v420 = vsub.f32 %v389, %v266
    %v421 = vsub.f32 %v393, %v268
    %v422 = vsub.f32 %v389, %v272
    %v423 = vsub.f32 %v393, %v274
    %v424 = vsub.f32 %v389, %v278
    %v425 = vsub.f32 %v393, %v280
    %v426 = vsub.f32 %v389, %v284
    %v427 = vsub.f32 %v393, %v286
    %v428 = vsub.f32 %v389, %v290
    %v429 = vsub.f32 %v393, %v292
    %v430 = vsub.f32 %v389, %v296
    %v431 = vsub.f32 %v393, %v298
    %v432 = vsub.f32 %v389, %v302
    %v433 = vsub.f32 %v393, %v304
    %v434 = vsub.f32 %v389, %v308
    %v435 = vsub.f32 %v393, %v310
    %v436 = vsub.f32 %v389, %v314
    %v437 = vsub.f32 %v393, %v316
    %v438 = vsub.f32 %v389, %v320
    %v439 = vsub.f32 %v393, %v322
    %v440 = vsub.f32 %v389, %v326
    %v441 = vsub.f32 %v393, %v328
    %v442 = vsub.f32 %v389, %v332
    %v443 = vsub.f32 %v393, %v334
    %v444 = vsub.f32 %v389, %v338
    %v445 = vsub.f32 %v393, %v340
    %v446 = vsub.f32 %v389, %v344
    %v447 = vsub.f32 %v393, %v346
    %v448 = vsub.f32 %v389, %v350
    %v449 = vsub.f32 %v393, %v352
    %v450 = vsub.f32 %v389, %v356
    %v451 = vsub.f32 %v393, %v358
    %v452 = vsub.f32 %v389, %v362
    %v453 = vsub.f32 %v393, %v364
    %v454 = vsub.f32 %v389, %v368
    %v455 = vsub.f32 %v393, %v370
    %v456 = vsub.f32 %v389, %v374
    %v457 = vsub.f32 %v393, %v376
    %v458 = vsub.f32 %v389, %v380
    %v459 = vsub.f32 %v393, %v382
    %v460 = vlaneseq
    %v461 = vand.u32 %v460, 127
    %v462 = vadd.s32 %v461, 128
    %vm463 = vcmp.le.f32.partialorder %v396, %v397
    %v464 = vsel %vm463, %v396, %v397
    %v465 = vsel %vm463, %v461, %v462
    %466 = vmin.index.xlane.f32.xlu0 %v464
    %v467 = vpop.xlane.xlu0 %466
    %468 = vset.pattern.permute.xlu0 %v467
    %469 = vperm.xlu0 %468, %v465
    %v470 = vpop.permute.xlu0 %469
    %vm471 = vcmp.le.f32.partialorder %v398, %v399
    %v472 = vsel %vm471, %v398, %v399
    %v473 = vsel %vm471, %v461, %v462
    %474 = vmin.index.xlane.f32.xlu0 %v472
    %v475 = vpop.xlane.xlu0 %474
    %476 = vset.pattern.permute.xlu0 %v475
    %477 = vperm.xlu0 %476, %v473
    %v478 = vpop.permute.xlu0 %477
    %vm479 = vcmp.le.f32.partialorder %v400, %v401
    %v480 = vsel %vm479, %v400, %v401
    %v481 = vsel %vm479, %v461, %v462
    %482 = vmin.index.xlane.f32.xlu0 %v480
    %v483 = vpop.xlane.xlu0 %482
    %484 = vset.pattern.permute.xlu0 %v483
    %485 = vperm.xlu0 %484, %v481
    %v486 = vpop.permute.xlu0 %485
    %vm487 = vcmp.le.f32.partialorder %v402, %v403
    %v488 = vsel %vm487, %v402, %v403
    %v489 = vsel %vm487, %v461, %v462
    %490 = vmin.index.xlane.f32.xlu0 %v488
    %v491 = vpop.xlane.xlu0 %490
    %492 = vset.pattern.permute.xlu0 %v491
    %493 = vperm.xlu0 %492, %v489
    %v494 = vpop.permute.xlu0 %493
    %vm495 = vcmp.le.f32.partialorder %v404, %v405
    %v496 = vsel %vm495, %v404, %v405
    %v497 = vsel %vm495, %v461, %v462
    %498 = vmin.index.xlane.f32.xlu0 %v496
    %v499 = vpop.xlane.xlu0 %498
    %500 = vset.pattern.permute.xlu0 %v499
    %501 = vperm.xlu0 %500, %v497
    %v502 = vpop.permute.xlu0 %501
    %vm503 = vcmp.le.f32.partialorder %v406, %v407
    %v504 = vsel %vm503, %v406, %v407
    %v505 = vsel %vm503, %v461, %v462
    %506 = vmin.index.xlane.f32.xlu0 %v504
    %v507 = vpop.xlane.xlu0 %506
    %508 = vset.pattern.permute.xlu0 %v507
    %509 = vperm.xlu0 %508, %v505
    %v510 = vpop.permute.xlu0 %509
    %vm511 = vcmp.le.f32.partialorder %v408, %v409
    %v512 = vsel %vm511, %v408, %v409
    %v513 = vsel %vm511, %v461, %v462
    %514 = vmin.index.xlane.f32.xlu0 %v512
    %v515 = vpop.xlane.xlu0 %514
    %516 = vset.pattern.permute.xlu0 %v515
    %517 = vperm.xlu0 %516, %v513
    %v518 = vpop.permute.xlu0 %517
    %vm519 = vcmp.le.f32.partialorder %v410, %v411
    %v520 = vsel %vm519, %v410, %v411
    %v521 = vsel %vm519, %v461, %v462
    %522 = vmin.index.xlane.f32.xlu0 %v520
    %v523 = vpop.xlane.xlu0 %522
    %524 = vset.pattern.permute.xlu0 %v523
    %525 = vperm.xlu0 %524, %v521
    %v526 = vpop.permute.xlu0 %525
    %vm527 = vcmp.le.f32.partialorder %v412, %v413
    %v528 = vsel %vm527, %v412, %v413
    %v529 = vsel %vm527, %v461, %v462
    %530 = vmin.index.xlane.f32.xlu0 %v528
    %v531 = vpop.xlane.xlu0 %530
    %532 = vset.pattern.permute.xlu0 %v531
    %533 = vperm.xlu0 %532, %v529
    %v534 = vpop.permute.xlu0 %533
    %vm535 = vcmp.le.f32.partialorder %v414, %v415
    %v536 = vsel %vm535, %v414, %v415
    %v537 = vsel %vm535, %v461, %v462
    %538 = vmin.index.xlane.f32.xlu0 %v536
    %v539 = vpop.xlane.xlu0 %538
    %540 = vset.pattern.permute.xlu0 %v539
    %541 = vperm.xlu0 %540, %v537
    %v542 = vpop.permute.xlu0 %541
    %vm543 = vcmp.le.f32.partialorder %v416, %v417
    %v544 = vsel %vm543, %v416, %v417
    %v545 = vsel %vm543, %v461, %v462
    %546 = vmin.index.xlane.f32.xlu0 %v544
    %v547 = vpop.xlane.xlu0 %546
    %548 = vset.pattern.permute.xlu0 %v547
    %549 = vperm.xlu0 %548, %v545
    %v550 = vpop.permute.xlu0 %549
    %vm551 = vcmp.le.f32.partialorder %v418, %v419
    %v552 = vsel %vm551, %v418, %v419
    %v553 = vsel %vm551, %v461, %v462
    %554 = vmin.index.xlane.f32.xlu0 %v552
    %v555 = vpop.xlane.xlu0 %554
    %556 = vset.pattern.permute.xlu0 %v555
    %557 = vperm.xlu0 %556, %v553
    %v558 = vpop.permute.xlu0 %557
    %vm559 = vcmp.le.f32.partialorder %v420, %v421
    %v560 = vsel %vm559, %v420, %v421
    %v561 = vsel %vm559, %v461, %v462
    %562 = vmin.index.xlane.f32.xlu0 %v560
    %v563 = vpop.xlane.xlu0 %562
    %564 = vset.pattern.permute.xlu0 %v563
    %565 = vperm.xlu0 %564, %v561
    %v566 = vpop.permute.xlu0 %565
    %vm567 = vcmp.le.f32.partialorder %v422, %v423
    %v568 = vsel %vm567, %v422, %v423
    %v569 = vsel %vm567, %v461, %v462
    %570 = vmin.index.xlane.f32.xlu0 %v568
    %v571 = vpop.xlane.xlu0 %570
    %572 = vset.pattern.permute.xlu0 %v571
    %573 = vperm.xlu0 %572, %v569
    %v574 = vpop.permute.xlu0 %573
    %vm575 = vcmp.le.f32.partialorder %v424, %v425
    %v576 = vsel %vm575, %v424, %v425
    %v577 = vsel %vm575, %v461, %v462
    %578 = vmin.index.xlane.f32.xlu0 %v576
    %v579 = vpop.xlane.xlu0 %578
    %580 = vset.pattern.permute.xlu0 %v579
    %581 = vperm.xlu0 %580, %v577
    %v582 = vpop.permute.xlu0 %581
    %vm583 = vcmp.le.f32.partialorder %v426, %v427
    %v584 = vsel %vm583, %v426, %v427
    %v585 = vsel %vm583, %v461, %v462
    %586 = vmin.index.xlane.f32.xlu0 %v584
    %v587 = vpop.xlane.xlu0 %586
    %588 = vset.pattern.permute.xlu0 %v587
    %589 = vperm.xlu0 %588, %v585
    %v590 = vpop.permute.xlu0 %589
    %vm591 = vcmp.le.f32.partialorder %v428, %v429
    %v592 = vsel %vm591, %v428, %v429
    %v593 = vsel %vm591, %v461, %v462
    %594 = vmin.index.xlane.f32.xlu0 %v592
    %v595 = vpop.xlane.xlu0 %594
    %596 = vset.pattern.permute.xlu0 %v595
    %597 = vperm.xlu0 %596, %v593
    %v598 = vpop.permute.xlu0 %597
    %vm599 = vcmp.le.f32.partialorder %v430, %v431
    %v600 = vsel %vm599, %v430, %v431
    %v601 = vsel %vm599, %v461, %v462
    %602 = vmin.index.xlane.f32.xlu0 %v600
    %v603 = vpop.xlane.xlu0 %602
    %604 = vset.pattern.permute.xlu0 %v603
    %605 = vperm.xlu0 %604, %v601
    %v606 = vpop.permute.xlu0 %605
    %vm607 = vcmp.le.f32.partialorder %v432, %v433
    %v608 = vsel %vm607, %v432, %v433
    %v609 = vsel %vm607, %v461, %v462
    %610 = vmin.index.xlane.f32.xlu0 %v608
    %v611 = vpop.xlane.xlu0 %610
    %612 = vset.pattern.permute.xlu0 %v611
    %613 = vperm.xlu0 %612, %v609
    %v614 = vpop.permute.xlu0 %613
    %vm615 = vcmp.le.f32.partialorder %v434, %v435
    %v616 = vsel %vm615, %v434, %v435
    %v617 = vsel %vm615, %v461, %v462
    %618 = vmin.index.xlane.f32.xlu0 %v616
    %v619 = vpop.xlane.xlu0 %618
    %620 = vset.pattern.permute.xlu0 %v619
    %621 = vperm.xlu0 %620, %v617
    %v622 = vpop.permute.xlu0 %621
    %vm623 = vcmp.le.f32.partialorder %v436, %v437
    %v624 = vsel %vm623, %v436, %v437
    %v625 = vsel %vm623, %v461, %v462
    %626 = vmin.index.xlane.f32.xlu0 %v624
    %v627 = vpop.xlane.xlu0 %626
    %628 = vset.pattern.permute.xlu0 %v627
    %629 = vperm.xlu0 %628, %v625
    %v630 = vpop.permute.xlu0 %629
    %vm631 = vcmp.le.f32.partialorder %v438, %v439
    %v632 = vsel %vm631, %v438, %v439
    %v633 = vsel %vm631, %v461, %v462
    %634 = vmin.index.xlane.f32.xlu0 %v632
    %v635 = vpop.xlane.xlu0 %634
    %636 = vset.pattern.permute.xlu0 %v635
    %637 = vperm.xlu0 %636, %v633
    %v638 = vpop.permute.xlu0 %637
    %vm639 = vcmp.le.f32.partialorder %v440, %v441
    %v640 = vsel %vm639, %v440, %v441
    %v641 = vsel %vm639, %v461, %v462
    %642 = vmin.index.xlane.f32.xlu0 %v640
    %v643 = vpop.xlane.xlu0 %642
    %644 = vset.pattern.permute.xlu0 %v643
    %645 = vperm.xlu0 %644, %v641
    %v646 = vpop.permute.xlu0 %645
    %vm647 = vcmp.le.f32.partialorder %v442, %v443
    %v648 = vsel %vm647, %v442, %v443
    %v649 = vsel %vm647, %v461, %v462
    %650 = vmin.index.xlane.f32.xlu0 %v648
    %v651 = vpop.xlane.xlu0 %650
    %652 = vset.pattern.permute.xlu0 %v651
    %653 = vperm.xlu0 %652, %v649
    %v654 = vpop.permute.xlu0 %653
    %vm655 = vcmp.le.f32.partialorder %v444, %v445
    %v656 = vsel %vm655, %v444, %v445
    %v657 = vsel %vm655, %v461, %v462
    %658 = vmin.index.xlane.f32.xlu0 %v656
    %v659 = vpop.xlane.xlu0 %658
    %660 = vset.pattern.permute.xlu0 %v659
    %661 = vperm.xlu0 %660, %v657
    %v662 = vpop.permute.xlu0 %661
    %vm663 = vcmp.le.f32.partialorder %v446, %v447
    %v664 = vsel %vm663, %v446, %v447
    %v665 = vsel %vm663, %v461, %v462
    %666 = vmin.index.xlane.f32.xlu0 %v664
    %v667 = vpop.xlane.xlu0 %666
    %668 = vset.pattern.permute.xlu0 %v667
    %669 = vperm.xlu0 %668, %v665
    %v670 = vpop.permute.xlu0 %669
    %vm671 = vcmp.le.f32.partialorder %v448, %v449
    %v672 = vsel %vm671, %v448, %v449
    %v673 = vsel %vm671, %v461, %v462
    %674 = vmin.index.xlane.f32.xlu0 %v672
    %v675 = vpop.xlane.xlu0 %674
    %676 = vset.pattern.permute.xlu0 %v675
    %677 = vperm.xlu0 %676, %v673
    %v678 = vpop.permute.xlu0 %677
    %vm679 = vcmp.le.f32.partialorder %v450, %v451
    %v680 = vsel %vm679, %v450, %v451
    %v681 = vsel %vm679, %v461, %v462
    %682 = vmin.index.xlane.f32.xlu0 %v680
    %v683 = vpop.xlane.xlu0 %682
    %684 = vset.pattern.permute.xlu0 %v683
    %685 = vperm.xlu0 %684, %v681
    %v686 = vpop.permute.xlu0 %685
    %vm687 = vcmp.le.f32.partialorder %v452, %v453
    %v688 = vsel %vm687, %v452, %v453
    %v689 = vsel %vm687, %v461, %v462
    %690 = vmin.index.xlane.f32.xlu0 %v688
    %v691 = vpop.xlane.xlu0 %690
    %692 = vset.pattern.permute.xlu0 %v691
    %693 = vperm.xlu0 %692, %v689
    %v694 = vpop.permute.xlu0 %693
    %vm695 = vcmp.le.f32.partialorder %v454, %v455
    %v696 = vsel %vm695, %v454, %v455
    %v697 = vsel %vm695, %v461, %v462
    %698 = vmin.index.xlane.f32.xlu0 %v696
    %v699 = vpop.xlane.xlu0 %698
    %700 = vset.pattern.permute.xlu0 %v699
    %701 = vperm.xlu0 %700, %v697
    %v702 = vpop.permute.xlu0 %701
    %vm703 = vcmp.le.f32.partialorder %v456, %v457
    %v704 = vsel %vm703, %v456, %v457
    %v705 = vsel %vm703, %v461, %v462
    %706 = vmin.index.xlane.f32.xlu0 %v704
    %v707 = vpop.xlane.xlu0 %706
    %708 = vset.pattern.permute.xlu0 %v707
    %709 = vperm.xlu0 %708, %v705
    %v710 = vpop.permute.xlu0 %709
    %vm711 = vcmp.le.f32.partialorder %v458, %v459
    %v712 = vsel %vm711, %v458, %v459
    %v713 = vsel %vm711, %v461, %v462
    %714 = vmin.index.xlane.f32.xlu0 %v712
    %v715 = vpop.xlane.xlu0 %714
    %716 = vset.pattern.permute.xlu0 %v715
    %717 = vperm.xlu0 %716, %v713
    %v718 = vpop.permute.xlu0 %717
    %v719 = vlaneseq
    %v720 = vshrl.u32 %v719, 7
    %v721 = vsub.s32 0, %v720
    %v722 = vrot.slane %v470, %v721
    %v723 = vlaneseq
    %v724 = vshrl.u32 %v723, 7
    %v725 = vsub.s32 1, %v724
    %v726 = vrot.slane %v470, %v725
    %v727 = vlaneseq
    %v728 = vshrl.u32 %v727, 7
    %v729 = vsub.s32 2, %v728
    %v730 = vrot.slane %v470, %v729
    %v731 = vlaneseq
    %v732 = vshrl.u32 %v731, 7
    %v733 = vsub.s32 3, %v732
    %v734 = vrot.slane %v470, %v733
    %v735 = vlaneseq
    %v736 = vshrl.u32 %v735, 7
    %v737 = vsub.s32 4, %v736
    %v738 = vrot.slane %v470, %v737
    %v739 = vlaneseq
    %v740 = vshrl.u32 %v739, 7
    %v741 = vsub.s32 5, %v740
    %v742 = vrot.slane %v470, %v741
    %v743 = vlaneseq
    %v744 = vshrl.u32 %v743, 7
    %v745 = vsub.s32 6, %v744
    %v746 = vrot.slane %v470, %v745
    %v747 = vlaneseq
    %v748 = vshrl.u32 %v747, 7
    %v749 = vsub.s32 7, %v748
    %v750 = vrot.slane %v470, %v749
    %v751 = vlaneseq
    %v752 = vshrl.u32 %v751, 7
    %v753 = vsub.s32 0, %v752
    %v754 = vrot.slane %v478, %v753
    %v755 = vlaneseq
    %v756 = vshrl.u32 %v755, 7
    %v757 = vsub.s32 1, %v756
    %v758 = vrot.slane %v478, %v757
    %v759 = vlaneseq
    %v760 = vshrl.u32 %v759, 7
    %v761 = vsub.s32 2, %v760
    %v762 = vrot.slane %v478, %v761
    %v763 = vlaneseq
    %v764 = vshrl.u32 %v763, 7
    %v765 = vsub.s32 3, %v764
    %v766 = vrot.slane %v478, %v765
    %v767 = vlaneseq
    %v768 = vshrl.u32 %v767, 7
    %v769 = vsub.s32 4, %v768
    %v770 = vrot.slane %v478, %v769
    %v771 = vlaneseq
    %v772 = vshrl.u32 %v771, 7
    %v773 = vsub.s32 5, %v772
    %v774 = vrot.slane %v478, %v773
    %v775 = vlaneseq
    %v776 = vshrl.u32 %v775, 7
    %v777 = vsub.s32 6, %v776
    %v778 = vrot.slane %v478, %v777
    %v779 = vlaneseq
    %v780 = vshrl.u32 %v779, 7
    %v781 = vsub.s32 7, %v780
    %v782 = vrot.slane %v478, %v781
    %v783 = vlaneseq
    %v784 = vshrl.u32 %v783, 7
    %v785 = vsub.s32 0, %v784
    %v786 = vrot.slane %v486, %v785
    %v787 = vlaneseq
    %v788 = vshrl.u32 %v787, 7
    %v789 = vsub.s32 1, %v788
    %v790 = vrot.slane %v486, %v789
    %v791 = vlaneseq
    %v792 = vshrl.u32 %v791, 7
    %v793 = vsub.s32 2, %v792
    %v794 = vrot.slane %v486, %v793
    %v795 = vlaneseq
    %v796 = vshrl.u32 %v795, 7
    %v797 = vsub.s32 3, %v796
    %v798 = vrot.slane %v486, %v797
    %v799 = vlaneseq
    %v800 = vshrl.u32 %v799, 7
    %v801 = vsub.s32 4, %v800
    %v802 = vrot.slane %v486, %v801
    %v803 = vlaneseq
    %v804 = vshrl.u32 %v803, 7
    %v805 = vsub.s32 5, %v804
    %v806 = vrot.slane %v486, %v805
    %v807 = vlaneseq
    %v808 = vshrl.u32 %v807, 7
    %v809 = vsub.s32 6, %v808
    %v810 = vrot.slane %v486, %v809
    %v811 = vlaneseq
    %v812 = vshrl.u32 %v811, 7
    %v813 = vsub.s32 7, %v812
    %v814 = vrot.slane %v486, %v813
    %v815 = vlaneseq
    %v816 = vshrl.u32 %v815, 7
    %v817 = vsub.s32 0, %v816
    %v818 = vrot.slane %v494, %v817
    %v819 = vlaneseq
    %v820 = vshrl.u32 %v819, 7
    %v821 = vsub.s32 1, %v820
    %v822 = vrot.slane %v494, %v821
    %v823 = vlaneseq
    %v824 = vshrl.u32 %v823, 7
    %v825 = vsub.s32 2, %v824
    %v826 = vrot.slane %v494, %v825
    %v827 = vlaneseq
    %v828 = vshrl.u32 %v827, 7
    %v829 = vsub.s32 3, %v828
    %v830 = vrot.slane %v494, %v829
    %v831 = vlaneseq
    %v832 = vshrl.u32 %v831, 7
    %v833 = vsub.s32 4, %v832
    %v834 = vrot.slane %v494, %v833
    %v835 = vlaneseq
    %v836 = vshrl.u32 %v835, 7
    %v837 = vsub.s32 5, %v836
    %v838 = vrot.slane %v494, %v837
    %v839 = vlaneseq
    %v840 = vshrl.u32 %v839, 7
    %v841 = vsub.s32 6, %v840
    %v842 = vrot.slane %v494, %v841
    %v843 = vlaneseq
    %v844 = vshrl.u32 %v843, 7
    %v845 = vsub.s32 7, %v844
    %v846 = vrot.slane %v494, %v845
    %v847 = vlaneseq
    %v848 = vshrl.u32 %v847, 7
    %v849 = vsub.s32 0, %v848
    %v850 = vrot.slane %v502, %v849
    %v851 = vlaneseq
    %v852 = vshrl.u32 %v851, 7
    %v853 = vsub.s32 1, %v852
    %v854 = vrot.slane %v502, %v853
    %v855 = vlaneseq
    %v856 = vshrl.u32 %v855, 7
    %v857 = vsub.s32 2, %v856
    %v858 = vrot.slane %v502, %v857
    %v859 = vlaneseq
    %v860 = vshrl.u32 %v859, 7
    %v861 = vsub.s32 3, %v860
    %v862 = vrot.slane %v502, %v861
    %v863 = vlaneseq
    %v864 = vshrl.u32 %v863, 7
    %v865 = vsub.s32 4, %v864
    %v866 = vrot.slane %v502, %v865
    %v867 = vlaneseq
    %v868 = vshrl.u32 %v867, 7
    %v869 = vsub.s32 5, %v868
    %v870 = vrot.slane %v502, %v869
    %v871 = vlaneseq
    %v872 = vshrl.u32 %v871, 7
    %v873 = vsub.s32 6, %v872
    %v874 = vrot.slane %v502, %v873
    %v875 = vlaneseq
    %v876 = vshrl.u32 %v875, 7
    %v877 = vsub.s32 7, %v876
    %v878 = vrot.slane %v502, %v877
    %v879 = vlaneseq
    %v880 = vshrl.u32 %v879, 7
    %v881 = vsub.s32 0, %v880
    %v882 = vrot.slane %v510, %v881
    %v883 = vlaneseq
    %v884 = vshrl.u32 %v883, 7
    %v885 = vsub.s32 1, %v884
    %v886 = vrot.slane %v510, %v885
    %v887 = vlaneseq
    %v888 = vshrl.u32 %v887, 7
    %v889 = vsub.s32 2, %v888
    %v890 = vrot.slane %v510, %v889
    %v891 = vlaneseq
    %v892 = vshrl.u32 %v891, 7
    %v893 = vsub.s32 3, %v892
    %v894 = vrot.slane %v510, %v893
    %v895 = vlaneseq
    %v896 = vshrl.u32 %v895, 7
    %v897 = vsub.s32 4, %v896
    %v898 = vrot.slane %v510, %v897
    %v899 = vlaneseq
    %v900 = vshrl.u32 %v899, 7
    %v901 = vsub.s32 5, %v900
    %v902 = vrot.slane %v510, %v901
    %v903 = vlaneseq
    %v904 = vshrl.u32 %v903, 7
    %v905 = vsub.s32 6, %v904
    %v906 = vrot.slane %v510, %v905
    %v907 = vlaneseq
    %v908 = vshrl.u32 %v907, 7
    %v909 = vsub.s32 7, %v908
    %v910 = vrot.slane %v510, %v909
    %v911 = vlaneseq
    %v912 = vshrl.u32 %v911, 7
    %v913 = vsub.s32 0, %v912
    %v914 = vrot.slane %v518, %v913
    %v915 = vlaneseq
    %v916 = vshrl.u32 %v915, 7
    %v917 = vsub.s32 1, %v916
    %v918 = vrot.slane %v518, %v917
    %v919 = vlaneseq
    %v920 = vshrl.u32 %v919, 7
    %v921 = vsub.s32 2, %v920
    %v922 = vrot.slane %v518, %v921
    %v923 = vlaneseq
    %v924 = vshrl.u32 %v923, 7
    %v925 = vsub.s32 3, %v924
    %v926 = vrot.slane %v518, %v925
    %v927 = vlaneseq
    %v928 = vshrl.u32 %v927, 7
    %v929 = vsub.s32 4, %v928
    %v930 = vrot.slane %v518, %v929
    %v931 = vlaneseq
    %v932 = vshrl.u32 %v931, 7
    %v933 = vsub.s32 5, %v932
    %v934 = vrot.slane %v518, %v933
    %v935 = vlaneseq
    %v936 = vshrl.u32 %v935, 7
    %v937 = vsub.s32 6, %v936
    %v938 = vrot.slane %v518, %v937
    %v939 = vlaneseq
    %v940 = vshrl.u32 %v939, 7
    %v941 = vsub.s32 7, %v940
    %v942 = vrot.slane %v518, %v941
    %v943 = vlaneseq
    %v944 = vshrl.u32 %v943, 7
    %v945 = vsub.s32 0, %v944
    %v946 = vrot.slane %v526, %v945
    %v947 = vlaneseq
    %v948 = vshrl.u32 %v947, 7
    %v949 = vsub.s32 1, %v948
    %v950 = vrot.slane %v526, %v949
    %v951 = vlaneseq
    %v952 = vshrl.u32 %v951, 7
    %v953 = vsub.s32 2, %v952
    %v954 = vrot.slane %v526, %v953
    %v955 = vlaneseq
    %v956 = vshrl.u32 %v955, 7
    %v957 = vsub.s32 3, %v956
    %v958 = vrot.slane %v526, %v957
    %v959 = vlaneseq
    %v960 = vshrl.u32 %v959, 7
    %v961 = vsub.s32 4, %v960
    %v962 = vrot.slane %v526, %v961
    %v963 = vlaneseq
    %v964 = vshrl.u32 %v963, 7
    %v965 = vsub.s32 5, %v964
    %v966 = vrot.slane %v526, %v965
    %v967 = vlaneseq
    %v968 = vshrl.u32 %v967, 7
    %v969 = vsub.s32 6, %v968
    %v970 = vrot.slane %v526, %v969
    %v971 = vlaneseq
    %v972 = vshrl.u32 %v971, 7
    %v973 = vsub.s32 7, %v972
    %v974 = vrot.slane %v526, %v973
    %v975 = vlaneseq
    %v976 = vshrl.u32 %v975, 7
    %v977 = vsub.s32 0, %v976
    %v978 = vrot.slane %v534, %v977
    %v979 = vlaneseq
    %v980 = vshrl.u32 %v979, 7
    %v981 = vsub.s32 1, %v980
    %v982 = vrot.slane %v534, %v981
    %v983 = vlaneseq
    %v984 = vshrl.u32 %v983, 7
    %v985 = vsub.s32 2, %v984
    %v986 = vrot.slane %v534, %v985
    %v987 = vlaneseq
    %v988 = vshrl.u32 %v987, 7
    %v989 = vsub.s32 3, %v988
    %v990 = vrot.slane %v534, %v989
    %v991 = vlaneseq
    %v992 = vshrl.u32 %v991, 7
    %v993 = vsub.s32 4, %v992
    %v994 = vrot.slane %v534, %v993
    %v995 = vlaneseq
    %v996 = vshrl.u32 %v995, 7
    %v997 = vsub.s32 5, %v996
    %v998 = vrot.slane %v534, %v997
    %v999 = vlaneseq
    %v1000 = vshrl.u32 %v999, 7
    %v1001 = vsub.s32 6, %v1000
    %v1002 = vrot.slane %v534, %v1001
    %v1003 = vlaneseq
    %v1004 = vshrl.u32 %v1003, 7
    %v1005 = vsub.s32 7, %v1004
    %v1006 = vrot.slane %v534, %v1005
    %v1007 = vlaneseq
    %v1008 = vshrl.u32 %v1007, 7
    %v1009 = vsub.s32 0, %v1008
    %v1010 = vrot.slane %v542, %v1009
    %v1011 = vlaneseq
    %v1012 = vshrl.u32 %v1011, 7
    %v1013 = vsub.s32 1, %v1012
    %v1014 = vrot.slane %v542, %v1013
    %v1015 = vlaneseq
    %v1016 = vshrl.u32 %v1015, 7
    %v1017 = vsub.s32 2, %v1016
    %v1018 = vrot.slane %v542, %v1017
    %v1019 = vlaneseq
    %v1020 = vshrl.u32 %v1019, 7
    %v1021 = vsub.s32 3, %v1020
    %v1022 = vrot.slane %v542, %v1021
    %v1023 = vlaneseq
    %v1024 = vshrl.u32 %v1023, 7
    %v1025 = vsub.s32 4, %v1024
    %v1026 = vrot.slane %v542, %v1025
    %v1027 = vlaneseq
    %v1028 = vshrl.u32 %v1027, 7
    %v1029 = vsub.s32 5, %v1028
    %v1030 = vrot.slane %v542, %v1029
    %v1031 = vlaneseq
    %v1032 = vshrl.u32 %v1031, 7
    %v1033 = vsub.s32 6, %v1032
    %v1034 = vrot.slane %v542, %v1033
    %v1035 = vlaneseq
    %v1036 = vshrl.u32 %v1035, 7
    %v1037 = vsub.s32 7, %v1036
    %v1038 = vrot.slane %v542, %v1037
    %v1039 = vlaneseq
    %v1040 = vshrl.u32 %v1039, 7
    %v1041 = vsub.s32 0, %v1040
    %v1042 = vrot.slane %v550, %v1041
    %v1043 = vlaneseq
    %v1044 = vshrl.u32 %v1043, 7
    %v1045 = vsub.s32 1, %v1044
    %v1046 = vrot.slane %v550, %v1045
    %v1047 = vlaneseq
    %v1048 = vshrl.u32 %v1047, 7
    %v1049 = vsub.s32 2, %v1048
    %v1050 = vrot.slane %v550, %v1049
    %v1051 = vlaneseq
    %v1052 = vshrl.u32 %v1051, 7
    %v1053 = vsub.s32 3, %v1052
    %v1054 = vrot.slane %v550, %v1053
    %v1055 = vlaneseq
    %v1056 = vshrl.u32 %v1055, 7
    %v1057 = vsub.s32 4, %v1056
    %v1058 = vrot.slane %v550, %v1057
    %v1059 = vlaneseq
    %v1060 = vshrl.u32 %v1059, 7
    %v1061 = vsub.s32 5, %v1060
    %v1062 = vrot.slane %v550, %v1061
    %v1063 = vlaneseq
    %v1064 = vshrl.u32 %v1063, 7
    %v1065 = vsub.s32 6, %v1064
    %v1066 = vrot.slane %v550, %v1065
    %v1067 = vlaneseq
    %v1068 = vshrl.u32 %v1067, 7
    %v1069 = vsub.s32 7, %v1068
    %v1070 = vrot.slane %v550, %v1069
    %v1071 = vlaneseq
    %v1072 = vshrl.u32 %v1071, 7
    %v1073 = vsub.s32 0, %v1072
    %v1074 = vrot.slane %v558, %v1073
    %v1075 = vlaneseq
    %v1076 = vshrl.u32 %v1075, 7
    %v1077 = vsub.s32 1, %v1076
    %v1078 = vrot.slane %v558, %v1077
    %v1079 = vlaneseq
    %v1080 = vshrl.u32 %v1079, 7
    %v1081 = vsub.s32 2, %v1080
    %v1082 = vrot.slane %v558, %v1081
    %v1083 = vlaneseq
    %v1084 = vshrl.u32 %v1083, 7
    %v1085 = vsub.s32 3, %v1084
    %v1086 = vrot.slane %v558, %v1085
    %v1087 = vlaneseq
    %v1088 = vshrl.u32 %v1087, 7
    %v1089 = vsub.s32 4, %v1088
    %v1090 = vrot.slane %v558, %v1089
    %v1091 = vlaneseq
    %v1092 = vshrl.u32 %v1091, 7
    %v1093 = vsub.s32 5, %v1092
    %v1094 = vrot.slane %v558, %v1093
    %v1095 = vlaneseq
    %v1096 = vshrl.u32 %v1095, 7
    %v1097 = vsub.s32 6, %v1096
    %v1098 = vrot.slane %v558, %v1097
    %v1099 = vlaneseq
    %v1100 = vshrl.u32 %v1099, 7
    %v1101 = vsub.s32 7, %v1100
    %v1102 = vrot.slane %v558, %v1101
    %v1103 = vlaneseq
    %v1104 = vshrl.u32 %v1103, 7
    %v1105 = vsub.s32 0, %v1104
    %v1106 = vrot.slane %v566, %v1105
    %v1107 = vlaneseq
    %v1108 = vshrl.u32 %v1107, 7
    %v1109 = vsub.s32 1, %v1108
    %v1110 = vrot.slane %v566, %v1109
    %v1111 = vlaneseq
    %v1112 = vshrl.u32 %v1111, 7
    %v1113 = vsub.s32 2, %v1112
    %v1114 = vrot.slane %v566, %v1113
    %v1115 = vlaneseq
    %v1116 = vshrl.u32 %v1115, 7
    %v1117 = vsub.s32 3, %v1116
    %v1118 = vrot.slane %v566, %v1117
    %v1119 = vlaneseq
    %v1120 = vshrl.u32 %v1119, 7
    %v1121 = vsub.s32 4, %v1120
    %v1122 = vrot.slane %v566, %v1121
    %v1123 = vlaneseq
    %v1124 = vshrl.u32 %v1123, 7
    %v1125 = vsub.s32 5, %v1124
    %v1126 = vrot.slane %v566, %v1125
    %v1127 = vlaneseq
    %v1128 = vshrl.u32 %v1127, 7
    %v1129 = vsub.s32 6, %v1128
    %v1130 = vrot.slane %v566, %v1129
    %v1131 = vlaneseq
    %v1132 = vshrl.u32 %v1131, 7
    %v1133 = vsub.s32 7, %v1132
    %v1134 = vrot.slane %v566, %v1133
    %v1135 = vlaneseq
    %v1136 = vshrl.u32 %v1135, 7
    %v1137 = vsub.s32 0, %v1136
    %v1138 = vrot.slane %v574, %v1137
    %v1139 = vlaneseq
    %v1140 = vshrl.u32 %v1139, 7
    %v1141 = vsub.s32 1, %v1140
    %v1142 = vrot.slane %v574, %v1141
    %v1143 = vlaneseq
    %v1144 = vshrl.u32 %v1143, 7
    %v1145 = vsub.s32 2, %v1144
    %v1146 = vrot.slane %v574, %v1145
    %v1147 = vlaneseq
    %v1148 = vshrl.u32 %v1147, 7
    %v1149 = vsub.s32 3, %v1148
    %v1150 = vrot.slane %v574, %v1149
    %v1151 = vlaneseq
    %v1152 = vshrl.u32 %v1151, 7
    %v1153 = vsub.s32 4, %v1152
    %v1154 = vrot.slane %v574, %v1153
    %v1155 = vlaneseq
    %v1156 = vshrl.u32 %v1155, 7
    %v1157 = vsub.s32 5, %v1156
    %v1158 = vrot.slane %v574, %v1157
    %v1159 = vlaneseq
    %v1160 = vshrl.u32 %v1159, 7
    %v1161 = vsub.s32 6, %v1160
    %v1162 = vrot.slane %v574, %v1161
    %v1163 = vlaneseq
    %v1164 = vshrl.u32 %v1163, 7
    %v1165 = vsub.s32 7, %v1164
    %v1166 = vrot.slane %v574, %v1165
    %v1167 = vlaneseq
    %v1168 = vshrl.u32 %v1167, 7
    %v1169 = vsub.s32 0, %v1168
    %v1170 = vrot.slane %v582, %v1169
    %v1171 = vlaneseq
    %v1172 = vshrl.u32 %v1171, 7
    %v1173 = vsub.s32 1, %v1172
    %v1174 = vrot.slane %v582, %v1173
    %v1175 = vlaneseq
    %v1176 = vshrl.u32 %v1175, 7
    %v1177 = vsub.s32 2, %v1176
    %v1178 = vrot.slane %v582, %v1177
    %v1179 = vlaneseq
    %v1180 = vshrl.u32 %v1179, 7
    %v1181 = vsub.s32 3, %v1180
    %v1182 = vrot.slane %v582, %v1181
    %v1183 = vlaneseq
    %v1184 = vshrl.u32 %v1183, 7
    %v1185 = vsub.s32 4, %v1184
    %v1186 = vrot.slane %v582, %v1185
    %v1187 = vlaneseq
    %v1188 = vshrl.u32 %v1187, 7
    %v1189 = vsub.s32 5, %v1188
    %v1190 = vrot.slane %v582, %v1189
    %v1191 = vlaneseq
    %v1192 = vshrl.u32 %v1191, 7
    %v1193 = vsub.s32 6, %v1192
    %v1194 = vrot.slane %v582, %v1193
    %v1195 = vlaneseq
    %v1196 = vshrl.u32 %v1195, 7
    %v1197 = vsub.s32 7, %v1196
    %v1198 = vrot.slane %v582, %v1197
    %v1199 = vlaneseq
    %v1200 = vshrl.u32 %v1199, 7
    %v1201 = vsub.s32 0, %v1200
    %v1202 = vrot.slane %v590, %v1201
    %v1203 = vlaneseq
    %v1204 = vshrl.u32 %v1203, 7
    %v1205 = vsub.s32 1, %v1204
    %v1206 = vrot.slane %v590, %v1205
    %v1207 = vlaneseq
    %v1208 = vshrl.u32 %v1207, 7
    %v1209 = vsub.s32 2, %v1208
    %v1210 = vrot.slane %v590, %v1209
    %v1211 = vlaneseq
    %v1212 = vshrl.u32 %v1211, 7
    %v1213 = vsub.s32 3, %v1212
    %v1214 = vrot.slane %v590, %v1213
    %v1215 = vlaneseq
    %v1216 = vshrl.u32 %v1215, 7
    %v1217 = vsub.s32 4, %v1216
    %v1218 = vrot.slane %v590, %v1217
    %v1219 = vlaneseq
    %v1220 = vshrl.u32 %v1219, 7
    %v1221 = vsub.s32 5, %v1220
    %v1222 = vrot.slane %v590, %v1221
    %v1223 = vlaneseq
    %v1224 = vshrl.u32 %v1223, 7
    %v1225 = vsub.s32 6, %v1224
    %v1226 = vrot.slane %v590, %v1225
    %v1227 = vlaneseq
    %v1228 = vshrl.u32 %v1227, 7
    %v1229 = vsub.s32 7, %v1228
    %v1230 = vrot.slane %v590, %v1229
    %v1231 = vlaneseq
    %v1232 = vshrl.u32 %v1231, 7
    %v1233 = vsub.s32 0, %v1232
    %v1234 = vrot.slane %v598, %v1233
    %v1235 = vlaneseq
    %v1236 = vshrl.u32 %v1235, 7
    %v1237 = vsub.s32 1, %v1236
    %v1238 = vrot.slane %v598, %v1237
    %v1239 = vlaneseq
    %v1240 = vshrl.u32 %v1239, 7
    %v1241 = vsub.s32 2, %v1240
    %v1242 = vrot.slane %v598, %v1241
    %v1243 = vlaneseq
    %v1244 = vshrl.u32 %v1243, 7
    %v1245 = vsub.s32 3, %v1244
    %v1246 = vrot.slane %v598, %v1245
    %v1247 = vlaneseq
    %v1248 = vshrl.u32 %v1247, 7
    %v1249 = vsub.s32 4, %v1248
    %v1250 = vrot.slane %v598, %v1249
    %v1251 = vlaneseq
    %v1252 = vshrl.u32 %v1251, 7
    %v1253 = vsub.s32 5, %v1252
    %v1254 = vrot.slane %v598, %v1253
    %v1255 = vlaneseq
    %v1256 = vshrl.u32 %v1255, 7
    %v1257 = vsub.s32 6, %v1256
    %v1258 = vrot.slane %v598, %v1257
    %v1259 = vlaneseq
    %v1260 = vshrl.u32 %v1259, 7
    %v1261 = vsub.s32 7, %v1260
    %v1262 = vrot.slane %v598, %v1261
    %v1263 = vlaneseq
    %v1264 = vshrl.u32 %v1263, 7
    %v1265 = vsub.s32 0, %v1264
    %v1266 = vrot.slane %v606, %v1265
    %v1267 = vlaneseq
    %v1268 = vshrl.u32 %v1267, 7
    %v1269 = vsub.s32 1, %v1268
    %v1270 = vrot.slane %v606, %v1269
    %v1271 = vlaneseq
    %v1272 = vshrl.u32 %v1271, 7
    %v1273 = vsub.s32 2, %v1272
    %v1274 = vrot.slane %v606, %v1273
    %v1275 = vlaneseq
    %v1276 = vshrl.u32 %v1275, 7
    %v1277 = vsub.s32 3, %v1276
    %v1278 = vrot.slane %v606, %v1277
    %v1279 = vlaneseq
    %v1280 = vshrl.u32 %v1279, 7
    %v1281 = vsub.s32 4, %v1280
    %v1282 = vrot.slane %v606, %v1281
    %v1283 = vlaneseq
    %v1284 = vshrl.u32 %v1283, 7
    %v1285 = vsub.s32 5, %v1284
    %v1286 = vrot.slane %v606, %v1285
    %v1287 = vlaneseq
    %v1288 = vshrl.u32 %v1287, 7
    %v1289 = vsub.s32 6, %v1288
    %v1290 = vrot.slane %v606, %v1289
    %v1291 = vlaneseq
    %v1292 = vshrl.u32 %v1291, 7
    %v1293 = vsub.s32 7, %v1292
    %v1294 = vrot.slane %v606, %v1293
    %v1295 = vlaneseq
    %v1296 = vshrl.u32 %v1295, 7
    %v1297 = vsub.s32 0, %v1296
    %v1298 = vrot.slane %v614, %v1297
    %v1299 = vlaneseq
    %v1300 = vshrl.u32 %v1299, 7
    %v1301 = vsub.s32 1, %v1300
    %v1302 = vrot.slane %v614, %v1301
    %v1303 = vlaneseq
    %v1304 = vshrl.u32 %v1303, 7
    %v1305 = vsub.s32 2, %v1304
    %v1306 = vrot.slane %v614, %v1305
    %v1307 = vlaneseq
    %v1308 = vshrl.u32 %v1307, 7
    %v1309 = vsub.s32 3, %v1308
    %v1310 = vrot.slane %v614, %v1309
    %v1311 = vlaneseq
    %v1312 = vshrl.u32 %v1311, 7
    %v1313 = vsub.s32 4, %v1312
    %v1314 = vrot.slane %v614, %v1313
    %v1315 = vlaneseq
    %v1316 = vshrl.u32 %v1315, 7
    %v1317 = vsub.s32 5, %v1316
    %v1318 = vrot.slane %v614, %v1317
    %v1319 = vlaneseq
    %v1320 = vshrl.u32 %v1319, 7
    %v1321 = vsub.s32 6, %v1320
    %v1322 = vrot.slane %v614, %v1321
    %v1323 = vlaneseq
    %v1324 = vshrl.u32 %v1323, 7
    %v1325 = vsub.s32 7, %v1324
    %v1326 = vrot.slane %v614, %v1325
    %v1327 = vlaneseq
    %v1328 = vshrl.u32 %v1327, 7
    %v1329 = vsub.s32 0, %v1328
    %v1330 = vrot.slane %v622, %v1329
    %v1331 = vlaneseq
    %v1332 = vshrl.u32 %v1331, 7
    %v1333 = vsub.s32 1, %v1332
    %v1334 = vrot.slane %v622, %v1333
    %v1335 = vlaneseq
    %v1336 = vshrl.u32 %v1335, 7
    %v1337 = vsub.s32 2, %v1336
    %v1338 = vrot.slane %v622, %v1337
    %v1339 = vlaneseq
    %v1340 = vshrl.u32 %v1339, 7
    %v1341 = vsub.s32 3, %v1340
    %v1342 = vrot.slane %v622, %v1341
    %v1343 = vlaneseq
    %v1344 = vshrl.u32 %v1343, 7
    %v1345 = vsub.s32 4, %v1344
    %v1346 = vrot.slane %v622, %v1345
    %v1347 = vlaneseq
    %v1348 = vshrl.u32 %v1347, 7
    %v1349 = vsub.s32 5, %v1348
    %v1350 = vrot.slane %v622, %v1349
    %v1351 = vlaneseq
    %v1352 = vshrl.u32 %v1351, 7
    %v1353 = vsub.s32 6, %v1352
    %v1354 = vrot.slane %v622, %v1353
    %v1355 = vlaneseq
    %v1356 = vshrl.u32 %v1355, 7
    %v1357 = vsub.s32 7, %v1356
    %v1358 = vrot.slane %v622, %v1357
    %v1359 = vlaneseq
    %v1360 = vshrl.u32 %v1359, 7
    %v1361 = vsub.s32 0, %v1360
    %v1362 = vrot.slane %v630, %v1361
    %v1363 = vlaneseq
    %v1364 = vshrl.u32 %v1363, 7
    %v1365 = vsub.s32 1, %v1364
    %v1366 = vrot.slane %v630, %v1365
    %v1367 = vlaneseq
    %v1368 = vshrl.u32 %v1367, 7
    %v1369 = vsub.s32 2, %v1368
    %v1370 = vrot.slane %v630, %v1369
    %v1371 = vlaneseq
    %v1372 = vshrl.u32 %v1371, 7
    %v1373 = vsub.s32 3, %v1372
    %v1374 = vrot.slane %v630, %v1373
    %v1375 = vlaneseq
    %v1376 = vshrl.u32 %v1375, 7
    %v1377 = vsub.s32 4, %v1376
    %v1378 = vrot.slane %v630, %v1377
    %v1379 = vlaneseq
    %v1380 = vshrl.u32 %v1379, 7
    %v1381 = vsub.s32 5, %v1380
    %v1382 = vrot.slane %v630, %v1381
    %v1383 = vlaneseq
    %v1384 = vshrl.u32 %v1383, 7
    %v1385 = vsub.s32 6, %v1384
    %v1386 = vrot.slane %v630, %v1385
    %v1387 = vlaneseq
    %v1388 = vshrl.u32 %v1387, 7
    %v1389 = vsub.s32 7, %v1388
    %v1390 = vrot.slane %v630, %v1389
    %v1391 = vlaneseq
    %v1392 = vshrl.u32 %v1391, 7
    %v1393 = vsub.s32 0, %v1392
    %v1394 = vrot.slane %v638, %v1393
    %v1395 = vlaneseq
    %v1396 = vshrl.u32 %v1395, 7
    %v1397 = vsub.s32 1, %v1396
    %v1398 = vrot.slane %v638, %v1397
    %v1399 = vlaneseq
    %v1400 = vshrl.u32 %v1399, 7
    %v1401 = vsub.s32 2, %v1400
    %v1402 = vrot.slane %v638, %v1401
    %v1403 = vlaneseq
    %v1404 = vshrl.u32 %v1403, 7
    %v1405 = vsub.s32 3, %v1404
    %v1406 = vrot.slane %v638, %v1405
    %v1407 = vlaneseq
    %v1408 = vshrl.u32 %v1407, 7
    %v1409 = vsub.s32 4, %v1408
    %v1410 = vrot.slane %v638, %v1409
    %v1411 = vlaneseq
    %v1412 = vshrl.u32 %v1411, 7
    %v1413 = vsub.s32 5, %v1412
    %v1414 = vrot.slane %v638, %v1413
    %v1415 = vlaneseq
    %v1416 = vshrl.u32 %v1415, 7
    %v1417 = vsub.s32 6, %v1416
    %v1418 = vrot.slane %v638, %v1417
    %v1419 = vlaneseq
    %v1420 = vshrl.u32 %v1419, 7
    %v1421 = vsub.s32 7, %v1420
    %v1422 = vrot.slane %v638, %v1421
    %v1423 = vlaneseq
    %v1424 = vshrl.u32 %v1423, 7
    %v1425 = vsub.s32 0, %v1424
    %v1426 = vrot.slane %v646, %v1425
    %v1427 = vlaneseq
    %v1428 = vshrl.u32 %v1427, 7
    %v1429 = vsub.s32 1, %v1428
    %v1430 = vrot.slane %v646, %v1429
    %v1431 = vlaneseq
    %v1432 = vshrl.u32 %v1431, 7
    %v1433 = vsub.s32 2, %v1432
    %v1434 = vrot.slane %v646, %v1433
    %v1435 = vlaneseq
    %v1436 = vshrl.u32 %v1435, 7
    %v1437 = vsub.s32 3, %v1436
    %v1438 = vrot.slane %v646, %v1437
    %v1439 = vlaneseq
    %v1440 = vshrl.u32 %v1439, 7
    %v1441 = vsub.s32 4, %v1440
    %v1442 = vrot.slane %v646, %v1441
    %v1443 = vlaneseq
    %v1444 = vshrl.u32 %v1443, 7
    %v1445 = vsub.s32 5, %v1444
    %v1446 = vrot.slane %v646, %v1445
    %v1447 = vlaneseq
    %v1448 = vshrl.u32 %v1447, 7
    %v1449 = vsub.s32 6, %v1448
    %v1450 = vrot.slane %v646, %v1449
    %v1451 = vlaneseq
    %v1452 = vshrl.u32 %v1451, 7
    %v1453 = vsub.s32 7, %v1452
    %v1454 = vrot.slane %v646, %v1453
    %v1455 = vlaneseq
    %v1456 = vshrl.u32 %v1455, 7
    %v1457 = vsub.s32 0, %v1456
    %v1458 = vrot.slane %v654, %v1457
    %v1459 = vlaneseq
    %v1460 = vshrl.u32 %v1459, 7
    %v1461 = vsub.s32 1, %v1460
    %v1462 = vrot.slane %v654, %v1461
    %v1463 = vlaneseq
    %v1464 = vshrl.u32 %v1463, 7
    %v1465 = vsub.s32 2, %v1464
    %v1466 = vrot.slane %v654, %v1465
    %v1467 = vlaneseq
    %v1468 = vshrl.u32 %v1467, 7
    %v1469 = vsub.s32 3, %v1468
    %v1470 = vrot.slane %v654, %v1469
    %v1471 = vlaneseq
    %v1472 = vshrl.u32 %v1471, 7
    %v1473 = vsub.s32 4, %v1472
    %v1474 = vrot.slane %v654, %v1473
    %v1475 = vlaneseq
    %v1476 = vshrl.u32 %v1475, 7
    %v1477 = vsub.s32 5, %v1476
    %v1478 = vrot.slane %v654, %v1477
    %v1479 = vlaneseq
    %v1480 = vshrl.u32 %v1479, 7
    %v1481 = vsub.s32 6, %v1480
    %v1482 = vrot.slane %v654, %v1481
    %v1483 = vlaneseq
    %v1484 = vshrl.u32 %v1483, 7
    %v1485 = vsub.s32 7, %v1484
    %v1486 = vrot.slane %v654, %v1485
    %v1487 = vlaneseq
    %v1488 = vshrl.u32 %v1487, 7
    %v1489 = vsub.s32 0, %v1488
    %v1490 = vrot.slane %v662, %v1489
    %v1491 = vlaneseq
    %v1492 = vshrl.u32 %v1491, 7
    %v1493 = vsub.s32 1, %v1492
    %v1494 = vrot.slane %v662, %v1493
    %v1495 = vlaneseq
    %v1496 = vshrl.u32 %v1495, 7
    %v1497 = vsub.s32 2, %v1496
    %v1498 = vrot.slane %v662, %v1497
    %v1499 = vlaneseq
    %v1500 = vshrl.u32 %v1499, 7
    %v1501 = vsub.s32 3, %v1500
    %v1502 = vrot.slane %v662, %v1501
    %v1503 = vlaneseq
    %v1504 = vshrl.u32 %v1503, 7
    %v1505 = vsub.s32 4, %v1504
    %v1506 = vrot.slane %v662, %v1505
    %v1507 = vlaneseq
    %v1508 = vshrl.u32 %v1507, 7
    %v1509 = vsub.s32 5, %v1508
    %v1510 = vrot.slane %v662, %v1509
    %v1511 = vlaneseq
    %v1512 = vshrl.u32 %v1511, 7
    %v1513 = vsub.s32 6, %v1512
    %v1514 = vrot.slane %v662, %v1513
    %v1515 = vlaneseq
    %v1516 = vshrl.u32 %v1515, 7
    %v1517 = vsub.s32 7, %v1516
    %v1518 = vrot.slane %v662, %v1517
    %v1519 = vlaneseq
    %v1520 = vshrl.u32 %v1519, 7
    %v1521 = vsub.s32 0, %v1520
    %v1522 = vrot.slane %v670, %v1521
    %v1523 = vlaneseq
    %v1524 = vshrl.u32 %v1523, 7
    %v1525 = vsub.s32 1, %v1524
    %v1526 = vrot.slane %v670, %v1525
    %v1527 = vlaneseq
    %v1528 = vshrl.u32 %v1527, 7
    %v1529 = vsub.s32 2, %v1528
    %v1530 = vrot.slane %v670, %v1529
    %v1531 = vlaneseq
    %v1532 = vshrl.u32 %v1531, 7
    %v1533 = vsub.s32 3, %v1532
    %v1534 = vrot.slane %v670, %v1533
    %v1535 = vlaneseq
    %v1536 = vshrl.u32 %v1535, 7
    %v1537 = vsub.s32 4, %v1536
    %v1538 = vrot.slane %v670, %v1537
    %v1539 = vlaneseq
    %v1540 = vshrl.u32 %v1539, 7
    %v1541 = vsub.s32 5, %v1540
    %v1542 = vrot.slane %v670, %v1541
    %v1543 = vlaneseq
    %v1544 = vshrl.u32 %v1543, 7
    %v1545 = vsub.s32 6, %v1544
    %v1546 = vrot.slane %v670, %v1545
    %v1547 = vlaneseq
    %v1548 = vshrl.u32 %v1547, 7
    %v1549 = vsub.s32 7, %v1548
    %v1550 = vrot.slane %v670, %v1549
    %v1551 = vlaneseq
    %v1552 = vshrl.u32 %v1551, 7
    %v1553 = vsub.s32 0, %v1552
    %v1554 = vrot.slane %v678, %v1553
    %v1555 = vlaneseq
    %v1556 = vshrl.u32 %v1555, 7
    %v1557 = vsub.s32 1, %v1556
    %v1558 = vrot.slane %v678, %v1557
    %v1559 = vlaneseq
    %v1560 = vshrl.u32 %v1559, 7
    %v1561 = vsub.s32 2, %v1560
    %v1562 = vrot.slane %v678, %v1561
    %v1563 = vlaneseq
    %v1564 = vshrl.u32 %v1563, 7
    %v1565 = vsub.s32 3, %v1564
    %v1566 = vrot.slane %v678, %v1565
    %v1567 = vlaneseq
    %v1568 = vshrl.u32 %v1567, 7
    %v1569 = vsub.s32 4, %v1568
    %v1570 = vrot.slane %v678, %v1569
    %v1571 = vlaneseq
    %v1572 = vshrl.u32 %v1571, 7
    %v1573 = vsub.s32 5, %v1572
    %v1574 = vrot.slane %v678, %v1573
    %v1575 = vlaneseq
    %v1576 = vshrl.u32 %v1575, 7
    %v1577 = vsub.s32 6, %v1576
    %v1578 = vrot.slane %v678, %v1577
    %v1579 = vlaneseq
    %v1580 = vshrl.u32 %v1579, 7
    %v1581 = vsub.s32 7, %v1580
    %v1582 = vrot.slane %v678, %v1581
    %v1583 = vlaneseq
    %v1584 = vshrl.u32 %v1583, 7
    %v1585 = vsub.s32 0, %v1584
    %v1586 = vrot.slane %v686, %v1585
    %v1587 = vlaneseq
    %v1588 = vshrl.u32 %v1587, 7
    %v1589 = vsub.s32 1, %v1588
    %v1590 = vrot.slane %v686, %v1589
    %v1591 = vlaneseq
    %v1592 = vshrl.u32 %v1591, 7
    %v1593 = vsub.s32 2, %v1592
    %v1594 = vrot.slane %v686, %v1593
    %v1595 = vlaneseq
    %v1596 = vshrl.u32 %v1595, 7
    %v1597 = vsub.s32 3, %v1596
    %v1598 = vrot.slane %v686, %v1597
    %v1599 = vlaneseq
    %v1600 = vshrl.u32 %v1599, 7
    %v1601 = vsub.s32 4, %v1600
    %v1602 = vrot.slane %v686, %v1601
    %v1603 = vlaneseq
    %v1604 = vshrl.u32 %v1603, 7
    %v1605 = vsub.s32 5, %v1604
    %v1606 = vrot.slane %v686, %v1605
    %v1607 = vlaneseq
    %v1608 = vshrl.u32 %v1607, 7
    %v1609 = vsub.s32 6, %v1608
    %v1610 = vrot.slane %v686, %v1609
    %v1611 = vlaneseq
    %v1612 = vshrl.u32 %v1611, 7
    %v1613 = vsub.s32 7, %v1612
    %v1614 = vrot.slane %v686, %v1613
    %v1615 = vlaneseq
    %v1616 = vshrl.u32 %v1615, 7
    %v1617 = vsub.s32 0, %v1616
    %v1618 = vrot.slane %v694, %v1617
    %v1619 = vlaneseq
    %v1620 = vshrl.u32 %v1619, 7
    %v1621 = vsub.s32 1, %v1620
    %v1622 = vrot.slane %v694, %v1621
    %v1623 = vlaneseq
    %v1624 = vshrl.u32 %v1623, 7
    %v1625 = vsub.s32 2, %v1624
    %v1626 = vrot.slane %v694, %v1625
    %v1627 = vlaneseq
    %v1628 = vshrl.u32 %v1627, 7
    %v1629 = vsub.s32 3, %v1628
    %v1630 = vrot.slane %v694, %v1629
    %v1631 = vlaneseq
    %v1632 = vshrl.u32 %v1631, 7
    %v1633 = vsub.s32 4, %v1632
    %v1634 = vrot.slane %v694, %v1633
    %v1635 = vlaneseq
    %v1636 = vshrl.u32 %v1635, 7
    %v1637 = vsub.s32 5, %v1636
    %v1638 = vrot.slane %v694, %v1637
    %v1639 = vlaneseq
    %v1640 = vshrl.u32 %v1639, 7
    %v1641 = vsub.s32 6, %v1640
    %v1642 = vrot.slane %v694, %v1641
    %v1643 = vlaneseq
    %v1644 = vshrl.u32 %v1643, 7
    %v1645 = vsub.s32 7, %v1644
    %v1646 = vrot.slane %v694, %v1645
    %v1647 = vlaneseq
    %v1648 = vshrl.u32 %v1647, 7
    %v1649 = vsub.s32 0, %v1648
    %v1650 = vrot.slane %v702, %v1649
    %v1651 = vlaneseq
    %v1652 = vshrl.u32 %v1651, 7
    %v1653 = vsub.s32 1, %v1652
    %v1654 = vrot.slane %v702, %v1653
    %v1655 = vlaneseq
    %v1656 = vshrl.u32 %v1655, 7
    %v1657 = vsub.s32 2, %v1656
    %v1658 = vrot.slane %v702, %v1657
    %v1659 = vlaneseq
    %v1660 = vshrl.u32 %v1659, 7
    %v1661 = vsub.s32 3, %v1660
    %v1662 = vrot.slane %v702, %v1661
    %v1663 = vlaneseq
    %v1664 = vshrl.u32 %v1663, 7
    %v1665 = vsub.s32 4, %v1664
    %v1666 = vrot.slane %v702, %v1665
    %v1667 = vlaneseq
    %v1668 = vshrl.u32 %v1667, 7
    %v1669 = vsub.s32 5, %v1668
    %v1670 = vrot.slane %v702, %v1669
    %v1671 = vlaneseq
    %v1672 = vshrl.u32 %v1671, 7
    %v1673 = vsub.s32 6, %v1672
    %v1674 = vrot.slane %v702, %v1673
    %v1675 = vlaneseq
    %v1676 = vshrl.u32 %v1675, 7
    %v1677 = vsub.s32 7, %v1676
    %v1678 = vrot.slane %v702, %v1677
    %v1679 = vlaneseq
    %v1680 = vshrl.u32 %v1679, 7
    %v1681 = vsub.s32 0, %v1680
    %v1682 = vrot.slane %v710, %v1681
    %v1683 = vlaneseq
    %v1684 = vshrl.u32 %v1683, 7
    %v1685 = vsub.s32 1, %v1684
    %v1686 = vrot.slane %v710, %v1685
    %v1687 = vlaneseq
    %v1688 = vshrl.u32 %v1687, 7
    %v1689 = vsub.s32 2, %v1688
    %v1690 = vrot.slane %v710, %v1689
    %v1691 = vlaneseq
    %v1692 = vshrl.u32 %v1691, 7
    %v1693 = vsub.s32 3, %v1692
    %v1694 = vrot.slane %v710, %v1693
    %v1695 = vlaneseq
    %v1696 = vshrl.u32 %v1695, 7
    %v1697 = vsub.s32 4, %v1696
    %v1698 = vrot.slane %v710, %v1697
    %v1699 = vlaneseq
    %v1700 = vshrl.u32 %v1699, 7
    %v1701 = vsub.s32 5, %v1700
    %v1702 = vrot.slane %v710, %v1701
    %v1703 = vlaneseq
    %v1704 = vshrl.u32 %v1703, 7
    %v1705 = vsub.s32 6, %v1704
    %v1706 = vrot.slane %v710, %v1705
    %v1707 = vlaneseq
    %v1708 = vshrl.u32 %v1707, 7
    %v1709 = vsub.s32 7, %v1708
    %v1710 = vrot.slane %v710, %v1709
    %v1711 = vlaneseq
    %v1712 = vshrl.u32 %v1711, 7
    %v1713 = vsub.s32 0, %v1712
    %v1714 = vrot.slane %v718, %v1713
    %v1715 = vlaneseq
    %v1716 = vshrl.u32 %v1715, 7
    %v1717 = vsub.s32 1, %v1716
    %v1718 = vrot.slane %v718, %v1717
    %v1719 = vlaneseq
    %v1720 = vshrl.u32 %v1719, 7
    %v1721 = vsub.s32 2, %v1720
    %v1722 = vrot.slane %v718, %v1721
    %v1723 = vlaneseq
    %v1724 = vshrl.u32 %v1723, 7
    %v1725 = vsub.s32 3, %v1724
    %v1726 = vrot.slane %v718, %v1725
    %v1727 = vlaneseq
    %v1728 = vshrl.u32 %v1727, 7
    %v1729 = vsub.s32 4, %v1728
    %v1730 = vrot.slane %v718, %v1729
    %v1731 = vlaneseq
    %v1732 = vshrl.u32 %v1731, 7
    %v1733 = vsub.s32 5, %v1732
    %v1734 = vrot.slane %v718, %v1733
    %v1735 = vlaneseq
    %v1736 = vshrl.u32 %v1735, 7
    %v1737 = vsub.s32 6, %v1736
    %v1738 = vrot.slane %v718, %v1737
    %v1739 = vlaneseq
    %v1740 = vshrl.u32 %v1739, 7
    %v1741 = vsub.s32 7, %v1740
    %v1742 = vrot.slane %v718, %v1741
    %v1743 = vcombine.low %v722, %v726
    %v1744 = vcombine.low %v730, %v734
    %v1745 = vcombine.low %v738, %v742
    %v1746 = vcombine.low %v746, %v750
    %v1748 = vunpack.c.l.s4 1966171168
    %v1749 = vunpack.c.0.s8 %v1748
    %v1750 = vlaneseq
    %v1751 = vshrl.u32 %v1750, 7
    %v1752 = vsub.s32 %v1749, %v1751
    %v1753 = vrot.slane %v1743, %v1752
    %v1755 = vunpack.c.l.s4 1966171168
    %v1756 = vunpack.c.0.s8 %v1755
    %v1757 = vlaneseq
    %v1758 = vshrl.u32 %v1757, 7
    %v1759 = vsub.s32 %v1756, %v1758
    %v1760 = vrot.slane %v1744, %v1759
    %v1762 = vunpack.c.l.s4 1966171168
    %v1763 = vunpack.c.0.s8 %v1762
    %v1764 = vlaneseq
    %v1765 = vshrl.u32 %v1764, 7
    %v1766 = vsub.s32 %v1763, %v1765
    %v1767 = vrot.slane %v1745, %v1766
    %v1769 = vunpack.c.l.s4 1966171168
    %v1770 = vunpack.c.0.s8 %v1769
    %v1771 = vlaneseq
    %v1772 = vshrl.u32 %v1771, 7
    %v1773 = vsub.s32 %v1770, %v1772
    %v1774 = vrot.slane %v1746, %v1773
    %v1775 = vcombine.low %v1753, %v1760
    %v1776 = vcombine.low %v1767, %v1774
    %v1778 = vunpack.c.l.s4 1966171168
    %v1779 = vunpack.c.0.s8 %v1778
    %v1780 = vlaneseq
    %v1781 = vshrl.u32 %v1780, 7
    %v1782 = vsub.s32 %v1779, %v1781
    %v1783 = vrot.slane %v1775, %v1782
    %v1785 = vunpack.c.l.s4 1966171168
    %v1786 = vunpack.c.0.s8 %v1785
    %v1787 = vlaneseq
    %v1788 = vshrl.u32 %v1787, 7
    %v1789 = vsub.s32 %v1786, %v1788
    %v1790 = vrot.slane %v1776, %v1789
    %v1791 = vcombine.low %v1783, %v1790
    %v1792 = vcombine.low %v754, %v758
    %v1793 = vcombine.low %v762, %v766
    %v1794 = vcombine.low %v770, %v774
    %v1795 = vcombine.low %v778, %v782
    %v1797 = vunpack.c.l.s4 1966171168
    %v1798 = vunpack.c.0.s8 %v1797
    %v1799 = vlaneseq
    %v1800 = vshrl.u32 %v1799, 7
    %v1801 = vsub.s32 %v1798, %v1800
    %v1802 = vrot.slane %v1792, %v1801
    %v1804 = vunpack.c.l.s4 1966171168
    %v1805 = vunpack.c.0.s8 %v1804
    %v1806 = vlaneseq
    %v1807 = vshrl.u32 %v1806, 7
    %v1808 = vsub.s32 %v1805, %v1807
    %v1809 = vrot.slane %v1793, %v1808
    %v1811 = vunpack.c.l.s4 1966171168
    %v1812 = vunpack.c.0.s8 %v1811
    %v1813 = vlaneseq
    %v1814 = vshrl.u32 %v1813, 7
    %v1815 = vsub.s32 %v1812, %v1814
    %v1816 = vrot.slane %v1794, %v1815
    %v1818 = vunpack.c.l.s4 1966171168
    %v1819 = vunpack.c.0.s8 %v1818
    %v1820 = vlaneseq
    %v1821 = vshrl.u32 %v1820, 7
    %v1822 = vsub.s32 %v1819, %v1821
    %v1823 = vrot.slane %v1795, %v1822
    %v1824 = vcombine.low %v1802, %v1809
    %v1825 = vcombine.low %v1816, %v1823
    %v1827 = vunpack.c.l.s4 1966171168
    %v1828 = vunpack.c.0.s8 %v1827
    %v1829 = vlaneseq
    %v1830 = vshrl.u32 %v1829, 7
    %v1831 = vsub.s32 %v1828, %v1830
    %v1832 = vrot.slane %v1824, %v1831
    %v1834 = vunpack.c.l.s4 1966171168
    %v1835 = vunpack.c.0.s8 %v1834
    %v1836 = vlaneseq
    %v1837 = vshrl.u32 %v1836, 7
    %v1838 = vsub.s32 %v1835, %v1837
    %v1839 = vrot.slane %v1825, %v1838
    %v1840 = vcombine.low %v1832, %v1839
    %v1841 = vcombine.low %v786, %v790
    %v1842 = vcombine.low %v794, %v798
    %v1843 = vcombine.low %v802, %v806
    %v1844 = vcombine.low %v810, %v814
    %v1846 = vunpack.c.l.s4 1966171168
    %v1847 = vunpack.c.0.s8 %v1846
    %v1848 = vlaneseq
    %v1849 = vshrl.u32 %v1848, 7
    %v1850 = vsub.s32 %v1847, %v1849
    %v1851 = vrot.slane %v1841, %v1850
    %v1853 = vunpack.c.l.s4 1966171168
    %v1854 = vunpack.c.0.s8 %v1853
    %v1855 = vlaneseq
    %v1856 = vshrl.u32 %v1855, 7
    %v1857 = vsub.s32 %v1854, %v1856
    %v1858 = vrot.slane %v1842, %v1857
    %v1860 = vunpack.c.l.s4 1966171168
    %v1861 = vunpack.c.0.s8 %v1860
    %v1862 = vlaneseq
    %v1863 = vshrl.u32 %v1862, 7
    %v1864 = vsub.s32 %v1861, %v1863
    %v1865 = vrot.slane %v1843, %v1864
    %v1867 = vunpack.c.l.s4 1966171168
    %v1868 = vunpack.c.0.s8 %v1867
    %v1869 = vlaneseq
    %v1870 = vshrl.u32 %v1869, 7
    %v1871 = vsub.s32 %v1868, %v1870
    %v1872 = vrot.slane %v1844, %v1871
    %v1873 = vcombine.low %v1851, %v1858
    %v1874 = vcombine.low %v1865, %v1872
    %v1876 = vunpack.c.l.s4 1966171168
    %v1877 = vunpack.c.0.s8 %v1876
    %v1878 = vlaneseq
    %v1879 = vshrl.u32 %v1878, 7
    %v1880 = vsub.s32 %v1877, %v1879
    %v1881 = vrot.slane %v1873, %v1880
    %v1883 = vunpack.c.l.s4 1966171168
    %v1884 = vunpack.c.0.s8 %v1883
    %v1885 = vlaneseq
    %v1886 = vshrl.u32 %v1885, 7
    %v1887 = vsub.s32 %v1884, %v1886
    %v1888 = vrot.slane %v1874, %v1887
    %v1889 = vcombine.low %v1881, %v1888
    %v1890 = vcombine.low %v818, %v822
    %v1891 = vcombine.low %v826, %v830
    %v1892 = vcombine.low %v834, %v838
    %v1893 = vcombine.low %v842, %v846
    %v1895 = vunpack.c.l.s4 1966171168
    %v1896 = vunpack.c.0.s8 %v1895
    %v1897 = vlaneseq
    %v1898 = vshrl.u32 %v1897, 7
    %v1899 = vsub.s32 %v1896, %v1898
    %v1900 = vrot.slane %v1890, %v1899
    %v1902 = vunpack.c.l.s4 1966171168
    %v1903 = vunpack.c.0.s8 %v1902
    %v1904 = vlaneseq
    %v1905 = vshrl.u32 %v1904, 7
    %v1906 = vsub.s32 %v1903, %v1905
    %v1907 = vrot.slane %v1891, %v1906
    %v1909 = vunpack.c.l.s4 1966171168
    %v1910 = vunpack.c.0.s8 %v1909
    %v1911 = vlaneseq
    %v1912 = vshrl.u32 %v1911, 7
    %v1913 = vsub.s32 %v1910, %v1912
    %v1914 = vrot.slane %v1892, %v1913
    %v1916 = vunpack.c.l.s4 1966171168
    %v1917 = vunpack.c.0.s8 %v1916
    %v1918 = vlaneseq
    %v1919 = vshrl.u32 %v1918, 7
    %v1920 = vsub.s32 %v1917, %v1919
    %v1921 = vrot.slane %v1893, %v1920
    %v1922 = vcombine.low %v1900, %v1907
    %v1923 = vcombine.low %v1914, %v1921
    %v1925 = vunpack.c.l.s4 1966171168
    %v1926 = vunpack.c.0.s8 %v1925
    %v1927 = vlaneseq
    %v1928 = vshrl.u32 %v1927, 7
    %v1929 = vsub.s32 %v1926, %v1928
    %v1930 = vrot.slane %v1922, %v1929
    %v1932 = vunpack.c.l.s4 1966171168
    %v1933 = vunpack.c.0.s8 %v1932
    %v1934 = vlaneseq
    %v1935 = vshrl.u32 %v1934, 7
    %v1936 = vsub.s32 %v1933, %v1935
    %v1937 = vrot.slane %v1923, %v1936
    %v1938 = vcombine.low %v1930, %v1937
    %v1939 = vcombine.low %v850, %v854
    %v1940 = vcombine.low %v858, %v862
    %v1941 = vcombine.low %v866, %v870
    %v1942 = vcombine.low %v874, %v878
    %v1944 = vunpack.c.l.s4 1966171168
    %v1945 = vunpack.c.0.s8 %v1944
    %v1946 = vlaneseq
    %v1947 = vshrl.u32 %v1946, 7
    %v1948 = vsub.s32 %v1945, %v1947
    %v1949 = vrot.slane %v1939, %v1948
    %v1951 = vunpack.c.l.s4 1966171168
    %v1952 = vunpack.c.0.s8 %v1951
    %v1953 = vlaneseq
    %v1954 = vshrl.u32 %v1953, 7
    %v1955 = vsub.s32 %v1952, %v1954
    %v1956 = vrot.slane %v1940, %v1955
    %v1958 = vunpack.c.l.s4 1966171168
    %v1959 = vunpack.c.0.s8 %v1958
    %v1960 = vlaneseq
    %v1961 = vshrl.u32 %v1960, 7
    %v1962 = vsub.s32 %v1959, %v1961
    %v1963 = vrot.slane %v1941, %v1962
    %v1965 = vunpack.c.l.s4 1966171168
    %v1966 = vunpack.c.0.s8 %v1965
    %v1967 = vlaneseq
    %v1968 = vshrl.u32 %v1967, 7
    %v1969 = vsub.s32 %v1966, %v1968
    %v1970 = vrot.slane %v1942, %v1969
    %v1971 = vcombine.low %v1949, %v1956
    %v1972 = vcombine.low %v1963, %v1970
    %v1974 = vunpack.c.l.s4 1966171168
    %v1975 = vunpack.c.0.s8 %v1974
    %v1976 = vlaneseq
    %v1977 = vshrl.u32 %v1976, 7
    %v1978 = vsub.s32 %v1975, %v1977
    %v1979 = vrot.slane %v1971, %v1978
    %v1981 = vunpack.c.l.s4 1966171168
    %v1982 = vunpack.c.0.s8 %v1981
    %v1983 = vlaneseq
    %v1984 = vshrl.u32 %v1983, 7
    %v1985 = vsub.s32 %v1982, %v1984
    %v1986 = vrot.slane %v1972, %v1985
    %v1987 = vcombine.low %v1979, %v1986
    %v1988 = vcombine.low %v882, %v886
    %v1989 = vcombine.low %v890, %v894
    %v1990 = vcombine.low %v898, %v902
    %v1991 = vcombine.low %v906, %v910
    %v1993 = vunpack.c.l.s4 1966171168
    %v1994 = vunpack.c.0.s8 %v1993
    %v1995 = vlaneseq
    %v1996 = vshrl.u32 %v1995, 7
    %v1997 = vsub.s32 %v1994, %v1996
    %v1998 = vrot.slane %v1988, %v1997
    %v2000 = vunpack.c.l.s4 1966171168
    %v2001 = vunpack.c.0.s8 %v2000
    %v2002 = vlaneseq
    %v2003 = vshrl.u32 %v2002, 7
    %v2004 = vsub.s32 %v2001, %v2003
    %v2005 = vrot.slane %v1989, %v2004
    %v2007 = vunpack.c.l.s4 1966171168
    %v2008 = vunpack.c.0.s8 %v2007
    %v2009 = vlaneseq
    %v2010 = vshrl.u32 %v2009, 7
    %v2011 = vsub.s32 %v2008, %v2010
    %v2012 = vrot.slane %v1990, %v2011
    %v2014 = vunpack.c.l.s4 1966171168
    %v2015 = vunpack.c.0.s8 %v2014
    %v2016 = vlaneseq
    %v2017 = vshrl.u32 %v2016, 7
    %v2018 = vsub.s32 %v2015, %v2017
    %v2019 = vrot.slane %v1991, %v2018
    %v2020 = vcombine.low %v1998, %v2005
    %v2021 = vcombine.low %v2012, %v2019
    %v2023 = vunpack.c.l.s4 1966171168
    %v2024 = vunpack.c.0.s8 %v2023
    %v2025 = vlaneseq
    %v2026 = vshrl.u32 %v2025, 7
    %v2027 = vsub.s32 %v2024, %v2026
    %v2028 = vrot.slane %v2020, %v2027
    %v2030 = vunpack.c.l.s4 1966171168
    %v2031 = vunpack.c.0.s8 %v2030
    %v2032 = vlaneseq
    %v2033 = vshrl.u32 %v2032, 7
    %v2034 = vsub.s32 %v2031, %v2033
    %v2035 = vrot.slane %v2021, %v2034
    %v2036 = vcombine.low %v2028, %v2035
    %v2037 = vcombine.low %v914, %v918
    %v2038 = vcombine.low %v922, %v926
    %v2039 = vcombine.low %v930, %v934
    %v2040 = vcombine.low %v938, %v942
    %v2042 = vunpack.c.l.s4 1966171168
    %v2043 = vunpack.c.0.s8 %v2042
    %v2044 = vlaneseq
    %v2045 = vshrl.u32 %v2044, 7
    %v2046 = vsub.s32 %v2043, %v2045
    %v2047 = vrot.slane %v2037, %v2046
    %v2049 = vunpack.c.l.s4 1966171168
    %v2050 = vunpack.c.0.s8 %v2049
    %v2051 = vlaneseq
    %v2052 = vshrl.u32 %v2051, 7
    %v2053 = vsub.s32 %v2050, %v2052
    %v2054 = vrot.slane %v2038, %v2053
    %v2056 = vunpack.c.l.s4 1966171168
    %v2057 = vunpack.c.0.s8 %v2056
    %v2058 = vlaneseq
    %v2059 = vshrl.u32 %v2058, 7
    %v2060 = vsub.s32 %v2057, %v2059
    %v2061 = vrot.slane %v2039, %v2060
    %v2063 = vunpack.c.l.s4 1966171168
    %v2064 = vunpack.c.0.s8 %v2063
    %v2065 = vlaneseq
    %v2066 = vshrl.u32 %v2065, 7
    %v2067 = vsub.s32 %v2064, %v2066
    %v2068 = vrot.slane %v2040, %v2067
    %v2069 = vcombine.low %v2047, %v2054
    %v2070 = vcombine.low %v2061, %v2068
    %v2072 = vunpack.c.l.s4 1966171168
    %v2073 = vunpack.c.0.s8 %v2072
    %v2074 = vlaneseq
    %v2075 = vshrl.u32 %v2074, 7
    %v2076 = vsub.s32 %v2073, %v2075
    %v2077 = vrot.slane %v2069, %v2076
    %v2079 = vunpack.c.l.s4 1966171168
    %v2080 = vunpack.c.0.s8 %v2079
    %v2081 = vlaneseq
    %v2082 = vshrl.u32 %v2081, 7
    %v2083 = vsub.s32 %v2080, %v2082
    %v2084 = vrot.slane %v2070, %v2083
    %v2085 = vcombine.low %v2077, %v2084
    %v2086 = vcombine.low %v946, %v950
    %v2087 = vcombine.low %v954, %v958
    %v2088 = vcombine.low %v962, %v966
    %v2089 = vcombine.low %v970, %v974
    %v2091 = vunpack.c.l.s4 1966171168
    %v2092 = vunpack.c.0.s8 %v2091
    %v2093 = vlaneseq
    %v2094 = vshrl.u32 %v2093, 7
    %v2095 = vsub.s32 %v2092, %v2094
    %v2096 = vrot.slane %v2086, %v2095
    %v2098 = vunpack.c.l.s4 1966171168
    %v2099 = vunpack.c.0.s8 %v2098
    %v2100 = vlaneseq
    %v2101 = vshrl.u32 %v2100, 7
    %v2102 = vsub.s32 %v2099, %v2101
    %v2103 = vrot.slane %v2087, %v2102
    %v2105 = vunpack.c.l.s4 1966171168
    %v2106 = vunpack.c.0.s8 %v2105
    %v2107 = vlaneseq
    %v2108 = vshrl.u32 %v2107, 7
    %v2109 = vsub.s32 %v2106, %v2108
    %v2110 = vrot.slane %v2088, %v2109
    %v2112 = vunpack.c.l.s4 1966171168
    %v2113 = vunpack.c.0.s8 %v2112
    %v2114 = vlaneseq
    %v2115 = vshrl.u32 %v2114, 7
    %v2116 = vsub.s32 %v2113, %v2115
    %v2117 = vrot.slane %v2089, %v2116
    %v2118 = vcombine.low %v2096, %v2103
    %v2119 = vcombine.low %v2110, %v2117
    %v2121 = vunpack.c.l.s4 1966171168
    %v2122 = vunpack.c.0.s8 %v2121
    %v2123 = vlaneseq
    %v2124 = vshrl.u32 %v2123, 7
    %v2125 = vsub.s32 %v2122, %v2124
    %v2126 = vrot.slane %v2118, %v2125
    %v2128 = vunpack.c.l.s4 1966171168
    %v2129 = vunpack.c.0.s8 %v2128
    %v2130 = vlaneseq
    %v2131 = vshrl.u32 %v2130, 7
    %v2132 = vsub.s32 %v2129, %v2131
    %v2133 = vrot.slane %v2119, %v2132
    %v2134 = vcombine.low %v2126, %v2133
    %v2135 = vcombine.low %v978, %v982
    %v2136 = vcombine.low %v986, %v990
    %v2137 = vcombine.low %v994, %v998
    %v2138 = vcombine.low %v1002, %v1006
    %v2140 = vunpack.c.l.s4 1966171168
    %v2141 = vunpack.c.0.s8 %v2140
    %v2142 = vlaneseq
    %v2143 = vshrl.u32 %v2142, 7
    %v2144 = vsub.s32 %v2141, %v2143
    %v2145 = vrot.slane %v2135, %v2144
    %v2147 = vunpack.c.l.s4 1966171168
    %v2148 = vunpack.c.0.s8 %v2147
    %v2149 = vlaneseq
    %v2150 = vshrl.u32 %v2149, 7
    %v2151 = vsub.s32 %v2148, %v2150
    %v2152 = vrot.slane %v2136, %v2151
    %v2154 = vunpack.c.l.s4 1966171168
    %v2155 = vunpack.c.0.s8 %v2154
    %v2156 = vlaneseq
    %v2157 = vshrl.u32 %v2156, 7
    %v2158 = vsub.s32 %v2155, %v2157
    %v2159 = vrot.slane %v2137, %v2158
    %v2161 = vunpack.c.l.s4 1966171168
    %v2162 = vunpack.c.0.s8 %v2161
    %v2163 = vlaneseq
    %v2164 = vshrl.u32 %v2163, 7
    %v2165 = vsub.s32 %v2162, %v2164
    %v2166 = vrot.slane %v2138, %v2165
    %v2167 = vcombine.low %v2145, %v2152
    %v2168 = vcombine.low %v2159, %v2166
    %v2170 = vunpack.c.l.s4 1966171168
    %v2171 = vunpack.c.0.s8 %v2170
    %v2172 = vlaneseq
    %v2173 = vshrl.u32 %v2172, 7
    %v2174 = vsub.s32 %v2171, %v2173
    %v2175 = vrot.slane %v2167, %v2174
    %v2177 = vunpack.c.l.s4 1966171168
    %v2178 = vunpack.c.0.s8 %v2177
    %v2179 = vlaneseq
    %v2180 = vshrl.u32 %v2179, 7
    %v2181 = vsub.s32 %v2178, %v2180
    %v2182 = vrot.slane %v2168, %v2181
    %v2183 = vcombine.low %v2175, %v2182
    %v2184 = vcombine.low %v1010, %v1014
    %v2185 = vcombine.low %v1018, %v1022
    %v2186 = vcombine.low %v1026, %v1030
    %v2187 = vcombine.low %v1034, %v1038
    %v2189 = vunpack.c.l.s4 1966171168
    %v2190 = vunpack.c.0.s8 %v2189
    %v2191 = vlaneseq
    %v2192 = vshrl.u32 %v2191, 7
    %v2193 = vsub.s32 %v2190, %v2192
    %v2194 = vrot.slane %v2184, %v2193
    %v2196 = vunpack.c.l.s4 1966171168
    %v2197 = vunpack.c.0.s8 %v2196
    %v2198 = vlaneseq
    %v2199 = vshrl.u32 %v2198, 7
    %v2200 = vsub.s32 %v2197, %v2199
    %v2201 = vrot.slane %v2185, %v2200
    %v2203 = vunpack.c.l.s4 1966171168
    %v2204 = vunpack.c.0.s8 %v2203
    %v2205 = vlaneseq
    %v2206 = vshrl.u32 %v2205, 7
    %v2207 = vsub.s32 %v2204, %v2206
    %v2208 = vrot.slane %v2186, %v2207
    %v2210 = vunpack.c.l.s4 1966171168
    %v2211 = vunpack.c.0.s8 %v2210
    %v2212 = vlaneseq
    %v2213 = vshrl.u32 %v2212, 7
    %v2214 = vsub.s32 %v2211, %v2213
    %v2215 = vrot.slane %v2187, %v2214
    %v2216 = vcombine.low %v2194, %v2201
    %v2217 = vcombine.low %v2208, %v2215
    %v2219 = vunpack.c.l.s4 1966171168
    %v2220 = vunpack.c.0.s8 %v2219
    %v2221 = vlaneseq
    %v2222 = vshrl.u32 %v2221, 7
    %v2223 = vsub.s32 %v2220, %v2222
    %v2224 = vrot.slane %v2216, %v2223
    %v2226 = vunpack.c.l.s4 1966171168
    %v2227 = vunpack.c.0.s8 %v2226
    %v2228 = vlaneseq
    %v2229 = vshrl.u32 %v2228, 7
    %v2230 = vsub.s32 %v2227, %v2229
    %v2231 = vrot.slane %v2217, %v2230
    %v2232 = vcombine.low %v2224, %v2231
    %v2233 = vcombine.low %v1042, %v1046
    %v2234 = vcombine.low %v1050, %v1054
    %v2235 = vcombine.low %v1058, %v1062
    %v2236 = vcombine.low %v1066, %v1070
    %v2238 = vunpack.c.l.s4 1966171168
    %v2239 = vunpack.c.0.s8 %v2238
    %v2240 = vlaneseq
    %v2241 = vshrl.u32 %v2240, 7
    %v2242 = vsub.s32 %v2239, %v2241
    %v2243 = vrot.slane %v2233, %v2242
    %v2245 = vunpack.c.l.s4 1966171168
    %v2246 = vunpack.c.0.s8 %v2245
    %v2247 = vlaneseq
    %v2248 = vshrl.u32 %v2247, 7
    %v2249 = vsub.s32 %v2246, %v2248
    %v2250 = vrot.slane %v2234, %v2249
    %v2252 = vunpack.c.l.s4 1966171168
    %v2253 = vunpack.c.0.s8 %v2252
    %v2254 = vlaneseq
    %v2255 = vshrl.u32 %v2254, 7
    %v2256 = vsub.s32 %v2253, %v2255
    %v2257 = vrot.slane %v2235, %v2256
    %v2259 = vunpack.c.l.s4 1966171168
    %v2260 = vunpack.c.0.s8 %v2259
    %v2261 = vlaneseq
    %v2262 = vshrl.u32 %v2261, 7
    %v2263 = vsub.s32 %v2260, %v2262
    %v2264 = vrot.slane %v2236, %v2263
    %v2265 = vcombine.low %v2243, %v2250
    %v2266 = vcombine.low %v2257, %v2264
    %v2268 = vunpack.c.l.s4 1966171168
    %v2269 = vunpack.c.0.s8 %v2268
    %v2270 = vlaneseq
    %v2271 = vshrl.u32 %v2270, 7
    %v2272 = vsub.s32 %v2269, %v2271
    %v2273 = vrot.slane %v2265, %v2272
    %v2275 = vunpack.c.l.s4 1966171168
    %v2276 = vunpack.c.0.s8 %v2275
    %v2277 = vlaneseq
    %v2278 = vshrl.u32 %v2277, 7
    %v2279 = vsub.s32 %v2276, %v2278
    %v2280 = vrot.slane %v2266, %v2279
    %v2281 = vcombine.low %v2273, %v2280
    %v2282 = vcombine.low %v1074, %v1078
    %v2283 = vcombine.low %v1082, %v1086
    %v2284 = vcombine.low %v1090, %v1094
    %v2285 = vcombine.low %v1098, %v1102
    %v2287 = vunpack.c.l.s4 1966171168
    %v2288 = vunpack.c.0.s8 %v2287
    %v2289 = vlaneseq
    %v2290 = vshrl.u32 %v2289, 7
    %v2291 = vsub.s32 %v2288, %v2290
    %v2292 = vrot.slane %v2282, %v2291
    %v2294 = vunpack.c.l.s4 1966171168
    %v2295 = vunpack.c.0.s8 %v2294
    %v2296 = vlaneseq
    %v2297 = vshrl.u32 %v2296, 7
    %v2298 = vsub.s32 %v2295, %v2297
    %v2299 = vrot.slane %v2283, %v2298
    %v2301 = vunpack.c.l.s4 1966171168
    %v2302 = vunpack.c.0.s8 %v2301
    %v2303 = vlaneseq
    %v2304 = vshrl.u32 %v2303, 7
    %v2305 = vsub.s32 %v2302, %v2304
    %v2306 = vrot.slane %v2284, %v2305
    %v2308 = vunpack.c.l.s4 1966171168
    %v2309 = vunpack.c.0.s8 %v2308
    %v2310 = vlaneseq
    %v2311 = vshrl.u32 %v2310, 7
    %v2312 = vsub.s32 %v2309, %v2311
    %v2313 = vrot.slane %v2285, %v2312
    %v2314 = vcombine.low %v2292, %v2299
    %v2315 = vcombine.low %v2306, %v2313
    %v2317 = vunpack.c.l.s4 1966171168
    %v2318 = vunpack.c.0.s8 %v2317
    %v2319 = vlaneseq
    %v2320 = vshrl.u32 %v2319, 7
    %v2321 = vsub.s32 %v2318, %v2320
    %v2322 = vrot.slane %v2314, %v2321
    %v2324 = vunpack.c.l.s4 1966171168
    %v2325 = vunpack.c.0.s8 %v2324
    %v2326 = vlaneseq
    %v2327 = vshrl.u32 %v2326, 7
    %v2328 = vsub.s32 %v2325, %v2327
    %v2329 = vrot.slane %v2315, %v2328
    %v2330 = vcombine.low %v2322, %v2329
    %v2331 = vcombine.low %v1106, %v1110
    %v2332 = vcombine.low %v1114, %v1118
    %v2333 = vcombine.low %v1122, %v1126
    %v2334 = vcombine.low %v1130, %v1134
    %v2336 = vunpack.c.l.s4 1966171168
    %v2337 = vunpack.c.0.s8 %v2336
    %v2338 = vlaneseq
    %v2339 = vshrl.u32 %v2338, 7
    %v2340 = vsub.s32 %v2337, %v2339
    %v2341 = vrot.slane %v2331, %v2340
    %v2343 = vunpack.c.l.s4 1966171168
    %v2344 = vunpack.c.0.s8 %v2343
    %v2345 = vlaneseq
    %v2346 = vshrl.u32 %v2345, 7
    %v2347 = vsub.s32 %v2344, %v2346
    %v2348 = vrot.slane %v2332, %v2347
    %v2350 = vunpack.c.l.s4 1966171168
    %v2351 = vunpack.c.0.s8 %v2350
    %v2352 = vlaneseq
    %v2353 = vshrl.u32 %v2352, 7
    %v2354 = vsub.s32 %v2351, %v2353
    %v2355 = vrot.slane %v2333, %v2354
    %v2357 = vunpack.c.l.s4 1966171168
    %v2358 = vunpack.c.0.s8 %v2357
    %v2359 = vlaneseq
    %v2360 = vshrl.u32 %v2359, 7
    %v2361 = vsub.s32 %v2358, %v2360
    %v2362 = vrot.slane %v2334, %v2361
    %v2363 = vcombine.low %v2341, %v2348
    %v2364 = vcombine.low %v2355, %v2362
    %v2366 = vunpack.c.l.s4 1966171168
    %v2367 = vunpack.c.0.s8 %v2366
    %v2368 = vlaneseq
    %v2369 = vshrl.u32 %v2368, 7
    %v2370 = vsub.s32 %v2367, %v2369
    %v2371 = vrot.slane %v2363, %v2370
    %v2373 = vunpack.c.l.s4 1966171168
    %v2374 = vunpack.c.0.s8 %v2373
    %v2375 = vlaneseq
    %v2376 = vshrl.u32 %v2375, 7
    %v2377 = vsub.s32 %v2374, %v2376
    %v2378 = vrot.slane %v2364, %v2377
    %v2379 = vcombine.low %v2371, %v2378
    %v2380 = vcombine.low %v1138, %v1142
    %v2381 = vcombine.low %v1146, %v1150
    %v2382 = vcombine.low %v1154, %v1158
    %v2383 = vcombine.low %v1162, %v1166
    %v2385 = vunpack.c.l.s4 1966171168
    %v2386 = vunpack.c.0.s8 %v2385
    %v2387 = vlaneseq
    %v2388 = vshrl.u32 %v2387, 7
    %v2389 = vsub.s32 %v2386, %v2388
    %v2390 = vrot.slane %v2380, %v2389
    %v2392 = vunpack.c.l.s4 1966171168
    %v2393 = vunpack.c.0.s8 %v2392
    %v2394 = vlaneseq
    %v2395 = vshrl.u32 %v2394, 7
    %v2396 = vsub.s32 %v2393, %v2395
    %v2397 = vrot.slane %v2381, %v2396
    %v2399 = vunpack.c.l.s4 1966171168
    %v2400 = vunpack.c.0.s8 %v2399
    %v2401 = vlaneseq
    %v2402 = vshrl.u32 %v2401, 7
    %v2403 = vsub.s32 %v2400, %v2402
    %v2404 = vrot.slane %v2382, %v2403
    %v2406 = vunpack.c.l.s4 1966171168
    %v2407 = vunpack.c.0.s8 %v2406
    %v2408 = vlaneseq
    %v2409 = vshrl.u32 %v2408, 7
    %v2410 = vsub.s32 %v2407, %v2409
    %v2411 = vrot.slane %v2383, %v2410
    %v2412 = vcombine.low %v2390, %v2397
    %v2413 = vcombine.low %v2404, %v2411
    %v2415 = vunpack.c.l.s4 1966171168
    %v2416 = vunpack.c.0.s8 %v2415
    %v2417 = vlaneseq
    %v2418 = vshrl.u32 %v2417, 7
    %v2419 = vsub.s32 %v2416, %v2418
    %v2420 = vrot.slane %v2412, %v2419
    %v2422 = vunpack.c.l.s4 1966171168
    %v2423 = vunpack.c.0.s8 %v2422
    %v2424 = vlaneseq
    %v2425 = vshrl.u32 %v2424, 7
    %v2426 = vsub.s32 %v2423, %v2425
    %v2427 = vrot.slane %v2413, %v2426
    %v2428 = vcombine.low %v2420, %v2427
    %v2429 = vcombine.low %v1170, %v1174
    %v2430 = vcombine.low %v1178, %v1182
    %v2431 = vcombine.low %v1186, %v1190
    %v2432 = vcombine.low %v1194, %v1198
    %v2434 = vunpack.c.l.s4 1966171168
    %v2435 = vunpack.c.0.s8 %v2434
    %v2436 = vlaneseq
    %v2437 = vshrl.u32 %v2436, 7
    %v2438 = vsub.s32 %v2435, %v2437
    %v2439 = vrot.slane %v2429, %v2438
    %v2441 = vunpack.c.l.s4 1966171168
    %v2442 = vunpack.c.0.s8 %v2441
    %v2443 = vlaneseq
    %v2444 = vshrl.u32 %v2443, 7
    %v2445 = vsub.s32 %v2442, %v2444
    %v2446 = vrot.slane %v2430, %v2445
    %v2448 = vunpack.c.l.s4 1966171168
    %v2449 = vunpack.c.0.s8 %v2448
    %v2450 = vlaneseq
    %v2451 = vshrl.u32 %v2450, 7
    %v2452 = vsub.s32 %v2449, %v2451
    %v2453 = vrot.slane %v2431, %v2452
    %v2455 = vunpack.c.l.s4 1966171168
    %v2456 = vunpack.c.0.s8 %v2455
    %v2457 = vlaneseq
    %v2458 = vshrl.u32 %v2457, 7
    %v2459 = vsub.s32 %v2456, %v2458
    %v2460 = vrot.slane %v2432, %v2459
    %v2461 = vcombine.low %v2439, %v2446
    %v2462 = vcombine.low %v2453, %v2460
    %v2464 = vunpack.c.l.s4 1966171168
    %v2465 = vunpack.c.0.s8 %v2464
    %v2466 = vlaneseq
    %v2467 = vshrl.u32 %v2466, 7
    %v2468 = vsub.s32 %v2465, %v2467
    %v2469 = vrot.slane %v2461, %v2468
    %v2471 = vunpack.c.l.s4 1966171168
    %v2472 = vunpack.c.0.s8 %v2471
    %v2473 = vlaneseq
    %v2474 = vshrl.u32 %v2473, 7
    %v2475 = vsub.s32 %v2472, %v2474
    %v2476 = vrot.slane %v2462, %v2475
    %v2477 = vcombine.low %v2469, %v2476
    %v2478 = vcombine.low %v1202, %v1206
    %v2479 = vcombine.low %v1210, %v1214
    %v2480 = vcombine.low %v1218, %v1222
    %v2481 = vcombine.low %v1226, %v1230
    %v2483 = vunpack.c.l.s4 1966171168
    %v2484 = vunpack.c.0.s8 %v2483
    %v2485 = vlaneseq
    %v2486 = vshrl.u32 %v2485, 7
    %v2487 = vsub.s32 %v2484, %v2486
    %v2488 = vrot.slane %v2478, %v2487
    %v2490 = vunpack.c.l.s4 1966171168
    %v2491 = vunpack.c.0.s8 %v2490
    %v2492 = vlaneseq
    %v2493 = vshrl.u32 %v2492, 7
    %v2494 = vsub.s32 %v2491, %v2493
    %v2495 = vrot.slane %v2479, %v2494
    %v2497 = vunpack.c.l.s4 1966171168
    %v2498 = vunpack.c.0.s8 %v2497
    %v2499 = vlaneseq
    %v2500 = vshrl.u32 %v2499, 7
    %v2501 = vsub.s32 %v2498, %v2500
    %v2502 = vrot.slane %v2480, %v2501
    %v2504 = vunpack.c.l.s4 1966171168
    %v2505 = vunpack.c.0.s8 %v2504
    %v2506 = vlaneseq
    %v2507 = vshrl.u32 %v2506, 7
    %v2508 = vsub.s32 %v2505, %v2507
    %v2509 = vrot.slane %v2481, %v2508
    %v2510 = vcombine.low %v2488, %v2495
    %v2511 = vcombine.low %v2502, %v2509
    %v2513 = vunpack.c.l.s4 1966171168
    %v2514 = vunpack.c.0.s8 %v2513
    %v2515 = vlaneseq
    %v2516 = vshrl.u32 %v2515, 7
    %v2517 = vsub.s32 %v2514, %v2516
    %v2518 = vrot.slane %v2510, %v2517
    %v2520 = vunpack.c.l.s4 1966171168
    %v2521 = vunpack.c.0.s8 %v2520
    %v2522 = vlaneseq
    %v2523 = vshrl.u32 %v2522, 7
    %v2524 = vsub.s32 %v2521, %v2523
    %v2525 = vrot.slane %v2511, %v2524
    %v2526 = vcombine.low %v2518, %v2525
    %v2527 = vcombine.low %v1234, %v1238
    %v2528 = vcombine.low %v1242, %v1246
    %v2529 = vcombine.low %v1250, %v1254
    %v2530 = vcombine.low %v1258, %v1262
    %v2532 = vunpack.c.l.s4 1966171168
    %v2533 = vunpack.c.0.s8 %v2532
    %v2534 = vlaneseq
    %v2535 = vshrl.u32 %v2534, 7
    %v2536 = vsub.s32 %v2533, %v2535
    %v2537 = vrot.slane %v2527, %v2536
    %v2539 = vunpack.c.l.s4 1966171168
    %v2540 = vunpack.c.0.s8 %v2539
    %v2541 = vlaneseq
    %v2542 = vshrl.u32 %v2541, 7
    %v2543 = vsub.s32 %v2540, %v2542
    %v2544 = vrot.slane %v2528, %v2543
    %v2546 = vunpack.c.l.s4 1966171168
    %v2547 = vunpack.c.0.s8 %v2546
    %v2548 = vlaneseq
    %v2549 = vshrl.u32 %v2548, 7
    %v2550 = vsub.s32 %v2547, %v2549
    %v2551 = vrot.slane %v2529, %v2550
    %v2553 = vunpack.c.l.s4 1966171168
    %v2554 = vunpack.c.0.s8 %v2553
    %v2555 = vlaneseq
    %v2556 = vshrl.u32 %v2555, 7
    %v2557 = vsub.s32 %v2554, %v2556
    %v2558 = vrot.slane %v2530, %v2557
    %v2559 = vcombine.low %v2537, %v2544
    %v2560 = vcombine.low %v2551, %v2558
    %v2562 = vunpack.c.l.s4 1966171168
    %v2563 = vunpack.c.0.s8 %v2562
    %v2564 = vlaneseq
    %v2565 = vshrl.u32 %v2564, 7
    %v2566 = vsub.s32 %v2563, %v2565
    %v2567 = vrot.slane %v2559, %v2566
    %v2569 = vunpack.c.l.s4 1966171168
    %v2570 = vunpack.c.0.s8 %v2569
    %v2571 = vlaneseq
    %v2572 = vshrl.u32 %v2571, 7
    %v2573 = vsub.s32 %v2570, %v2572
    %v2574 = vrot.slane %v2560, %v2573
    %v2575 = vcombine.low %v2567, %v2574
    %v2576 = vcombine.low %v1266, %v1270
    %v2577 = vcombine.low %v1274, %v1278
    %v2578 = vcombine.low %v1282, %v1286
    %v2579 = vcombine.low %v1290, %v1294
    %v2581 = vunpack.c.l.s4 1966171168
    %v2582 = vunpack.c.0.s8 %v2581
    %v2583 = vlaneseq
    %v2584 = vshrl.u32 %v2583, 7
    %v2585 = vsub.s32 %v2582, %v2584
    %v2586 = vrot.slane %v2576, %v2585
    %v2588 = vunpack.c.l.s4 1966171168
    %v2589 = vunpack.c.0.s8 %v2588
    %v2590 = vlaneseq
    %v2591 = vshrl.u32 %v2590, 7
    %v2592 = vsub.s32 %v2589, %v2591
    %v2593 = vrot.slane %v2577, %v2592
    %v2595 = vunpack.c.l.s4 1966171168
    %v2596 = vunpack.c.0.s8 %v2595
    %v2597 = vlaneseq
    %v2598 = vshrl.u32 %v2597, 7
    %v2599 = vsub.s32 %v2596, %v2598
    %v2600 = vrot.slane %v2578, %v2599
    %v2602 = vunpack.c.l.s4 1966171168
    %v2603 = vunpack.c.0.s8 %v2602
    %v2604 = vlaneseq
    %v2605 = vshrl.u32 %v2604, 7
    %v2606 = vsub.s32 %v2603, %v2605
    %v2607 = vrot.slane %v2579, %v2606
    %v2608 = vcombine.low %v2586, %v2593
    %v2609 = vcombine.low %v2600, %v2607
    %v2611 = vunpack.c.l.s4 1966171168
    %v2612 = vunpack.c.0.s8 %v2611
    %v2613 = vlaneseq
    %v2614 = vshrl.u32 %v2613, 7
    %v2615 = vsub.s32 %v2612, %v2614
    %v2616 = vrot.slane %v2608, %v2615
    %v2618 = vunpack.c.l.s4 1966171168
    %v2619 = vunpack.c.0.s8 %v2618
    %v2620 = vlaneseq
    %v2621 = vshrl.u32 %v2620, 7
    %v2622 = vsub.s32 %v2619, %v2621
    %v2623 = vrot.slane %v2609, %v2622
    %v2624 = vcombine.low %v2616, %v2623
    %v2625 = vcombine.low %v1298, %v1302
    %v2626 = vcombine.low %v1306, %v1310
    %v2627 = vcombine.low %v1314, %v1318
    %v2628 = vcombine.low %v1322, %v1326
    %v2630 = vunpack.c.l.s4 1966171168
    %v2631 = vunpack.c.0.s8 %v2630
    %v2632 = vlaneseq
    %v2633 = vshrl.u32 %v2632, 7
    %v2634 = vsub.s32 %v2631, %v2633
    %v2635 = vrot.slane %v2625, %v2634
    %v2637 = vunpack.c.l.s4 1966171168
    %v2638 = vunpack.c.0.s8 %v2637
    %v2639 = vlaneseq
    %v2640 = vshrl.u32 %v2639, 7
    %v2641 = vsub.s32 %v2638, %v2640
    %v2642 = vrot.slane %v2626, %v2641
    %v2644 = vunpack.c.l.s4 1966171168
    %v2645 = vunpack.c.0.s8 %v2644
    %v2646 = vlaneseq
    %v2647 = vshrl.u32 %v2646, 7
    %v2648 = vsub.s32 %v2645, %v2647
    %v2649 = vrot.slane %v2627, %v2648
    %v2651 = vunpack.c.l.s4 1966171168
    %v2652 = vunpack.c.0.s8 %v2651
    %v2653 = vlaneseq
    %v2654 = vshrl.u32 %v2653, 7
    %v2655 = vsub.s32 %v2652, %v2654
    %v2656 = vrot.slane %v2628, %v2655
    %v2657 = vcombine.low %v2635, %v2642
    %v2658 = vcombine.low %v2649, %v2656
    %v2660 = vunpack.c.l.s4 1966171168
    %v2661 = vunpack.c.0.s8 %v2660
    %v2662 = vlaneseq
    %v2663 = vshrl.u32 %v2662, 7
    %v2664 = vsub.s32 %v2661, %v2663
    %v2665 = vrot.slane %v2657, %v2664
    %v2667 = vunpack.c.l.s4 1966171168
    %v2668 = vunpack.c.0.s8 %v2667
    %v2669 = vlaneseq
    %v2670 = vshrl.u32 %v2669, 7
    %v2671 = vsub.s32 %v2668, %v2670
    %v2672 = vrot.slane %v2658, %v2671
    %v2673 = vcombine.low %v2665, %v2672
    %v2674 = vcombine.low %v1330, %v1334
    %v2675 = vcombine.low %v1338, %v1342
    %v2676 = vcombine.low %v1346, %v1350
    %v2677 = vcombine.low %v1354, %v1358
    %v2679 = vunpack.c.l.s4 1966171168
    %v2680 = vunpack.c.0.s8 %v2679
    %v2681 = vlaneseq
    %v2682 = vshrl.u32 %v2681, 7
    %v2683 = vsub.s32 %v2680, %v2682
    %v2684 = vrot.slane %v2674, %v2683
    %v2686 = vunpack.c.l.s4 1966171168
    %v2687 = vunpack.c.0.s8 %v2686
    %v2688 = vlaneseq
    %v2689 = vshrl.u32 %v2688, 7
    %v2690 = vsub.s32 %v2687, %v2689
    %v2691 = vrot.slane %v2675, %v2690
    %v2693 = vunpack.c.l.s4 1966171168
    %v2694 = vunpack.c.0.s8 %v2693
    %v2695 = vlaneseq
    %v2696 = vshrl.u32 %v2695, 7
    %v2697 = vsub.s32 %v2694, %v2696
    %v2698 = vrot.slane %v2676, %v2697
    %v2700 = vunpack.c.l.s4 1966171168
    %v2701 = vunpack.c.0.s8 %v2700
    %v2702 = vlaneseq
    %v2703 = vshrl.u32 %v2702, 7
    %v2704 = vsub.s32 %v2701, %v2703
    %v2705 = vrot.slane %v2677, %v2704
    %v2706 = vcombine.low %v2684, %v2691
    %v2707 = vcombine.low %v2698, %v2705
    %v2709 = vunpack.c.l.s4 1966171168
    %v2710 = vunpack.c.0.s8 %v2709
    %v2711 = vlaneseq
    %v2712 = vshrl.u32 %v2711, 7
    %v2713 = vsub.s32 %v2710, %v2712
    %v2714 = vrot.slane %v2706, %v2713
    %v2716 = vunpack.c.l.s4 1966171168
    %v2717 = vunpack.c.0.s8 %v2716
    %v2718 = vlaneseq
    %v2719 = vshrl.u32 %v2718, 7
    %v2720 = vsub.s32 %v2717, %v2719
    %v2721 = vrot.slane %v2707, %v2720
    %v2722 = vcombine.low %v2714, %v2721
    %v2723 = vcombine.low %v1362, %v1366
    %v2724 = vcombine.low %v1370, %v1374
    %v2725 = vcombine.low %v1378, %v1382
    %v2726 = vcombine.low %v1386, %v1390
    %v2728 = vunpack.c.l.s4 1966171168
    %v2729 = vunpack.c.0.s8 %v2728
    %v2730 = vlaneseq
    %v2731 = vshrl.u32 %v2730, 7
    %v2732 = vsub.s32 %v2729, %v2731
    %v2733 = vrot.slane %v2723, %v2732
    %v2735 = vunpack.c.l.s4 1966171168
    %v2736 = vunpack.c.0.s8 %v2735
    %v2737 = vlaneseq
    %v2738 = vshrl.u32 %v2737, 7
    %v2739 = vsub.s32 %v2736, %v2738
    %v2740 = vrot.slane %v2724, %v2739
    %v2742 = vunpack.c.l.s4 1966171168
    %v2743 = vunpack.c.0.s8 %v2742
    %v2744 = vlaneseq
    %v2745 = vshrl.u32 %v2744, 7
    %v2746 = vsub.s32 %v2743, %v2745
    %v2747 = vrot.slane %v2725, %v2746
    %v2749 = vunpack.c.l.s4 1966171168
    %v2750 = vunpack.c.0.s8 %v2749
    %v2751 = vlaneseq
    %v2752 = vshrl.u32 %v2751, 7
    %v2753 = vsub.s32 %v2750, %v2752
    %v2754 = vrot.slane %v2726, %v2753
    %v2755 = vcombine.low %v2733, %v2740
    %v2756 = vcombine.low %v2747, %v2754
    %v2758 = vunpack.c.l.s4 1966171168
    %v2759 = vunpack.c.0.s8 %v2758
    %v2760 = vlaneseq
    %v2761 = vshrl.u32 %v2760, 7
    %v2762 = vsub.s32 %v2759, %v2761
    %v2763 = vrot.slane %v2755, %v2762
    %v2765 = vunpack.c.l.s4 1966171168
    %v2766 = vunpack.c.0.s8 %v2765
    %v2767 = vlaneseq
    %v2768 = vshrl.u32 %v2767, 7
    %v2769 = vsub.s32 %v2766, %v2768
    %v2770 = vrot.slane %v2756, %v2769
    %v2771 = vcombine.low %v2763, %v2770
    %v2772 = vcombine.low %v1394, %v1398
    %v2773 = vcombine.low %v1402, %v1406
    %v2774 = vcombine.low %v1410, %v1414
    %v2775 = vcombine.low %v1418, %v1422
    %v2777 = vunpack.c.l.s4 1966171168
    %v2778 = vunpack.c.0.s8 %v2777
    %v2779 = vlaneseq
    %v2780 = vshrl.u32 %v2779, 7
    %v2781 = vsub.s32 %v2778, %v2780
    %v2782 = vrot.slane %v2772, %v2781
    %v2784 = vunpack.c.l.s4 1966171168
    %v2785 = vunpack.c.0.s8 %v2784
    %v2786 = vlaneseq
    %v2787 = vshrl.u32 %v2786, 7
    %v2788 = vsub.s32 %v2785, %v2787
    %v2789 = vrot.slane %v2773, %v2788
    %v2791 = vunpack.c.l.s4 1966171168
    %v2792 = vunpack.c.0.s8 %v2791
    %v2793 = vlaneseq
    %v2794 = vshrl.u32 %v2793, 7
    %v2795 = vsub.s32 %v2792, %v2794
    %v2796 = vrot.slane %v2774, %v2795
    %v2798 = vunpack.c.l.s4 1966171168
    %v2799 = vunpack.c.0.s8 %v2798
    %v2800 = vlaneseq
    %v2801 = vshrl.u32 %v2800, 7
    %v2802 = vsub.s32 %v2799, %v2801
    %v2803 = vrot.slane %v2775, %v2802
    %v2804 = vcombine.low %v2782, %v2789
    %v2805 = vcombine.low %v2796, %v2803
    %v2807 = vunpack.c.l.s4 1966171168
    %v2808 = vunpack.c.0.s8 %v2807
    %v2809 = vlaneseq
    %v2810 = vshrl.u32 %v2809, 7
    %v2811 = vsub.s32 %v2808, %v2810
    %v2812 = vrot.slane %v2804, %v2811
    %v2814 = vunpack.c.l.s4 1966171168
    %v2815 = vunpack.c.0.s8 %v2814
    %v2816 = vlaneseq
    %v2817 = vshrl.u32 %v2816, 7
    %v2818 = vsub.s32 %v2815, %v2817
    %v2819 = vrot.slane %v2805, %v2818
    %v2820 = vcombine.low %v2812, %v2819
    %v2821 = vcombine.low %v1426, %v1430
    %v2822 = vcombine.low %v1434, %v1438
    %v2823 = vcombine.low %v1442, %v1446
    %v2824 = vcombine.low %v1450, %v1454
    %v2826 = vunpack.c.l.s4 1966171168
    %v2827 = vunpack.c.0.s8 %v2826
    %v2828 = vlaneseq
    %v2829 = vshrl.u32 %v2828, 7
    %v2830 = vsub.s32 %v2827, %v2829
    %v2831 = vrot.slane %v2821, %v2830
    %v2833 = vunpack.c.l.s4 1966171168
    %v2834 = vunpack.c.0.s8 %v2833
    %v2835 = vlaneseq
    %v2836 = vshrl.u32 %v2835, 7
    %v2837 = vsub.s32 %v2834, %v2836
    %v2838 = vrot.slane %v2822, %v2837
    %v2840 = vunpack.c.l.s4 1966171168
    %v2841 = vunpack.c.0.s8 %v2840
    %v2842 = vlaneseq
    %v2843 = vshrl.u32 %v2842, 7
    %v2844 = vsub.s32 %v2841, %v2843
    %v2845 = vrot.slane %v2823, %v2844
    %v2847 = vunpack.c.l.s4 1966171168
    %v2848 = vunpack.c.0.s8 %v2847
    %v2849 = vlaneseq
    %v2850 = vshrl.u32 %v2849, 7
    %v2851 = vsub.s32 %v2848, %v2850
    %v2852 = vrot.slane %v2824, %v2851
    %v2853 = vcombine.low %v2831, %v2838
    %v2854 = vcombine.low %v2845, %v2852
    %v2856 = vunpack.c.l.s4 1966171168
    %v2857 = vunpack.c.0.s8 %v2856
    %v2858 = vlaneseq
    %v2859 = vshrl.u32 %v2858, 7
    %v2860 = vsub.s32 %v2857, %v2859
    %v2861 = vrot.slane %v2853, %v2860
    %v2863 = vunpack.c.l.s4 1966171168
    %v2864 = vunpack.c.0.s8 %v2863
    %v2865 = vlaneseq
    %v2866 = vshrl.u32 %v2865, 7
    %v2867 = vsub.s32 %v2864, %v2866
    %v2868 = vrot.slane %v2854, %v2867
    %v2869 = vcombine.low %v2861, %v2868
    %v2870 = vcombine.low %v1458, %v1462
    %v2871 = vcombine.low %v1466, %v1470
    %v2872 = vcombine.low %v1474, %v1478
    %v2873 = vcombine.low %v1482, %v1486
    %v2875 = vunpack.c.l.s4 1966171168
    %v2876 = vunpack.c.0.s8 %v2875
    %v2877 = vlaneseq
    %v2878 = vshrl.u32 %v2877, 7
    %v2879 = vsub.s32 %v2876, %v2878
    %v2880 = vrot.slane %v2870, %v2879
    %v2882 = vunpack.c.l.s4 1966171168
    %v2883 = vunpack.c.0.s8 %v2882
    %v2884 = vlaneseq
    %v2885 = vshrl.u32 %v2884, 7
    %v2886 = vsub.s32 %v2883, %v2885
    %v2887 = vrot.slane %v2871, %v2886
    %v2889 = vunpack.c.l.s4 1966171168
    %v2890 = vunpack.c.0.s8 %v2889
    %v2891 = vlaneseq
    %v2892 = vshrl.u32 %v2891, 7
    %v2893 = vsub.s32 %v2890, %v2892
    %v2894 = vrot.slane %v2872, %v2893
    %v2896 = vunpack.c.l.s4 1966171168
    %v2897 = vunpack.c.0.s8 %v2896
    %v2898 = vlaneseq
    %v2899 = vshrl.u32 %v2898, 7
    %v2900 = vsub.s32 %v2897, %v2899
    %v2901 = vrot.slane %v2873, %v2900
    %v2902 = vcombine.low %v2880, %v2887
    %v2903 = vcombine.low %v2894, %v2901
    %v2905 = vunpack.c.l.s4 1966171168
    %v2906 = vunpack.c.0.s8 %v2905
    %v2907 = vlaneseq
    %v2908 = vshrl.u32 %v2907, 7
    %v2909 = vsub.s32 %v2906, %v2908
    %v2910 = vrot.slane %v2902, %v2909
    %v2912 = vunpack.c.l.s4 1966171168
    %v2913 = vunpack.c.0.s8 %v2912
    %v2914 = vlaneseq
    %v2915 = vshrl.u32 %v2914, 7
    %v2916 = vsub.s32 %v2913, %v2915
    %v2917 = vrot.slane %v2903, %v2916
    %v2918 = vcombine.low %v2910, %v2917
    %v2919 = vcombine.low %v1490, %v1494
    %v2920 = vcombine.low %v1498, %v1502
    %v2921 = vcombine.low %v1506, %v1510
    %v2922 = vcombine.low %v1514, %v1518
    %v2924 = vunpack.c.l.s4 1966171168
    %v2925 = vunpack.c.0.s8 %v2924
    %v2926 = vlaneseq
    %v2927 = vshrl.u32 %v2926, 7
    %v2928 = vsub.s32 %v2925, %v2927
    %v2929 = vrot.slane %v2919, %v2928
    %v2931 = vunpack.c.l.s4 1966171168
    %v2932 = vunpack.c.0.s8 %v2931
    %v2933 = vlaneseq
    %v2934 = vshrl.u32 %v2933, 7
    %v2935 = vsub.s32 %v2932, %v2934
    %v2936 = vrot.slane %v2920, %v2935
    %v2938 = vunpack.c.l.s4 1966171168
    %v2939 = vunpack.c.0.s8 %v2938
    %v2940 = vlaneseq
    %v2941 = vshrl.u32 %v2940, 7
    %v2942 = vsub.s32 %v2939, %v2941
    %v2943 = vrot.slane %v2921, %v2942
    %v2945 = vunpack.c.l.s4 1966171168
    %v2946 = vunpack.c.0.s8 %v2945
    %v2947 = vlaneseq
    %v2948 = vshrl.u32 %v2947, 7
    %v2949 = vsub.s32 %v2946, %v2948
    %v2950 = vrot.slane %v2922, %v2949
    %v2951 = vcombine.low %v2929, %v2936
    %v2952 = vcombine.low %v2943, %v2950
    %v2954 = vunpack.c.l.s4 1966171168
    %v2955 = vunpack.c.0.s8 %v2954
    %v2956 = vlaneseq
    %v2957 = vshrl.u32 %v2956, 7
    %v2958 = vsub.s32 %v2955, %v2957
    %v2959 = vrot.slane %v2951, %v2958
    %v2961 = vunpack.c.l.s4 1966171168
    %v2962 = vunpack.c.0.s8 %v2961
    %v2963 = vlaneseq
    %v2964 = vshrl.u32 %v2963, 7
    %v2965 = vsub.s32 %v2962, %v2964
    %v2966 = vrot.slane %v2952, %v2965
    %v2967 = vcombine.low %v2959, %v2966
    %v2968 = vcombine.low %v1522, %v1526
    %v2969 = vcombine.low %v1530, %v1534
    %v2970 = vcombine.low %v1538, %v1542
    %v2971 = vcombine.low %v1546, %v1550
    %v2973 = vunpack.c.l.s4 1966171168
    %v2974 = vunpack.c.0.s8 %v2973
    %v2975 = vlaneseq
    %v2976 = vshrl.u32 %v2975, 7
    %v2977 = vsub.s32 %v2974, %v2976
    %v2978 = vrot.slane %v2968, %v2977
    %v2980 = vunpack.c.l.s4 1966171168
    %v2981 = vunpack.c.0.s8 %v2980
    %v2982 = vlaneseq
    %v2983 = vshrl.u32 %v2982, 7
    %v2984 = vsub.s32 %v2981, %v2983
    %v2985 = vrot.slane %v2969, %v2984
    %v2987 = vunpack.c.l.s4 1966171168
    %v2988 = vunpack.c.0.s8 %v2987
    %v2989 = vlaneseq
    %v2990 = vshrl.u32 %v2989, 7
    %v2991 = vsub.s32 %v2988, %v2990
    %v2992 = vrot.slane %v2970, %v2991
    %v2994 = vunpack.c.l.s4 1966171168
    %v2995 = vunpack.c.0.s8 %v2994
    %v2996 = vlaneseq
    %v2997 = vshrl.u32 %v2996, 7
    %v2998 = vsub.s32 %v2995, %v2997
    %v2999 = vrot.slane %v2971, %v2998
    %v3000 = vcombine.low %v2978, %v2985
    %v3001 = vcombine.low %v2992, %v2999
    %v3003 = vunpack.c.l.s4 1966171168
    %v3004 = vunpack.c.0.s8 %v3003
    %v3005 = vlaneseq
    %v3006 = vshrl.u32 %v3005, 7
    %v3007 = vsub.s32 %v3004, %v3006
    %v3008 = vrot.slane %v3000, %v3007
    %v3010 = vunpack.c.l.s4 1966171168
    %v3011 = vunpack.c.0.s8 %v3010
    %v3012 = vlaneseq
    %v3013 = vshrl.u32 %v3012, 7
    %v3014 = vsub.s32 %v3011, %v3013
    %v3015 = vrot.slane %v3001, %v3014
    %v3016 = vcombine.low %v3008, %v3015
    %v3017 = vcombine.low %v1554, %v1558
    %v3018 = vcombine.low %v1562, %v1566
    %v3019 = vcombine.low %v1570, %v1574
    %v3020 = vcombine.low %v1578, %v1582
    %v3022 = vunpack.c.l.s4 1966171168
    %v3023 = vunpack.c.0.s8 %v3022
    %v3024 = vlaneseq
    %v3025 = vshrl.u32 %v3024, 7
    %v3026 = vsub.s32 %v3023, %v3025
    %v3027 = vrot.slane %v3017, %v3026
    %v3029 = vunpack.c.l.s4 1966171168
    %v3030 = vunpack.c.0.s8 %v3029
    %v3031 = vlaneseq
    %v3032 = vshrl.u32 %v3031, 7
    %v3033 = vsub.s32 %v3030, %v3032
    %v3034 = vrot.slane %v3018, %v3033
    %v3036 = vunpack.c.l.s4 1966171168
    %v3037 = vunpack.c.0.s8 %v3036
    %v3038 = vlaneseq
    %v3039 = vshrl.u32 %v3038, 7
    %v3040 = vsub.s32 %v3037, %v3039
    %v3041 = vrot.slane %v3019, %v3040
    %v3043 = vunpack.c.l.s4 1966171168
    %v3044 = vunpack.c.0.s8 %v3043
    %v3045 = vlaneseq
    %v3046 = vshrl.u32 %v3045, 7
    %v3047 = vsub.s32 %v3044, %v3046
    %v3048 = vrot.slane %v3020, %v3047
    %v3049 = vcombine.low %v3027, %v3034
    %v3050 = vcombine.low %v3041, %v3048
    %v3052 = vunpack.c.l.s4 1966171168
    %v3053 = vunpack.c.0.s8 %v3052
    %v3054 = vlaneseq
    %v3055 = vshrl.u32 %v3054, 7
    %v3056 = vsub.s32 %v3053, %v3055
    %v3057 = vrot.slane %v3049, %v3056
    %v3059 = vunpack.c.l.s4 1966171168
    %v3060 = vunpack.c.0.s8 %v3059
    %v3061 = vlaneseq
    %v3062 = vshrl.u32 %v3061, 7
    %v3063 = vsub.s32 %v3060, %v3062
    %v3064 = vrot.slane %v3050, %v3063
    %v3065 = vcombine.low %v3057, %v3064
    %v3066 = vcombine.low %v1586, %v1590
    %v3067 = vcombine.low %v1594, %v1598
    %v3068 = vcombine.low %v1602, %v1606
    %v3069 = vcombine.low %v1610, %v1614
    %v3071 = vunpack.c.l.s4 1966171168
    %v3072 = vunpack.c.0.s8 %v3071
    %v3073 = vlaneseq
    %v3074 = vshrl.u32 %v3073, 7
    %v3075 = vsub.s32 %v3072, %v3074
    %v3076 = vrot.slane %v3066, %v3075
    %v3078 = vunpack.c.l.s4 1966171168
    %v3079 = vunpack.c.0.s8 %v3078
    %v3080 = vlaneseq
    %v3081 = vshrl.u32 %v3080, 7
    %v3082 = vsub.s32 %v3079, %v3081
    %v3083 = vrot.slane %v3067, %v3082
    %v3085 = vunpack.c.l.s4 1966171168
    %v3086 = vunpack.c.0.s8 %v3085
    %v3087 = vlaneseq
    %v3088 = vshrl.u32 %v3087, 7
    %v3089 = vsub.s32 %v3086, %v3088
    %v3090 = vrot.slane %v3068, %v3089
    %v3092 = vunpack.c.l.s4 1966171168
    %v3093 = vunpack.c.0.s8 %v3092
    %v3094 = vlaneseq
    %v3095 = vshrl.u32 %v3094, 7
    %v3096 = vsub.s32 %v3093, %v3095
    %v3097 = vrot.slane %v3069, %v3096
    %v3098 = vcombine.low %v3076, %v3083
    %v3099 = vcombine.low %v3090, %v3097
    %v3101 = vunpack.c.l.s4 1966171168
    %v3102 = vunpack.c.0.s8 %v3101
    %v3103 = vlaneseq
    %v3104 = vshrl.u32 %v3103, 7
    %v3105 = vsub.s32 %v3102, %v3104
    %v3106 = vrot.slane %v3098, %v3105
    %v3108 = vunpack.c.l.s4 1966171168
    %v3109 = vunpack.c.0.s8 %v3108
    %v3110 = vlaneseq
    %v3111 = vshrl.u32 %v3110, 7
    %v3112 = vsub.s32 %v3109, %v3111
    %v3113 = vrot.slane %v3099, %v3112
    %v3114 = vcombine.low %v3106, %v3113
    %v3115 = vcombine.low %v1618, %v1622
    %v3116 = vcombine.low %v1626, %v1630
    %v3117 = vcombine.low %v1634, %v1638
    %v3118 = vcombine.low %v1642, %v1646
    %v3120 = vunpack.c.l.s4 1966171168
    %v3121 = vunpack.c.0.s8 %v3120
    %v3122 = vlaneseq
    %v3123 = vshrl.u32 %v3122, 7
    %v3124 = vsub.s32 %v3121, %v3123
    %v3125 = vrot.slane %v3115, %v3124
    %v3127 = vunpack.c.l.s4 1966171168
    %v3128 = vunpack.c.0.s8 %v3127
    %v3129 = vlaneseq
    %v3130 = vshrl.u32 %v3129, 7
    %v3131 = vsub.s32 %v3128, %v3130
    %v3132 = vrot.slane %v3116, %v3131
    %v3134 = vunpack.c.l.s4 1966171168
    %v3135 = vunpack.c.0.s8 %v3134
    %v3136 = vlaneseq
    %v3137 = vshrl.u32 %v3136, 7
    %v3138 = vsub.s32 %v3135, %v3137
    %v3139 = vrot.slane %v3117, %v3138
    %v3141 = vunpack.c.l.s4 1966171168
    %v3142 = vunpack.c.0.s8 %v3141
    %v3143 = vlaneseq
    %v3144 = vshrl.u32 %v3143, 7
    %v3145 = vsub.s32 %v3142, %v3144
    %v3146 = vrot.slane %v3118, %v3145
    %v3147 = vcombine.low %v3125, %v3132
    %v3148 = vcombine.low %v3139, %v3146
    %v3150 = vunpack.c.l.s4 1966171168
    %v3151 = vunpack.c.0.s8 %v3150
    %v3152 = vlaneseq
    %v3153 = vshrl.u32 %v3152, 7
    %v3154 = vsub.s32 %v3151, %v3153
    %v3155 = vrot.slane %v3147, %v3154
    %v3157 = vunpack.c.l.s4 1966171168
    %v3158 = vunpack.c.0.s8 %v3157
    %v3159 = vlaneseq
    %v3160 = vshrl.u32 %v3159, 7
    %v3161 = vsub.s32 %v3158, %v3160
    %v3162 = vrot.slane %v3148, %v3161
    %v3163 = vcombine.low %v3155, %v3162
    %v3164 = vcombine.low %v1650, %v1654
    %v3165 = vcombine.low %v1658, %v1662
    %v3166 = vcombine.low %v1666, %v1670
    %v3167 = vcombine.low %v1674, %v1678
    %v3169 = vunpack.c.l.s4 1966171168
    %v3170 = vunpack.c.0.s8 %v3169
    %v3171 = vlaneseq
    %v3172 = vshrl.u32 %v3171, 7
    %v3173 = vsub.s32 %v3170, %v3172
    %v3174 = vrot.slane %v3164, %v3173
    %v3176 = vunpack.c.l.s4 1966171168
    %v3177 = vunpack.c.0.s8 %v3176
    %v3178 = vlaneseq
    %v3179 = vshrl.u32 %v3178, 7
    %v3180 = vsub.s32 %v3177, %v3179
    %v3181 = vrot.slane %v3165, %v3180
    %v3183 = vunpack.c.l.s4 1966171168
    %v3184 = vunpack.c.0.s8 %v3183
    %v3185 = vlaneseq
    %v3186 = vshrl.u32 %v3185, 7
    %v3187 = vsub.s32 %v3184, %v3186
    %v3188 = vrot.slane %v3166, %v3187
    %v3190 = vunpack.c.l.s4 1966171168
    %v3191 = vunpack.c.0.s8 %v3190
    %v3192 = vlaneseq
    %v3193 = vshrl.u32 %v3192, 7
    %v3194 = vsub.s32 %v3191, %v3193
    %v3195 = vrot.slane %v3167, %v3194
    %v3196 = vcombine.low %v3174, %v3181
    %v3197 = vcombine.low %v3188, %v3195
    %v3199 = vunpack.c.l.s4 1966171168
    %v3200 = vunpack.c.0.s8 %v3199
    %v3201 = vlaneseq
    %v3202 = vshrl.u32 %v3201, 7
    %v3203 = vsub.s32 %v3200, %v3202
    %v3204 = vrot.slane %v3196, %v3203
    %v3206 = vunpack.c.l.s4 1966171168
    %v3207 = vunpack.c.0.s8 %v3206
    %v3208 = vlaneseq
    %v3209 = vshrl.u32 %v3208, 7
    %v3210 = vsub.s32 %v3207, %v3209
    %v3211 = vrot.slane %v3197, %v3210
    %v3212 = vcombine.low %v3204, %v3211
    %v3213 = vcombine.low %v1682, %v1686
    %v3214 = vcombine.low %v1690, %v1694
    %v3215 = vcombine.low %v1698, %v1702
    %v3216 = vcombine.low %v1706, %v1710
    %v3218 = vunpack.c.l.s4 1966171168
    %v3219 = vunpack.c.0.s8 %v3218
    %v3220 = vlaneseq
    %v3221 = vshrl.u32 %v3220, 7
    %v3222 = vsub.s32 %v3219, %v3221
    %v3223 = vrot.slane %v3213, %v3222
    %v3225 = vunpack.c.l.s4 1966171168
    %v3226 = vunpack.c.0.s8 %v3225
    %v3227 = vlaneseq
    %v3228 = vshrl.u32 %v3227, 7
    %v3229 = vsub.s32 %v3226, %v3228
    %v3230 = vrot.slane %v3214, %v3229
    %v3232 = vunpack.c.l.s4 1966171168
    %v3233 = vunpack.c.0.s8 %v3232
    %v3234 = vlaneseq
    %v3235 = vshrl.u32 %v3234, 7
    %v3236 = vsub.s32 %v3233, %v3235
    %v3237 = vrot.slane %v3215, %v3236
    %v3239 = vunpack.c.l.s4 1966171168
    %v3240 = vunpack.c.0.s8 %v3239
    %v3241 = vlaneseq
    %v3242 = vshrl.u32 %v3241, 7
    %v3243 = vsub.s32 %v3240, %v3242
    %v3244 = vrot.slane %v3216, %v3243
    %v3245 = vcombine.low %v3223, %v3230
    %v3246 = vcombine.low %v3237, %v3244
    %v3248 = vunpack.c.l.s4 1966171168
    %v3249 = vunpack.c.0.s8 %v3248
    %v3250 = vlaneseq
    %v3251 = vshrl.u32 %v3250, 7
    %v3252 = vsub.s32 %v3249, %v3251
    %v3253 = vrot.slane %v3245, %v3252
    %v3255 = vunpack.c.l.s4 1966171168
    %v3256 = vunpack.c.0.s8 %v3255
    %v3257 = vlaneseq
    %v3258 = vshrl.u32 %v3257, 7
    %v3259 = vsub.s32 %v3256, %v3258
    %v3260 = vrot.slane %v3246, %v3259
    %v3261 = vcombine.low %v3253, %v3260
    %v3262 = vcombine.low %v1714, %v1718
    %v3263 = vcombine.low %v1722, %v1726
    %v3264 = vcombine.low %v1730, %v1734
    %v3265 = vcombine.low %v1738, %v1742
    %v3267 = vunpack.c.l.s4 1966171168
    %v3268 = vunpack.c.0.s8 %v3267
    %v3269 = vlaneseq
    %v3270 = vshrl.u32 %v3269, 7
    %v3271 = vsub.s32 %v3268, %v3270
    %v3272 = vrot.slane %v3262, %v3271
    %v3274 = vunpack.c.l.s4 1966171168
    %v3275 = vunpack.c.0.s8 %v3274
    %v3276 = vlaneseq
    %v3277 = vshrl.u32 %v3276, 7
    %v3278 = vsub.s32 %v3275, %v3277
    %v3279 = vrot.slane %v3263, %v3278
    %v3281 = vunpack.c.l.s4 1966171168
    %v3282 = vunpack.c.0.s8 %v3281
    %v3283 = vlaneseq
    %v3284 = vshrl.u32 %v3283, 7
    %v3285 = vsub.s32 %v3282, %v3284
    %v3286 = vrot.slane %v3264, %v3285
    %v3288 = vunpack.c.l.s4 1966171168
    %v3289 = vunpack.c.0.s8 %v3288
    %v3290 = vlaneseq
    %v3291 = vshrl.u32 %v3290, 7
    %v3292 = vsub.s32 %v3289, %v3291
    %v3293 = vrot.slane %v3265, %v3292
    %v3294 = vcombine.low %v3272, %v3279
    %v3295 = vcombine.low %v3286, %v3293
    %v3297 = vunpack.c.l.s4 1966171168
    %v3298 = vunpack.c.0.s8 %v3297
    %v3299 = vlaneseq
    %v3300 = vshrl.u32 %v3299, 7
    %v3301 = vsub.s32 %v3298, %v3300
    %v3302 = vrot.slane %v3294, %v3301
    %v3304 = vunpack.c.l.s4 1966171168
    %v3305 = vunpack.c.0.s8 %v3304
    %v3306 = vlaneseq
    %v3307 = vshrl.u32 %v3306, 7
    %v3308 = vsub.s32 %v3305, %v3307
    %v3309 = vrot.slane %v3295, %v3308
    %v3310 = vcombine.low %v3302, %v3309
    %3311 = vset.pattern.permute.xlu0 0
    %3312 = vperm.xlu0 %3311, %v1791
    %v3313 = vpop.permute.xlu0 %3312
    %3314 = vset.pattern.permute.xlu0 0
    %3315 = vperm.xlu0 %3314, %v1840
    %v3316 = vpop.permute.xlu0 %3315
    %3317 = vset.pattern.permute.xlu0 0
    %3318 = vperm.xlu0 %3317, %v1889
    %v3319 = vpop.permute.xlu0 %3318
    %3320 = vset.pattern.permute.xlu0 0
    %3321 = vperm.xlu0 %3320, %v1938
    %v3322 = vpop.permute.xlu0 %3321
    %3323 = vset.pattern.permute.xlu0 0
    %3324 = vperm.xlu0 %3323, %v1987
    %v3325 = vpop.permute.xlu0 %3324
    %3326 = vset.pattern.permute.xlu0 0
    %3327 = vperm.xlu0 %3326, %v2036
    %v3328 = vpop.permute.xlu0 %3327
    %3329 = vset.pattern.permute.xlu0 0
    %3330 = vperm.xlu0 %3329, %v2085
    %v3331 = vpop.permute.xlu0 %3330
    %3332 = vset.pattern.permute.xlu0 0
    %3333 = vperm.xlu0 %3332, %v2134
    %v3334 = vpop.permute.xlu0 %3333
    %3335 = vset.pattern.permute.xlu0 0
    %3336 = vperm.xlu0 %3335, %v2183
    %v3337 = vpop.permute.xlu0 %3336
    %3338 = vset.pattern.permute.xlu0 0
    %3339 = vperm.xlu0 %3338, %v2232
    %v3340 = vpop.permute.xlu0 %3339
    %3341 = vset.pattern.permute.xlu0 0
    %3342 = vperm.xlu0 %3341, %v2281
    %v3343 = vpop.permute.xlu0 %3342
    %3344 = vset.pattern.permute.xlu0 0
    %3345 = vperm.xlu0 %3344, %v2330
    %v3346 = vpop.permute.xlu0 %3345
    %3347 = vset.pattern.permute.xlu0 0
    %3348 = vperm.xlu0 %3347, %v2379
    %v3349 = vpop.permute.xlu0 %3348
    %3350 = vset.pattern.permute.xlu0 0
    %3351 = vperm.xlu0 %3350, %v2428
    %v3352 = vpop.permute.xlu0 %3351
    %3353 = vset.pattern.permute.xlu0 0
    %3354 = vperm.xlu0 %3353, %v2477
    %v3355 = vpop.permute.xlu0 %3354
    %3356 = vset.pattern.permute.xlu0 0
    %3357 = vperm.xlu0 %3356, %v2526
    %v3358 = vpop.permute.xlu0 %3357
    %3359 = vset.pattern.permute.xlu0 0
    %3360 = vperm.xlu0 %3359, %v2575
    %v3361 = vpop.permute.xlu0 %3360
    %3362 = vset.pattern.permute.xlu0 0
    %3363 = vperm.xlu0 %3362, %v2624
    %v3364 = vpop.permute.xlu0 %3363
    %3365 = vset.pattern.permute.xlu0 0
    %3366 = vperm.xlu0 %3365, %v2673
    %v3367 = vpop.permute.xlu0 %3366
    %3368 = vset.pattern.permute.xlu0 0
    %3369 = vperm.xlu0 %3368, %v2722
    %v3370 = vpop.permute.xlu0 %3369
    %3371 = vset.pattern.permute.xlu0 0
    %3372 = vperm.xlu0 %3371, %v2771
    %v3373 = vpop.permute.xlu0 %3372
    %3374 = vset.pattern.permute.xlu0 0
    %3375 = vperm.xlu0 %3374, %v2820
    %v3376 = vpop.permute.xlu0 %3375
    %3377 = vset.pattern.permute.xlu0 0
    %3378 = vperm.xlu0 %3377, %v2869
    %v3379 = vpop.permute.xlu0 %3378
    %3380 = vset.pattern.permute.xlu0 0
    %3381 = vperm.xlu0 %3380, %v2918
    %v3382 = vpop.permute.xlu0 %3381
    %3383 = vset.pattern.permute.xlu0 0
    %3384 = vperm.xlu0 %3383, %v2967
    %v3385 = vpop.permute.xlu0 %3384
    %3386 = vset.pattern.permute.xlu0 0
    %3387 = vperm.xlu0 %3386, %v3016
    %v3388 = vpop.permute.xlu0 %3387
    %3389 = vset.pattern.permute.xlu0 0
    %3390 = vperm.xlu0 %3389, %v3065
    %v3391 = vpop.permute.xlu0 %3390
    %3392 = vset.pattern.permute.xlu0 0
    %3393 = vperm.xlu0 %3392, %v3114
    %v3394 = vpop.permute.xlu0 %3393
    %3395 = vset.pattern.permute.xlu0 0
    %3396 = vperm.xlu0 %3395, %v3163
    %v3397 = vpop.permute.xlu0 %3396
    %3398 = vset.pattern.permute.xlu0 0
    %3399 = vperm.xlu0 %3398, %v3212
    %v3400 = vpop.permute.xlu0 %3399
    %3401 = vset.pattern.permute.xlu0 0
    %3402 = vperm.xlu0 %3401, %v3261
    %v3403 = vpop.permute.xlu0 %3402
    %3404 = vset.pattern.permute.xlu0 0
    %3405 = vperm.xlu0 %3404, %v3310
    %v3406 = vpop.permute.xlu0 %3405
    %v3407 = vlaneseq
    %v3408 = vshrl.u32 %v3407, 7
    %v3409 = vsub.s32 %v461, %v3408
    %v3410 = vrot.slane %v3313, %v3409
    %v3411 = vadd.s32 %v461, 4294967288
    %v3412 = vlaneseq
    %v3413 = vshrl.u32 %v3412, 7
    %v3414 = vsub.s32 %v3411, %v3413
    %v3415 = vrot.slane %v3316, %v3414
    %vm3416 = vcmask 130112
    %v3417 = vsel %vm3416, %v3415, %v3410
    %v3418 = vadd.s32 %v461, 4294967280
    %v3419 = vlaneseq
    %v3420 = vshrl.u32 %v3419, 7
    %v3421 = vsub.s32 %v3418, %v3420
    %v3422 = vrot.slane %v3319, %v3421
    %vm3423 = vcmask 195712
    %v3424 = vsel %vm3423, %v3422, %v3417
    %v3425 = vadd.s32 %v461, 4294967272
    %v3426 = vlaneseq
    %v3427 = vshrl.u32 %v3426, 7
    %v3428 = vsub.s32 %v3425, %v3427
    %v3429 = vrot.slane %v3322, %v3428
    %vm3430 = vcmask 261312
    %v3431 = vsel %vm3430, %v3429, %v3424
    %v3432 = vadd.s32 %v461, 4294967264
    %v3433 = vlaneseq
    %v3434 = vshrl.u32 %v3433, 7
    %v3435 = vsub.s32 %v3432, %v3434
    %v3436 = vrot.slane %v3325, %v3435
    %vm3437 = vcmask 326912
    %v3438 = vsel %vm3437, %v3436, %v3431
    %v3439 = vadd.s32 %v461, 4294967256
    %v3440 = vlaneseq
    %v3441 = vshrl.u32 %v3440, 7
    %v3442 = vsub.s32 %v3439, %v3441
    %v3443 = vrot.slane %v3328, %v3442
    %vm3444 = vcmask 392512
    %v3445 = vsel %vm3444, %v3443, %v3438
    %v3446 = vadd.s32 %v461, 4294967248
    %v3447 = vlaneseq
    %v3448 = vshrl.u32 %v3447, 7
    %v3449 = vsub.s32 %v3446, %v3448
    %v3450 = vrot.slane %v3331, %v3449
    %vm3451 = vcmask 458112
    %v3452 = vsel %vm3451, %v3450, %v3445
    %v3453 = vadd.s32 %v461, 4294967240
    %v3454 = vlaneseq
    %v3455 = vshrl.u32 %v3454, 7
    %v3456 = vsub.s32 %v3453, %v3455
    %v3457 = vrot.slane %v3334, %v3456
    %vm3458 = vcmask 523712
    %v3459 = vsel %vm3458, %v3457, %v3452
    %v3460 = vadd.s32 %v461, 4294967232
    %v3461 = vlaneseq
    %v3462 = vshrl.u32 %v3461, 7
    %v3463 = vsub.s32 %v3460, %v3462
    %v3464 = vrot.slane %v3337, %v3463
    %vm3465 = vcmask 589312
    %v3466 = vsel %vm3465, %v3464, %v3459
    %v3467 = vadd.s32 %v461, 4294967224
    %v3468 = vlaneseq
    %v3469 = vshrl.u32 %v3468, 7
    %v3470 = vsub.s32 %v3467, %v3469
    %v3471 = vrot.slane %v3340, %v3470
    %vm3472 = vcmask 654912
    %v3473 = vsel %vm3472, %v3471, %v3466
    %v3474 = vadd.s32 %v461, 4294967216
    %v3475 = vlaneseq
    %v3476 = vshrl.u32 %v3475, 7
    %v3477 = vsub.s32 %v3474, %v3476
    %v3478 = vrot.slane %v3343, %v3477
    %vm3479 = vcmask 720512
    %v3480 = vsel %vm3479, %v3478, %v3473
    %v3481 = vadd.s32 %v461, 4294967208
    %v3482 = vlaneseq
    %v3483 = vshrl.u32 %v3482, 7
    %v3484 = vsub.s32 %v3481, %v3483
    %v3485 = vrot.slane %v3346, %v3484
    %vm3486 = vcmask 786112
    %v3487 = vsel %vm3486, %v3485, %v3480
    %v3488 = vadd.s32 %v461, 4294967200
    %v3489 = vlaneseq
    %v3490 = vshrl.u32 %v3489, 7
    %v3491 = vsub.s32 %v3488, %v3490
    %v3492 = vrot.slane %v3349, %v3491
    %vm3493 = vcmask 851712
    %v3494 = vsel %vm3493, %v3492, %v3487
    %v3495 = vadd.s32 %v461, 4294967192
    %v3496 = vlaneseq
    %v3497 = vshrl.u32 %v3496, 7
    %v3498 = vsub.s32 %v3495, %v3497
    %v3499 = vrot.slane %v3352, %v3498
    %vm3500 = vcmask 917312
    %v3501 = vsel %vm3500, %v3499, %v3494
    %v3502 = vadd.s32 %v461, 4294967184
    %v3503 = vlaneseq
    %v3504 = vshrl.u32 %v3503, 7
    %v3505 = vsub.s32 %v3502, %v3504
    %v3506 = vrot.slane %v3355, %v3505
    %vm3507 = vcmask 982912
    %v3508 = vsel %vm3507, %v3506, %v3501
    %v3509 = vadd.s32 %v461, 4294967176
    %v3510 = vlaneseq
    %v3511 = vshrl.u32 %v3510, 7
    %v3512 = vsub.s32 %v3509, %v3511
    %v3513 = vrot.slane %v3358, %v3512
    %vm3514 = vcmask 1048512
    %v3515 = vsel %vm3514, %v3513, %v3508
    %v3516 = vlaneseq
    %v3517 = vshrl.u32 %v3516, 7
    %v3518 = vsub.s32 %v461, %v3517
    %v3519 = vrot.slane %v3361, %v3518
    %v3520 = vlaneseq
    %v3521 = vshrl.u32 %v3520, 7
    %v3522 = vsub.s32 %v3411, %v3521
    %v3523 = vrot.slane %v3364, %v3522
    %v3524 = vsel %vm3416, %v3523, %v3519
    %v3525 = vlaneseq
    %v3526 = vshrl.u32 %v3525, 7
    %v3527 = vsub.s32 %v3418, %v3526
    %v3528 = vrot.slane %v3367, %v3527
    %v3529 = vsel %vm3423, %v3528, %v3524
    %v3530 = vlaneseq
    %v3531 = vshrl.u32 %v3530, 7
    %v3532 = vsub.s32 %v3425, %v3531
    %v3533 = vrot.slane %v3370, %v3532
    %v3534 = vsel %vm3430, %v3533, %v3529
    %v3535 = vlaneseq
    %v3536 = vshrl.u32 %v3535, 7
    %v3537 = vsub.s32 %v3432, %v3536
    %v3538 = vrot.slane %v3373, %v3537
    %v3539 = vsel %vm3437, %v3538, %v3534
    %v3540 = vlaneseq
    %v3541 = vshrl.u32 %v3540, 7
    %v3542 = vsub.s32 %v3439, %v3541
    %v3543 = vrot.slane %v3376, %v3542
    %v3544 = vsel %vm3444, %v3543, %v3539
    %v3545 = vlaneseq
    %v3546 = vshrl.u32 %v3545, 7
    %v3547 = vsub.s32 %v3446, %v3546
    %v3548 = vrot.slane %v3379, %v3547
    %v3549 = vsel %vm3451, %v3548, %v3544
    %v3550 = vlaneseq
    %v3551 = vshrl.u32 %v3550, 7
    %v3552 = vsub.s32 %v3453, %v3551
    %v3553 = vrot.slane %v3382, %v3552
    %v3554 = vsel %vm3458, %v3553, %v3549
    %v3555 = vlaneseq
    %v3556 = vshrl.u32 %v3555, 7
    %v3557 = vsub.s32 %v3460, %v3556
    %v3558 = vrot.slane %v3385, %v3557
    %v3559 = vsel %vm3465, %v3558, %v3554
    %v3560 = vlaneseq
    %v3561 = vshrl.u32 %v3560, 7
    %v3562 = vsub.s32 %v3467, %v3561
    %v3563 = vrot.slane %v3388, %v3562
    %v3564 = vsel %vm3472, %v3563, %v3559
    %v3565 = vlaneseq
    %v3566 = vshrl.u32 %v3565, 7
    %v3567 = vsub.s32 %v3474, %v3566
    %v3568 = vrot.slane %v3391, %v3567
    %v3569 = vsel %vm3479, %v3568, %v3564
    %v3570 = vlaneseq
    %v3571 = vshrl.u32 %v3570, 7
    %v3572 = vsub.s32 %v3481, %v3571
    %v3573 = vrot.slane %v3394, %v3572
    %v3574 = vsel %vm3486, %v3573, %v3569
    %v3575 = vlaneseq
    %v3576 = vshrl.u32 %v3575, 7
    %v3577 = vsub.s32 %v3488, %v3576
    %v3578 = vrot.slane %v3397, %v3577
    %v3579 = vsel %vm3493, %v3578, %v3574
    %v3580 = vlaneseq
    %v3581 = vshrl.u32 %v3580, 7
    %v3582 = vsub.s32 %v3495, %v3581
    %v3583 = vrot.slane %v3400, %v3582
    %v3584 = vsel %vm3500, %v3583, %v3579
    %v3585 = vlaneseq
    %v3586 = vshrl.u32 %v3585, 7
    %v3587 = vsub.s32 %v3502, %v3586
    %v3588 = vrot.slane %v3403, %v3587
    %v3589 = vsel %vm3507, %v3588, %v3584
    %v3590 = vlaneseq
    %v3591 = vshrl.u32 %v3590, 7
    %v3592 = vsub.s32 %v3509, %v3591
    %v3593 = vrot.slane %v3406, %v3592
    %v3594 = vsel %vm3514, %v3593, %v3589
    %v3595 = vcombine.low %v3515, %v3594
    %v3597 = vunpack.c.l.s4 1966171168
    %v3598 = vunpack.c.0.s8 %v3597
    %v3599 = vlaneseq
    %v3600 = vshrl.u32 %v3599, 7
    %v3601 = vsub.s32 %v3598, %v3600
    %v3602 = vrot.slane %v3595, %v3601
    %v3604 = vunpack.c.l.s4 1966171168
    %v3605 = vunpack.c.0.s8 %v3604
    %v3606 = vlaneseq
    %v3607 = vshrl.u32 %v3606, 7
    %v3608 = vsub.s32 %v3605, %v3607
    %v3609 = vrot.slane %v3602, %v3608
    %v3610 = vlaneseq
    %vm3611 = vcmp.ge.s32.totalorder %v3610, 0
    %vm3612 = vcmp.lt.s32.totalorder %v3610, 256
    %vm3613 = vmand %vm3611, %vm3612
    %3614 = vst.msk [vmem:[#allocation9] sm:$0x3] %vm3613, %v3609
    %vm3615 = vcmp.eq.s32.totalorder %v461, %v470
    %vm3616 = vcmp.eq.s32.totalorder %v462, %v470
    %vm3617 = vcmp.eq.s32.totalorder %v461, %v478
    %vm3618 = vcmp.eq.s32.totalorder %v462, %v478
    %vm3619 = vcmp.eq.s32.totalorder %v461, %v486
    %vm3620 = vcmp.eq.s32.totalorder %v462, %v486
    %vm3621 = vcmp.eq.s32.totalorder %v461, %v494
    %vm3622 = vcmp.eq.s32.totalorder %v462, %v494
    %vm3623 = vcmp.eq.s32.totalorder %v461, %v502
    %vm3624 = vcmp.eq.s32.totalorder %v462, %v502
    %vm3625 = vcmp.eq.s32.totalorder %v461, %v510
    %vm3626 = vcmp.eq.s32.totalorder %v462, %v510
    %vm3627 = vcmp.eq.s32.totalorder %v461, %v518
    %vm3628 = vcmp.eq.s32.totalorder %v462, %v518
    %vm3629 = vcmp.eq.s32.totalorder %v461, %v526
    %vm3630 = vcmp.eq.s32.totalorder %v462, %v526
    %vm3631 = vcmp.eq.s32.totalorder %v461, %v534
    %vm3632 = vcmp.eq.s32.totalorder %v462, %v534
    %vm3633 = vcmp.eq.s32.totalorder %v461, %v542
    %vm3634 = vcmp.eq.s32.totalorder %v462, %v542
    %vm3635 = vcmp.eq.s32.totalorder %v461, %v550
    %vm3636 = vcmp.eq.s32.totalorder %v462, %v550
    %vm3637 = vcmp.eq.s32.totalorder %v461, %v558
    %vm3638 = vcmp.eq.s32.totalorder %v462, %v558
    %vm3639 = vcmp.eq.s32.totalorder %v461, %v566
    %vm3640 = vcmp.eq.s32.totalorder %v462, %v566
    %vm3641 = vcmp.eq.s32.totalorder %v461, %v574
    %vm3642 = vcmp.eq.s32.totalorder %v462, %v574
    %vm3643 = vcmp.eq.s32.totalorder %v461, %v582
    %vm3644 = vcmp.eq.s32.totalorder %v462, %v582
    %vm3645 = vcmp.eq.s32.totalorder %v461, %v590
    %vm3646 = vcmp.eq.s32.totalorder %v462, %v590
    %vm3647 = vcmp.eq.s32.totalorder %v461, %v598
    %vm3648 = vcmp.eq.s32.totalorder %v462, %v598
    %vm3649 = vcmp.eq.s32.totalorder %v461, %v606
    %vm3650 = vcmp.eq.s32.totalorder %v462, %v606
    %vm3651 = vcmp.eq.s32.totalorder %v461, %v614
    %vm3652 = vcmp.eq.s32.totalorder %v462, %v614
    %vm3653 = vcmp.eq.s32.totalorder %v461, %v622
    %vm3654 = vcmp.eq.s32.totalorder %v462, %v622
    %vm3655 = vcmp.eq.s32.totalorder %v461, %v630
    %vm3656 = vcmp.eq.s32.totalorder %v462, %v630
    %vm3657 = vcmp.eq.s32.totalorder %v461, %v638
    %vm3658 = vcmp.eq.s32.totalorder %v462, %v638
    %vm3659 = vcmp.eq.s32.totalorder %v461, %v646
    %vm3660 = vcmp.eq.s32.totalorder %v462, %v646
    %vm3661 = vcmp.eq.s32.totalorder %v461, %v654
    %vm3662 = vcmp.eq.s32.totalorder %v462, %v654
    %vm3663 = vcmp.eq.s32.totalorder %v461, %v662
    %vm3664 = vcmp.eq.s32.totalorder %v462, %v662
    %vm3665 = vcmp.eq.s32.totalorder %v461, %v670
    %vm3666 = vcmp.eq.s32.totalorder %v462, %v670
    %vm3667 = vcmp.eq.s32.totalorder %v461, %v678
    %vm3668 = vcmp.eq.s32.totalorder %v462, %v678
    %vm3669 = vcmp.eq.s32.totalorder %v461, %v686
    %vm3670 = vcmp.eq.s32.totalorder %v462, %v686
    %vm3671 = vcmp.eq.s32.totalorder %v461, %v694
    %vm3672 = vcmp.eq.s32.totalorder %v462, %v694
    %vm3673 = vcmp.eq.s32.totalorder %v461, %v702
    %vm3674 = vcmp.eq.s32.totalorder %v462, %v702
    %vm3675 = vcmp.eq.s32.totalorder %v461, %v710
    %vm3676 = vcmp.eq.s32.totalorder %v462, %v710
    %vm3677 = vcmp.eq.s32.totalorder %v461, %v718
    %vm3678 = vcmp.eq.s32.totalorder %v462, %v718
    %v3679 = vsel %vm3615, 1, 0
    %v3680 = vsel %vm3616, 1, 0
    %v3681 = vsel %vm3617, 1, 0
    %v3682 = vsel %vm3618, 1, 0
    %v3683 = vsel %vm3619, 1, 0
    %v3684 = vsel %vm3620, 1, 0
    %v3685 = vsel %vm3621, 1, 0
    %v3686 = vsel %vm3622, 1, 0
    %v3687 = vsel %vm3623, 1, 0
    %v3688 = vsel %vm3624, 1, 0
    %v3689 = vsel %vm3625, 1, 0
    %v3690 = vsel %vm3626, 1, 0
    %v3691 = vsel %vm3627, 1, 0
    %v3692 = vsel %vm3628, 1, 0
    %v3693 = vsel %vm3629, 1, 0
    %v3694 = vsel %vm3630, 1, 0
    %v3695 = vsel %vm3631, 1, 0
    %v3696 = vsel %vm3632, 1, 0
    %v3697 = vsel %vm3633, 1, 0
    %v3698 = vsel %vm3634, 1, 0
    %v3699 = vsel %vm3635, 1, 0
    %v3700 = vsel %vm3636, 1, 0
    %v3701 = vsel %vm3637, 1, 0
    %v3702 = vsel %vm3638, 1, 0
    %v3703 = vsel %vm3639, 1, 0
    %v3704 = vsel %vm3640, 1, 0
    %v3705 = vsel %vm3641, 1, 0
    %v3706 = vsel %vm3642, 1, 0
    %v3707 = vsel %vm3643, 1, 0
    %v3708 = vsel %vm3644, 1, 0
    %v3709 = vsel %vm3645, 1, 0
    %v3710 = vsel %vm3646, 1, 0
    %v3711 = vsel %vm3647, 1, 0
    %v3712 = vsel %vm3648, 1, 0
    %v3713 = vsel %vm3649, 1, 0
    %v3714 = vsel %vm3650, 1, 0
    %v3715 = vsel %vm3651, 1, 0
    %v3716 = vsel %vm3652, 1, 0
    %v3717 = vsel %vm3653, 1, 0
    %v3718 = vsel %vm3654, 1, 0
    %v3719 = vsel %vm3655, 1, 0
    %v3720 = vsel %vm3656, 1, 0
    %v3721 = vsel %vm3657, 1, 0
    %v3722 = vsel %vm3658, 1, 0
    %v3723 = vsel %vm3659, 1, 0
    %v3724 = vsel %vm3660, 1, 0
    %v3725 = vsel %vm3661, 1, 0
    %v3726 = vsel %vm3662, 1, 0
    %v3727 = vsel %vm3663, 1, 0
    %v3728 = vsel %vm3664, 1, 0
    %v3729 = vsel %vm3665, 1, 0
    %v3730 = vsel %vm3666, 1, 0
    %v3731 = vsel %vm3667, 1, 0
    %v3732 = vsel %vm3668, 1, 0
    %v3733 = vsel %vm3669, 1, 0
    %v3734 = vsel %vm3670, 1, 0
    %v3735 = vsel %vm3671, 1, 0
    %v3736 = vsel %vm3672, 1, 0
    %v3737 = vsel %vm3673, 1, 0
    %v3738 = vsel %vm3674, 1, 0
    %v3739 = vsel %vm3675, 1, 0
    %v3740 = vsel %vm3676, 1, 0
    %v3741 = vsel %vm3677, 1, 0
    %v3742 = vsel %vm3678, 1, 0
    %v3743 = vcvt.s32.f32 %v3679
    %v3744 = vcvt.s32.f32 %v3680
    %v3745 = vcvt.s32.f32 %v3681
    %v3746 = vcvt.s32.f32 %v3682
    %v3747 = vcvt.s32.f32 %v3683
    %v3748 = vcvt.s32.f32 %v3684
    %v3749 = vcvt.s32.f32 %v3685
    %v3750 = vcvt.s32.f32 %v3686
    %v3751 = vcvt.s32.f32 %v3687
    %v3752 = vcvt.s32.f32 %v3688
    %v3753 = vcvt.s32.f32 %v3689
    %v3754 = vcvt.s32.f32 %v3690
    %v3755 = vcvt.s32.f32 %v3691
    %v3756 = vcvt.s32.f32 %v3692
    %v3757 = vcvt.s32.f32 %v3693
    %v3758 = vcvt.s32.f32 %v3694
    %v3759 = vcvt.s32.f32 %v3695
    %v3760 = vcvt.s32.f32 %v3696
    %v3761 = vcvt.s32.f32 %v3697
    %v3762 = vcvt.s32.f32 %v3698
    %v3763 = vcvt.s32.f32 %v3699
    %v3764 = vcvt.s32.f32 %v3700
    %v3765 = vcvt.s32.f32 %v3701
    %v3766 = vcvt.s32.f32 %v3702
    %v3767 = vcvt.s32.f32 %v3703
    %v3768 = vcvt.s32.f32 %v3704
    %v3769 = vcvt.s32.f32 %v3705
    %v3770 = vcvt.s32.f32 %v3706
    %v3771 = vcvt.s32.f32 %v3707
    %v3772 = vcvt.s32.f32 %v3708
    %v3773 = vcvt.s32.f32 %v3709
    %v3774 = vcvt.s32.f32 %v3710
    %v3775 = vcvt.s32.f32 %v3711
    %v3776 = vcvt.s32.f32 %v3712
    %v3777 = vcvt.s32.f32 %v3713
    %v3778 = vcvt.s32.f32 %v3714
    %v3779 = vcvt.s32.f32 %v3715
    %v3780 = vcvt.s32.f32 %v3716
    %v3781 = vcvt.s32.f32 %v3717
    %v3782 = vcvt.s32.f32 %v3718
    %v3783 = vcvt.s32.f32 %v3719
    %v3784 = vcvt.s32.f32 %v3720
    %v3785 = vcvt.s32.f32 %v3721
    %v3786 = vcvt.s32.f32 %v3722
    %v3787 = vcvt.s32.f32 %v3723
    %v3788 = vcvt.s32.f32 %v3724
    %v3789 = vcvt.s32.f32 %v3725
    %v3790 = vcvt.s32.f32 %v3726
    %v3791 = vcvt.s32.f32 %v3727
    %v3792 = vcvt.s32.f32 %v3728
    %v3793 = vcvt.s32.f32 %v3729
    %v3794 = vcvt.s32.f32 %v3730
    %v3795 = vcvt.s32.f32 %v3731
    %v3796 = vcvt.s32.f32 %v3732
    %v3797 = vcvt.s32.f32 %v3733
    %v3798 = vcvt.s32.f32 %v3734
    %v3799 = vcvt.s32.f32 %v3735
    %v3800 = vcvt.s32.f32 %v3736
    %v3801 = vcvt.s32.f32 %v3737
    %v3802 = vcvt.s32.f32 %v3738
    %v3803 = vcvt.s32.f32 %v3739
    %v3804 = vcvt.s32.f32 %v3740
    %v3805 = vcvt.s32.f32 %v3741
    %v3806 = vcvt.s32.f32 %v3742
    %v3807 = vld [vmem:[#allocation7] sm:$0xff]
    %v3808 = vld [vmem:[#allocation7 + $0x8] sm:$0xff]
    %v3809 = vld [vmem:[#allocation7 + $0x10] sm:$0xff]
    %v3810 = vld [vmem:[#allocation7 + $0x18] sm:$0xff]
    %v3811 = vld [vmem:[#allocation7 + $0x20] sm:$0xff]
    %v3812 = vld [vmem:[#allocation7 + $0x28] sm:$0xff]
    %v3813 = vld [vmem:[#allocation7 + $0x30] sm:$0xff]
    %v3814 = vld [vmem:[#allocation7 + $0x38] sm:$0xff]
    %v3815 = vld [vmem:[#allocation7 + $0x40] sm:$0xff]
    %v3816 = vld [vmem:[#allocation7 + $0x48] sm:$0xff]
    %v3817 = vld [vmem:[#allocation7 + $0x50] sm:$0xff]
    %v3818 = vld [vmem:[#allocation7 + $0x58] sm:$0xff]
    %v3819 = vld [vmem:[#allocation7 + $0x60] sm:$0xff]
    %v3820 = vld [vmem:[#allocation7 + $0x68] sm:$0xff]
    %v3821 = vld [vmem:[#allocation7 + $0x70] sm:$0xff]
    %v3822 = vld [vmem:[#allocation7 + $0x78] sm:$0xff]
    %v3823 = vld [vmem:[#allocation7 + $0x80] sm:$0xff]
    %v3824 = vld [vmem:[#allocation7 + $0x88] sm:$0xff]
    %v3825 = vld [vmem:[#allocation7 + $0x90] sm:$0xff]
    %v3826 = vld [vmem:[#allocation7 + $0x98] sm:$0xff]
    %v3827 = vld [vmem:[#allocation7 + $0xa0] sm:$0xff]
    %v3828 = vld [vmem:[#allocation7 + $0xa8] sm:$0xff]
    %v3829 = vld [vmem:[#allocation7 + $0xb0] sm:$0xff]
    %v3830 = vld [vmem:[#allocation7 + $0xb8] sm:$0xff]
    %v3831 = vld [vmem:[#allocation7 + $0xc0] sm:$0xff]
    %v3832 = vld [vmem:[#allocation7 + $0xc8] sm:$0xff]
    %v3833 = vld [vmem:[#allocation7 + $0xd0] sm:$0xff]
    %v3834 = vld [vmem:[#allocation7 + $0xd8] sm:$0xff]
    %v3835 = vld [vmem:[#allocation7 + $0xe0] sm:$0xff]
    %v3836 = vld [vmem:[#allocation7 + $0xe8] sm:$0xff]
    %v3837 = vld [vmem:[#allocation7 + $0xf0] sm:$0xff]
    %v3838 = vld [vmem:[#allocation7 + $0xf8] sm:$0xff]
    %3839 = vmatprep.subr.mxu0 0.0
    %3840 = vmatpush1.msra.mxu0 %v3807
    %3841 = vmatprep.subr.mxu0 0.0
    %3842 = vmatpush1.msra.mxu0 %v3808
    %3843 = vmatprep.subr.mxu0 0.0
    %3844 = vmatpush1.msra.mxu0 %v3809
    %3845 = vmatprep.subr.mxu0 0.0
    %3846 = vmatpush1.msra.mxu0 %v3810
    %3847 = vmatprep.subr.mxu0 0.0
    %3848 = vmatpush1.msra.mxu0 %v3811
    %3849 = vmatprep.subr.mxu0 0.0
    %3850 = vmatpush1.msra.mxu0 %v3812
    %3851 = vmatprep.subr.mxu0 0.0
    %3852 = vmatpush1.msra.mxu0 %v3813
    %3853 = vmatprep.subr.mxu0 0.0
    %3854 = vmatpush1.msra.mxu0 %v3814
    %3855 = vmatprep.subr.mxu0 0.0
    %3856 = vmatpush1.msra.mxu0 %v3815
    %3857 = vmatprep.subr.mxu0 0.0
    %3858 = vmatpush1.msra.mxu0 %v3816
    %3859 = vmatprep.subr.mxu0 0.0
    %3860 = vmatpush1.msra.mxu0 %v3817
    %3861 = vmatprep.subr.mxu0 0.0
    %3862 = vmatpush1.msra.mxu0 %v3818
    %3863 = vmatprep.subr.mxu0 0.0
    %3864 = vmatpush1.msra.mxu0 %v3819
    %3865 = vmatprep.subr.mxu0 0.0
    %3866 = vmatpush1.msra.mxu0 %v3820
    %3867 = vmatprep.subr.mxu0 0.0
    %3868 = vmatpush1.msra.mxu0 %v3821
    %3869 = vmatprep.subr.mxu0 0.0
    %3870 = vmatpush1.msra.mxu0 %v3822
    %3871 = vmatprep.subr.mxu0 0.0
    %3872 = vmatpush1.msra.mxu0 %v3823
    %3873 = vmatprep.subr.mxu0 0.0
    %3874 = vmatpush1.msra.mxu0 %v3824
    %3875 = vmatprep.subr.mxu0 0.0
    %3876 = vmatpush1.msra.mxu0 %v3825
    %3877 = vmatprep.subr.mxu0 0.0
    %3878 = vmatpush1.msra.mxu0 %v3826
    %3879 = vmatprep.subr.mxu0 0.0
    %3880 = vmatpush1.msra.mxu0 %v3827
    %3881 = vmatprep.subr.mxu0 0.0
    %3882 = vmatpush1.msra.mxu0 %v3828
    %3883 = vmatprep.subr.mxu0 0.0
    %3884 = vmatpush1.msra.mxu0 %v3829
    %3885 = vmatprep.subr.mxu0 0.0
    %3886 = vmatpush1.msra.mxu0 %v3830
    %3887 = vmatprep.subr.mxu0 0.0
    %3888 = vmatpush1.msra.mxu0 %v3831
    %3889 = vmatprep.subr.mxu0 0.0
    %3890 = vmatpush1.msra.mxu0 %v3832
    %3891 = vmatprep.subr.mxu0 0.0
    %3892 = vmatpush1.msra.mxu0 %v3833
    %3893 = vmatprep.subr.mxu0 0.0
    %3894 = vmatpush1.msra.mxu0 %v3834
    %3895 = vmatprep.subr.mxu0 0.0
    %3896 = vmatpush1.msra.mxu0 %v3835
    %3897 = vmatprep.subr.mxu0 0.0
    %3898 = vmatpush1.msra.mxu0 %v3836
    %3899 = vmatprep.subr.mxu0 0.0
    %3900 = vmatpush1.msra.mxu0 %v3837
    %3901 = vmatprep.subr.mxu0 0.0
    %3902 = vmatpush1.msra.mxu0 %v3838
    %3903 = vmatprep.mubr.f32.mxu0 %v3744
    %3904 = vmatmul.mubr.f32.gmra.mrb[0].mxu0 %v3743
    %v3905 = vpop.f32.mrb[0].mxu0
    %v3906 = vadd.f32 0.0, %v3905
    %v3907 = vpop.f32.mrb[0].mxu0
    %3908 = vmatprep.mubr.f32.mxu0 %v3746
    %3909 = vmatmul.mubr.f32.gmra.mrb[0].mxu0 %v3745
    %v3910 = vpop.f32.mrb[0].mxu0
    %v3911 = vadd.f32 0.0, %v3910
    %v3912 = vpop.f32.mrb[0].mxu0
    %3913 = vmatprep.mubr.f32.mxu0 %v3748
    %3914 = vmatmul.mubr.f32.gmra.mrb[0].mxu0 %v3747
    %v3915 = vpop.f32.mrb[0].mxu0
    %v3916 = vadd.f32 0.0, %v3915
    %v3917 = vpop.f32.mrb[0].mxu0
    %3918 = vmatprep.mubr.f32.mxu0 %v3750
    %3919 = vmatmul.mubr.f32.gmra.mrb[0].mxu0 %v3749
    %v3920 = vpop.f32.mrb[0].mxu0
    %v3921 = vadd.f32 0.0, %v3920
    %v3922 = vpop.f32.mrb[0].mxu0
    %3923 = vmatprep.mubr.f32.mxu0 %v3752
    %3924 = vmatmul.mubr.f32.gmra.mrb[0].mxu0 %v3751
    %v3925 = vpop.f32.mrb[0].mxu0
    %v3926 = vadd.f32 0.0, %v3925
    %v3927 = vpop.f32.mrb[0].mxu0
    %3928 = vmatprep.mubr.f32.mxu0 %v3754
    %3929 = vmatmul.mubr.f32.gmra.mrb[0].mxu0 %v3753
    %v3930 = vpop.f32.mrb[0].mxu0
    %v3931 = vadd.f32 0.0, %v3930
    %v3932 = vpop.f32.mrb[0].mxu0
    %3933 = vmatprep.mubr.f32.mxu0 %v3756
    %3934 = vmatmul.mubr.f32.gmra.mrb[0].mxu0 %v3755
    %v3935 = vpop.f32.mrb[0].mxu0
    %v3936 = vadd.f32 0.0, %v3935
    %v3937 = vpop.f32.mrb[0].mxu0
    %3938 = vmatprep.mubr.f32.mxu0 %v3758
    %3939 = vmatmul.mubr.f32.gmra.mrb[0].mxu0 %v3757
    %v3940 = vpop.f32.mrb[0].mxu0
    %v3941 = vadd.f32 0.0, %v3940
    %v3942 = vpop.f32.mrb[0].mxu0
    %3943 = vmatprep.mubr.f32.mxu0 %v3760
    %3944 = vmatmul.mubr.f32.gmra.mrb[0].mxu0 %v3759
    %v3945 = vpop.f32.mrb[0].mxu0
    %v3946 = vadd.f32 0.0, %v3945
    %v3947 = vpop.f32.mrb[0].mxu0
    %3948 = vmatprep.mubr.f32.mxu0 %v3762
    %3949 = vmatmul.mubr.f32.gmra.mrb[0].mxu0 %v3761
    %v3950 = vpop.f32.mrb[0].mxu0
    %v3951 = vadd.f32 0.0, %v3950
    %v3952 = vpop.f32.mrb[0].mxu0
    %3953 = vmatprep.mubr.f32.mxu0 %v3764
    %3954 = vmatmul.mubr.f32.gmra.mrb[0].mxu0 %v3763
    %v3955 = vpop.f32.mrb[0].mxu0
    %v3956 = vadd.f32 0.0, %v3955
    %v3957 = vpop.f32.mrb[0].mxu0
    %3958 = vmatprep.mubr.f32.mxu0 %v3766
    %3959 = vmatmul.mubr.f32.gmra.mrb[0].mxu0 %v3765
    %v3960 = vpop.f32.mrb[0].mxu0
    %v3961 = vadd.f32 0.0, %v3960
    %v3962 = vpop.f32.mrb[0].mxu0
    %3963 = vmatprep.mubr.f32.mxu0 %v3768
    %3964 = vmatmul.mubr.f32.gmra.mrb[0].mxu0 %v3767
    %v3965 = vpop.f32.mrb[0].mxu0
    %v3966 = vadd.f32 0.0, %v3965
    %v3967 = vpop.f32.mrb[0].mxu0
    %3968 = vmatprep.mubr.f32.mxu0 %v3770
    %3969 = vmatmul.mubr.f32.gmra.mrb[0].mxu0 %v3769
    %v3970 = vpop.f32.mrb[0].mxu0
    %v3971 = vadd.f32 0.0, %v3970
    %v3972 = vpop.f32.mrb[0].mxu0
    %3973 = vmatprep.mubr.f32.mxu0 %v3772
    %3974 = vmatmul.mubr.f32.gmra.mrb[0].mxu0 %v3771
    %v3975 = vpop.f32.mrb[0].mxu0
    %v3976 = vadd.f32 0.0, %v3975
    %v3977 = vpop.f32.mrb[0].mxu0
    %3978 = vmatprep.mubr.f32.mxu0 %v3774
    %3979 = vmatmul.mubr.f32.gmra.mrb[0].mxu0 %v3773
    %v3980 = vpop.f32.mrb[0].mxu0
    %v3981 = vadd.f32 0.0, %v3980
    %v3982 = vpop.f32.mrb[0].mxu0
    %3983 = vmatprep.mubr.f32.mxu0 %v3776
    %3984 = vmatmul.mubr.f32.gmra.mrb[0].mxu0 %v3775
    %v3985 = vpop.f32.mrb[0].mxu0
    %v3986 = vadd.f32 0.0, %v3985
    %v3987 = vpop.f32.mrb[0].mxu0
    %3988 = vmatprep.mubr.f32.mxu0 %v3778
    %3989 = vmatmul.mubr.f32.gmra.mrb[0].mxu0 %v3777
    %v3990 = vpop.f32.mrb[0].mxu0
    %v3991 = vadd.f32 0.0, %v3990
    %v3992 = vpop.f32.mrb[0].mxu0
    %3993 = vmatprep.mubr.f32.mxu0 %v3780
    %3994 = vmatmul.mubr.f32.gmra.mrb[0].mxu0 %v3779
    %v3995 = vpop.f32.mrb[0].mxu0
    %v3996 = vadd.f32 0.0, %v3995
    %v3997 = vpop.f32.mrb[0].mxu0
    %3998 = vmatprep.mubr.f32.mxu0 %v3782
    %3999 = vmatmul.mubr.f32.gmra.mrb[0].mxu0 %v3781
    %v4000 = vpop.f32.mrb[0].mxu0
    %v4001 = vadd.f32 0.0, %v4000
    %v4002 = vpop.f32.mrb[0].mxu0
    %4003 = vmatprep.mubr.f32.mxu0 %v3784
    %4004 = vmatmul.mubr.f32.gmra.mrb[0].mxu0 %v3783
    %v4005 = vpop.f32.mrb[0].mxu0
    %v4006 = vadd.f32 0.0, %v4005
    %v4007 = vpop.f32.mrb[0].mxu0
    %4008 = vmatprep.mubr.f32.mxu0 %v3786
    %4009 = vmatmul.mubr.f32.gmra.mrb[0].mxu0 %v3785
    %v4010 = vpop.f32.mrb[0].mxu0
    %v4011 = vadd.f32 0.0, %v4010
    %v4012 = vpop.f32.mrb[0].mxu0
    %4013 = vmatprep.mubr.f32.mxu0 %v3788
    %4014 = vmatmul.mubr.f32.gmra.mrb[0].mxu0 %v3787
    %v4015 = vpop.f32.mrb[0].mxu0
    %v4016 = vadd.f32 0.0, %v4015
    %v4017 = vpop.f32.mrb[0].mxu0
    %4018 = vmatprep.mubr.f32.mxu0 %v3790
    %4019 = vmatmul.mubr.f32.gmra.mrb[0].mxu0 %v3789
    %v4020 = vpop.f32.mrb[0].mxu0
    %v4021 = vadd.f32 0.0, %v4020
    %v4022 = vpop.f32.mrb[0].mxu0
    %4023 = vmatprep.mubr.f32.mxu0 %v3792
    %4024 = vmatmul.mubr.f32.gmra.mrb[0].mxu0 %v3791
    %v4025 = vpop.f32.mrb[0].mxu0
    %v4026 = vadd.f32 0.0, %v4025
    %v4027 = vpop.f32.mrb[0].mxu0
    %4028 = vmatprep.mubr.f32.mxu0 %v3794
    %4029 = vmatmul.mubr.f32.gmra.mrb[0].mxu0 %v3793
    %v4030 = vpop.f32.mrb[0].mxu0
    %v4031 = vadd.f32 0.0, %v4030
    %v4032 = vpop.f32.mrb[0].mxu0
    %4033 = vmatprep.mubr.f32.mxu0 %v3796
    %4034 = vmatmul.mubr.f32.gmra.mrb[0].mxu0 %v3795
    %v4035 = vpop.f32.mrb[0].mxu0
    %v4036 = vadd.f32 0.0, %v4035
    %v4037 = vpop.f32.mrb[0].mxu0
    %4038 = vmatprep.mubr.f32.mxu0 %v3798
    %4039 = vmatmul.mubr.f32.gmra.mrb[0].mxu0 %v3797
    %v4040 = vpop.f32.mrb[0].mxu0
    %v4041 = vadd.f32 0.0, %v4040
    %v4042 = vpop.f32.mrb[0].mxu0
    %4043 = vmatprep.mubr.f32.mxu0 %v3800
    %4044 = vmatmul.mubr.f32.gmra.mrb[0].mxu0 %v3799
    %v4045 = vpop.f32.mrb[0].mxu0
    %v4046 = vadd.f32 0.0, %v4045
    %v4047 = vpop.f32.mrb[0].mxu0
    %4048 = vmatprep.mubr.f32.mxu0 %v3802
    %4049 = vmatmul.mubr.f32.gmra.mrb[0].mxu0 %v3801
    %v4050 = vpop.f32.mrb[0].mxu0
    %v4051 = vadd.f32 0.0, %v4050
    %v4052 = vpop.f32.mrb[0].mxu0
    %4053 = vmatprep.mubr.f32.mxu0 %v3804
    %4054 = vmatmul.mubr.f32.gmra.mrb[0].mxu0 %v3803
    %v4055 = vpop.f32.mrb[0].mxu0
    %v4056 = vadd.f32 0.0, %v4055
    %v4057 = vpop.f32.mrb[0].mxu0
    %4058 = vmatprep.mubr.f32.mxu0 %v3806
    %4059 = vmatmul.mubr.f32.gmra.mrb[0].mxu0 %v3805
    %v4060 = vpop.f32.mrb[0].mxu0
    %v4061 = vadd.f32 0.0, %v4060
    %v4062 = vpop.f32.mrb[0].mxu0
    %4063 = vdwg.mxu0
    %4064 = vst [vmem:[#allocation8] sm:$0xff] %v3906
    %4065 = vst [vmem:[#allocation8 + $0x8] sm:$0xff] %v3911
    %4066 = vst [vmem:[#allocation8 + $0x10] sm:$0xff] %v3916
    %4067 = vst [vmem:[#allocation8 + $0x18] sm:$0xff] %v3921
    %4068 = vst [vmem:[#allocation8 + $0x20] sm:$0xff] %v3926
    %4069 = vst [vmem:[#allocation8 + $0x28] sm:$0xff] %v3931
    %4070 = vst [vmem:[#allocation8 + $0x30] sm:$0xff] %v3936
    %4071 = vst [vmem:[#allocation8 + $0x38] sm:$0xff] %v3941
    %4072 = vst [vmem:[#allocation8 + $0x40] sm:$0xff] %v3946
    %4073 = vst [vmem:[#allocation8 + $0x48] sm:$0xff] %v3951
    %4074 = vst [vmem:[#allocation8 + $0x50] sm:$0xff] %v3956
    %4075 = vst [vmem:[#allocation8 + $0x58] sm:$0xff] %v3961
    %4076 = vst [vmem:[#allocation8 + $0x60] sm:$0xff] %v3966
    %4077 = vst [vmem:[#allocation8 + $0x68] sm:$0xff] %v3971
    %4078 = vst [vmem:[#allocation8 + $0x70] sm:$0xff] %v3976
    %4079 = vst [vmem:[#allocation8 + $0x78] sm:$0xff] %v3981
    %4080 = vst [vmem:[#allocation8 + $0x80] sm:$0xff] %v3986
    %4081 = vst [vmem:[#allocation8 + $0x88] sm:$0xff] %v3991
    %4082 = vst [vmem:[#allocation8 + $0x90] sm:$0xff] %v3996
    %4083 = vst [vmem:[#allocation8 + $0x98] sm:$0xff] %v4001
    %4084 = vst [vmem:[#allocation8 + $0xa0] sm:$0xff] %v4006
    %4085 = vst [vmem:[#allocation8 + $0xa8] sm:$0xff] %v4011
    %4086 = vst [vmem:[#allocation8 + $0xb0] sm:$0xff] %v4016
    %4087 = vst [vmem:[#allocation8 + $0xb8] sm:$0xff] %v4021
    %4088 = vst [vmem:[#allocation8 + $0xc0] sm:$0xff] %v4026
    %4089 = vst [vmem:[#allocation8 + $0xc8] sm:$0xff] %v4031
    %4090 = vst [vmem:[#allocation8 + $0xd0] sm:$0xff] %v4036
    %4091 = vst [vmem:[#allocation8 + $0xd8] sm:$0xff] %v4041
    %4092 = vst [vmem:[#allocation8 + $0xe0] sm:$0xff] %v4046
    %4093 = vst [vmem:[#allocation8 + $0xe8] sm:$0xff] %v4051
    %4094 = vst [vmem:[#allocation8 + $0xf0] sm:$0xff] %v4056
    %4095 = vst [vmem:[#allocation8 + $0xf8] sm:$0xff] %v4061
    %v4096 = vsub.f32 %v3906, %v63
    %v4097 = vsub.f32 %v3911, %v64
    %v4098 = vsub.f32 %v3916, %v65
    %v4099 = vsub.f32 %v3921, %v66
    %v4100 = vsub.f32 %v3926, %v67
    %v4101 = vsub.f32 %v3931, %v68
    %v4102 = vsub.f32 %v3936, %v69
    %v4103 = vsub.f32 %v3941, %v70
    %v4104 = vsub.f32 %v3946, %v71
    %v4105 = vsub.f32 %v3951, %v72
    %v4106 = vsub.f32 %v3956, %v73
    %v4107 = vsub.f32 %v3961, %v74
    %v4108 = vsub.f32 %v3966, %v75
    %v4109 = vsub.f32 %v3971, %v76
    %v4110 = vsub.f32 %v3976, %v77
    %v4111 = vsub.f32 %v3981, %v78
    %v4112 = vsub.f32 %v3986, %v79
    %v4113 = vsub.f32 %v3991, %v80
    %v4114 = vsub.f32 %v3996, %v81
    %v4115 = vsub.f32 %v4001, %v82
    %v4116 = vsub.f32 %v4006, %v83
    %v4117 = vsub.f32 %v4011, %v84
    %v4118 = vsub.f32 %v4016, %v85
    %v4119 = vsub.f32 %v4021, %v86
    %v4120 = vsub.f32 %v4026, %v87
    %v4121 = vsub.f32 %v4031, %v88
    %v4122 = vsub.f32 %v4036, %v89
    %v4123 = vsub.f32 %v4041, %v90
    %v4124 = vsub.f32 %v4046, %v91
    %v4125 = vsub.f32 %v4051, %v92
    %v4126 = vsub.f32 %v4056, %v93
    %v4127 = vsub.f32 %v4061, %v94
    %v4128 = vmul.f32 %v4096, %v4096
    %v4129 = vmul.f32 %v4097, %v4097
    %v4130 = vmul.f32 %v4098, %v4098
    %v4131 = vmul.f32 %v4099, %v4099
    %v4132 = vmul.f32 %v4100, %v4100
    %v4133 = vmul.f32 %v4101, %v4101
    %v4134 = vmul.f32 %v4102, %v4102
    %v4135 = vmul.f32 %v4103, %v4103
    %v4136 = vmul.f32 %v4104, %v4104
    %v4137 = vmul.f32 %v4105, %v4105
    %v4138 = vmul.f32 %v4106, %v4106
    %v4139 = vmul.f32 %v4107, %v4107
    %v4140 = vmul.f32 %v4108, %v4108
    %v4141 = vmul.f32 %v4109, %v4109
    %v4142 = vmul.f32 %v4110, %v4110
    %v4143 = vmul.f32 %v4111, %v4111
    %v4144 = vmul.f32 %v4112, %v4112
    %v4145 = vmul.f32 %v4113, %v4113
    %v4146 = vmul.f32 %v4114, %v4114
    %v4147 = vmul.f32 %v4115, %v4115
    %v4148 = vmul.f32 %v4116, %v4116
    %v4149 = vmul.f32 %v4117, %v4117
    %v4150 = vmul.f32 %v4118, %v4118
    %v4151 = vmul.f32 %v4119, %v4119
    %v4152 = vmul.f32 %v4120, %v4120
    %v4153 = vmul.f32 %v4121, %v4121
    %v4154 = vmul.f32 %v4122, %v4122
    %v4155 = vmul.f32 %v4123, %v4123
    %v4156 = vmul.f32 %v4124, %v4124
    %v4157 = vmul.f32 %v4125, %v4125
    %v4158 = vmul.f32 %v4126, %v4126
    %v4159 = vmul.f32 %v4127, %v4127
    %4160 = vadd.xlane.f32.xlu0 %v4128
    %v4161 = vpop.xlane.xlu0 %4160
    %4162 = vadd.xlane.f32.xlu0 %v4129
    %v4163 = vpop.xlane.xlu0 %4162
    %4164 = vadd.xlane.f32.xlu0 %v4130
    %v4165 = vpop.xlane.xlu0 %4164
    %4166 = vadd.xlane.f32.xlu0 %v4131
    %v4167 = vpop.xlane.xlu0 %4166
    %4168 = vadd.xlane.f32.xlu0 %v4132
    %v4169 = vpop.xlane.xlu0 %4168
    %4170 = vadd.xlane.f32.xlu0 %v4133
    %v4171 = vpop.xlane.xlu0 %4170
    %4172 = vadd.xlane.f32.xlu0 %v4134
    %v4173 = vpop.xlane.xlu0 %4172
    %4174 = vadd.xlane.f32.xlu0 %v4135
    %v4175 = vpop.xlane.xlu0 %4174
    %4176 = vadd.xlane.f32.xlu0 %v4136
    %v4177 = vpop.xlane.xlu0 %4176
    %4178 = vadd.xlane.f32.xlu0 %v4137
    %v4179 = vpop.xlane.xlu0 %4178
    %4180 = vadd.xlane.f32.xlu0 %v4138
    %v4181 = vpop.xlane.xlu0 %4180
    %4182 = vadd.xlane.f32.xlu0 %v4139
    %v4183 = vpop.xlane.xlu0 %4182
    %4184 = vadd.xlane.f32.xlu0 %v4140
    %v4185 = vpop.xlane.xlu0 %4184
    %4186 = vadd.xlane.f32.xlu0 %v4141
    %v4187 = vpop.xlane.xlu0 %4186
    %4188 = vadd.xlane.f32.xlu0 %v4142
    %v4189 = vpop.xlane.xlu0 %4188
    %4190 = vadd.xlane.f32.xlu0 %v4143
    %v4191 = vpop.xlane.xlu0 %4190
    %4192 = vadd.xlane.f32.xlu0 %v4144
    %v4193 = vpop.xlane.xlu0 %4192
    %4194 = vadd.xlane.f32.xlu0 %v4145
    %v4195 = vpop.xlane.xlu0 %4194
    %4196 = vadd.xlane.f32.xlu0 %v4146
    %v4197 = vpop.xlane.xlu0 %4196
    %4198 = vadd.xlane.f32.xlu0 %v4147
    %v4199 = vpop.xlane.xlu0 %4198
    %4200 = vadd.xlane.f32.xlu0 %v4148
    %v4201 = vpop.xlane.xlu0 %4200
    %4202 = vadd.xlane.f32.xlu0 %v4149
    %v4203 = vpop.xlane.xlu0 %4202
    %4204 = vadd.xlane.f32.xlu0 %v4150
    %v4205 = vpop.xlane.xlu0 %4204
    %4206 = vadd.xlane.f32.xlu0 %v4151
    %v4207 = vpop.xlane.xlu0 %4206
    %4208 = vadd.xlane.f32.xlu0 %v4152
    %v4209 = vpop.xlane.xlu0 %4208
    %4210 = vadd.xlane.f32.xlu0 %v4153
    %v4211 = vpop.xlane.xlu0 %4210
    %4212 = vadd.xlane.f32.xlu0 %v4154
    %v4213 = vpop.xlane.xlu0 %4212
    %4214 = vadd.xlane.f32.xlu0 %v4155
    %v4215 = vpop.xlane.xlu0 %4214
    %4216 = vadd.xlane.f32.xlu0 %v4156
    %v4217 = vpop.xlane.xlu0 %4216
    %4218 = vadd.xlane.f32.xlu0 %v4157
    %v4219 = vpop.xlane.xlu0 %4218
    %4220 = vadd.xlane.f32.xlu0 %v4158
    %v4221 = vpop.xlane.xlu0 %4220
    %4222 = vadd.xlane.f32.xlu0 %v4159
    %v4223 = vpop.xlane.xlu0 %4222
    %v4256 = vlaneseq
    %v4257 = vshrl.u32 %v4256, 7
    %v4258 = vsub.s32 0, %v4257
    %v4259 = vrot.slane %v4161, %v4258
    %v4260 = vlaneseq
    %v4261 = vshrl.u32 %v4260, 7
    %v4262 = vsub.s32 1, %v4261
    %v4263 = vrot.slane %v4161, %v4262
    %v4264 = vlaneseq
    %v4265 = vshrl.u32 %v4264, 7
    %v4266 = vsub.s32 2, %v4265
    %v4267 = vrot.slane %v4161, %v4266
    %v4268 = vlaneseq
    %v4269 = vshrl.u32 %v4268, 7
    %v4270 = vsub.s32 3, %v4269
    %v4271 = vrot.slane %v4161, %v4270
    %v4272 = vlaneseq
    %v4273 = vshrl.u32 %v4272, 7
    %v4274 = vsub.s32 4, %v4273
    %v4275 = vrot.slane %v4161, %v4274
    %v4276 = vlaneseq
    %v4277 = vshrl.u32 %v4276, 7
    %v4278 = vsub.s32 5, %v4277
    %v4279 = vrot.slane %v4161, %v4278
    %v4280 = vlaneseq
    %v4281 = vshrl.u32 %v4280, 7
    %v4282 = vsub.s32 6, %v4281
    %v4283 = vrot.slane %v4161, %v4282
    %v4284 = vlaneseq
    %v4285 = vshrl.u32 %v4284, 7
    %v4286 = vsub.s32 7, %v4285
    %v4287 = vrot.slane %v4161, %v4286
    %v4288 = vlaneseq
    %v4289 = vshrl.u32 %v4288, 7
    %v4290 = vsub.s32 0, %v4289
    %v4291 = vrot.slane %v4163, %v4290
    %v4292 = vlaneseq
    %v4293 = vshrl.u32 %v4292, 7
    %v4294 = vsub.s32 1, %v4293
    %v4295 = vrot.slane %v4163, %v4294
    %v4296 = vlaneseq
    %v4297 = vshrl.u32 %v4296, 7
    %v4298 = vsub.s32 2, %v4297
    %v4299 = vrot.slane %v4163, %v4298
    %v4300 = vlaneseq
    %v4301 = vshrl.u32 %v4300, 7
    %v4302 = vsub.s32 3, %v4301
    %v4303 = vrot.slane %v4163, %v4302
    %v4304 = vlaneseq
    %v4305 = vshrl.u32 %v4304, 7
    %v4306 = vsub.s32 4, %v4305
    %v4307 = vrot.slane %v4163, %v4306
    %v4308 = vlaneseq
    %v4309 = vshrl.u32 %v4308, 7
    %v4310 = vsub.s32 5, %v4309
    %v4311 = vrot.slane %v4163, %v4310
    %v4312 = vlaneseq
    %v4313 = vshrl.u32 %v4312, 7
    %v4314 = vsub.s32 6, %v4313
    %v4315 = vrot.slane %v4163, %v4314
    %v4316 = vlaneseq
    %v4317 = vshrl.u32 %v4316, 7
    %v4318 = vsub.s32 7, %v4317
    %v4319 = vrot.slane %v4163, %v4318
    %v4320 = vlaneseq
    %v4321 = vshrl.u32 %v4320, 7
    %v4322 = vsub.s32 0, %v4321
    %v4323 = vrot.slane %v4165, %v4322
    %v4324 = vlaneseq
    %v4325 = vshrl.u32 %v4324, 7
    %v4326 = vsub.s32 1, %v4325
    %v4327 = vrot.slane %v4165, %v4326
    %v4328 = vlaneseq
    %v4329 = vshrl.u32 %v4328, 7
    %v4330 = vsub.s32 2, %v4329
    %v4331 = vrot.slane %v4165, %v4330
    %v4332 = vlaneseq
    %v4333 = vshrl.u32 %v4332, 7
    %v4334 = vsub.s32 3, %v4333
    %v4335 = vrot.slane %v4165, %v4334
    %v4336 = vlaneseq
    %v4337 = vshrl.u32 %v4336, 7
    %v4338 = vsub.s32 4, %v4337
    %v4339 = vrot.slane %v4165, %v4338
    %v4340 = vlaneseq
    %v4341 = vshrl.u32 %v4340, 7
    %v4342 = vsub.s32 5, %v4341
    %v4343 = vrot.slane %v4165, %v4342
    %v4344 = vlaneseq
    %v4345 = vshrl.u32 %v4344, 7
    %v4346 = vsub.s32 6, %v4345
    %v4347 = vrot.slane %v4165, %v4346
    %v4348 = vlaneseq
    %v4349 = vshrl.u32 %v4348, 7
    %v4350 = vsub.s32 7, %v4349
    %v4351 = vrot.slane %v4165, %v4350
    %v4352 = vlaneseq
    %v4353 = vshrl.u32 %v4352, 7
    %v4354 = vsub.s32 0, %v4353
    %v4355 = vrot.slane %v4167, %v4354
    %v4356 = vlaneseq
    %v4357 = vshrl.u32 %v4356, 7
    %v4358 = vsub.s32 1, %v4357
    %v4359 = vrot.slane %v4167, %v4358
    %v4360 = vlaneseq
    %v4361 = vshrl.u32 %v4360, 7
    %v4362 = vsub.s32 2, %v4361
    %v4363 = vrot.slane %v4167, %v4362
    %v4364 = vlaneseq
    %v4365 = vshrl.u32 %v4364, 7
    %v4366 = vsub.s32 3, %v4365
    %v4367 = vrot.slane %v4167, %v4366
    %v4368 = vlaneseq
    %v4369 = vshrl.u32 %v4368, 7
    %v4370 = vsub.s32 4, %v4369
    %v4371 = vrot.slane %v4167, %v4370
    %v4372 = vlaneseq
    %v4373 = vshrl.u32 %v4372, 7
    %v4374 = vsub.s32 5, %v4373
    %v4375 = vrot.slane %v4167, %v4374
    %v4376 = vlaneseq
    %v4377 = vshrl.u32 %v4376, 7
    %v4378 = vsub.s32 6, %v4377
    %v4379 = vrot.slane %v4167, %v4378
    %v4380 = vlaneseq
    %v4381 = vshrl.u32 %v4380, 7
    %v4382 = vsub.s32 7, %v4381
    %v4383 = vrot.slane %v4167, %v4382
    %v4384 = vlaneseq
    %v4385 = vshrl.u32 %v4384, 7
    %v4386 = vsub.s32 0, %v4385
    %v4387 = vrot.slane %v4169, %v4386
    %v4388 = vlaneseq
    %v4389 = vshrl.u32 %v4388, 7
    %v4390 = vsub.s32 1, %v4389
    %v4391 = vrot.slane %v4169, %v4390
    %v4392 = vlaneseq
    %v4393 = vshrl.u32 %v4392, 7
    %v4394 = vsub.s32 2, %v4393
    %v4395 = vrot.slane %v4169, %v4394
    %v4396 = vlaneseq
    %v4397 = vshrl.u32 %v4396, 7
    %v4398 = vsub.s32 3, %v4397
    %v4399 = vrot.slane %v4169, %v4398
    %v4400 = vlaneseq
    %v4401 = vshrl.u32 %v4400, 7
    %v4402 = vsub.s32 4, %v4401
    %v4403 = vrot.slane %v4169, %v4402
    %v4404 = vlaneseq
    %v4405 = vshrl.u32 %v4404, 7
    %v4406 = vsub.s32 5, %v4405
    %v4407 = vrot.slane %v4169, %v4406
    %v4408 = vlaneseq
    %v4409 = vshrl.u32 %v4408, 7
    %v4410 = vsub.s32 6, %v4409
    %v4411 = vrot.slane %v4169, %v4410
    %v4412 = vlaneseq
    %v4413 = vshrl.u32 %v4412, 7
    %v4414 = vsub.s32 7, %v4413
    %v4415 = vrot.slane %v4169, %v4414
    %v4416 = vlaneseq
    %v4417 = vshrl.u32 %v4416, 7
    %v4418 = vsub.s32 0, %v4417
    %v4419 = vrot.slane %v4171, %v4418
    %v4420 = vlaneseq
    %v4421 = vshrl.u32 %v4420, 7
    %v4422 = vsub.s32 1, %v4421
    %v4423 = vrot.slane %v4171, %v4422
    %v4424 = vlaneseq
    %v4425 = vshrl.u32 %v4424, 7
    %v4426 = vsub.s32 2, %v4425
    %v4427 = vrot.slane %v4171, %v4426
    %v4428 = vlaneseq
    %v4429 = vshrl.u32 %v4428, 7
    %v4430 = vsub.s32 3, %v4429
    %v4431 = vrot.slane %v4171, %v4430
    %v4432 = vlaneseq
    %v4433 = vshrl.u32 %v4432, 7
    %v4434 = vsub.s32 4, %v4433
    %v4435 = vrot.slane %v4171, %v4434
    %v4436 = vlaneseq
    %v4437 = vshrl.u32 %v4436, 7
    %v4438 = vsub.s32 5, %v4437
    %v4439 = vrot.slane %v4171, %v4438
    %v4440 = vlaneseq
    %v4441 = vshrl.u32 %v4440, 7
    %v4442 = vsub.s32 6, %v4441
    %v4443 = vrot.slane %v4171, %v4442
    %v4444 = vlaneseq
    %v4445 = vshrl.u32 %v4444, 7
    %v4446 = vsub.s32 7, %v4445
    %v4447 = vrot.slane %v4171, %v4446
    %v4448 = vlaneseq
    %v4449 = vshrl.u32 %v4448, 7
    %v4450 = vsub.s32 0, %v4449
    %v4451 = vrot.slane %v4173, %v4450
    %v4452 = vlaneseq
    %v4453 = vshrl.u32 %v4452, 7
    %v4454 = vsub.s32 1, %v4453
    %v4455 = vrot.slane %v4173, %v4454
    %v4456 = vlaneseq
    %v4457 = vshrl.u32 %v4456, 7
    %v4458 = vsub.s32 2, %v4457
    %v4459 = vrot.slane %v4173, %v4458
    %v4460 = vlaneseq
    %v4461 = vshrl.u32 %v4460, 7
    %v4462 = vsub.s32 3, %v4461
    %v4463 = vrot.slane %v4173, %v4462
    %v4464 = vlaneseq
    %v4465 = vshrl.u32 %v4464, 7
    %v4466 = vsub.s32 4, %v4465
    %v4467 = vrot.slane %v4173, %v4466
    %v4468 = vlaneseq
    %v4469 = vshrl.u32 %v4468, 7
    %v4470 = vsub.s32 5, %v4469
    %v4471 = vrot.slane %v4173, %v4470
    %v4472 = vlaneseq
    %v4473 = vshrl.u32 %v4472, 7
    %v4474 = vsub.s32 6, %v4473
    %v4475 = vrot.slane %v4173, %v4474
    %v4476 = vlaneseq
    %v4477 = vshrl.u32 %v4476, 7
    %v4478 = vsub.s32 7, %v4477
    %v4479 = vrot.slane %v4173, %v4478
    %v4480 = vlaneseq
    %v4481 = vshrl.u32 %v4480, 7
    %v4482 = vsub.s32 0, %v4481
    %v4483 = vrot.slane %v4175, %v4482
    %v4484 = vlaneseq
    %v4485 = vshrl.u32 %v4484, 7
    %v4486 = vsub.s32 1, %v4485
    %v4487 = vrot.slane %v4175, %v4486
    %v4488 = vlaneseq
    %v4489 = vshrl.u32 %v4488, 7
    %v4490 = vsub.s32 2, %v4489
    %v4491 = vrot.slane %v4175, %v4490
    %v4492 = vlaneseq
    %v4493 = vshrl.u32 %v4492, 7
    %v4494 = vsub.s32 3, %v4493
    %v4495 = vrot.slane %v4175, %v4494
    %v4496 = vlaneseq
    %v4497 = vshrl.u32 %v4496, 7
    %v4498 = vsub.s32 4, %v4497
    %v4499 = vrot.slane %v4175, %v4498
    %v4500 = vlaneseq
    %v4501 = vshrl.u32 %v4500, 7
    %v4502 = vsub.s32 5, %v4501
    %v4503 = vrot.slane %v4175, %v4502
    %v4504 = vlaneseq
    %v4505 = vshrl.u32 %v4504, 7
    %v4506 = vsub.s32 6, %v4505
    %v4507 = vrot.slane %v4175, %v4506
    %v4508 = vlaneseq
    %v4509 = vshrl.u32 %v4508, 7
    %v4510 = vsub.s32 7, %v4509
    %v4511 = vrot.slane %v4175, %v4510
    %v4512 = vlaneseq
    %v4513 = vshrl.u32 %v4512, 7
    %v4514 = vsub.s32 0, %v4513
    %v4515 = vrot.slane %v4177, %v4514
    %v4516 = vlaneseq
    %v4517 = vshrl.u32 %v4516, 7
    %v4518 = vsub.s32 1, %v4517
    %v4519 = vrot.slane %v4177, %v4518
    %v4520 = vlaneseq
    %v4521 = vshrl.u32 %v4520, 7
    %v4522 = vsub.s32 2, %v4521
    %v4523 = vrot.slane %v4177, %v4522
    %v4524 = vlaneseq
    %v4525 = vshrl.u32 %v4524, 7
    %v4526 = vsub.s32 3, %v4525
    %v4527 = vrot.slane %v4177, %v4526
    %v4528 = vlaneseq
    %v4529 = vshrl.u32 %v4528, 7
    %v4530 = vsub.s32 4, %v4529
    %v4531 = vrot.slane %v4177, %v4530
    %v4532 = vlaneseq
    %v4533 = vshrl.u32 %v4532, 7
    %v4534 = vsub.s32 5, %v4533
    %v4535 = vrot.slane %v4177, %v4534
    %v4536 = vlaneseq
    %v4537 = vshrl.u32 %v4536, 7
    %v4538 = vsub.s32 6, %v4537
    %v4539 = vrot.slane %v4177, %v4538
    %v4540 = vlaneseq
    %v4541 = vshrl.u32 %v4540, 7
    %v4542 = vsub.s32 7, %v4541
    %v4543 = vrot.slane %v4177, %v4542
    %v4544 = vlaneseq
    %v4545 = vshrl.u32 %v4544, 7
    %v4546 = vsub.s32 0, %v4545
    %v4547 = vrot.slane %v4179, %v4546
    %v4548 = vlaneseq
    %v4549 = vshrl.u32 %v4548, 7
    %v4550 = vsub.s32 1, %v4549
    %v4551 = vrot.slane %v4179, %v4550
    %v4552 = vlaneseq
    %v4553 = vshrl.u32 %v4552, 7
    %v4554 = vsub.s32 2, %v4553
    %v4555 = vrot.slane %v4179, %v4554
    %v4556 = vlaneseq
    %v4557 = vshrl.u32 %v4556, 7
    %v4558 = vsub.s32 3, %v4557
    %v4559 = vrot.slane %v4179, %v4558
    %v4560 = vlaneseq
    %v4561 = vshrl.u32 %v4560, 7
    %v4562 = vsub.s32 4, %v4561
    %v4563 = vrot.slane %v4179, %v4562
    %v4564 = vlaneseq
    %v4565 = vshrl.u32 %v4564, 7
    %v4566 = vsub.s32 5, %v4565
    %v4567 = vrot.slane %v4179, %v4566
    %v4568 = vlaneseq
    %v4569 = vshrl.u32 %v4568, 7
    %v4570 = vsub.s32 6, %v4569
    %v4571 = vrot.slane %v4179, %v4570
    %v4572 = vlaneseq
    %v4573 = vshrl.u32 %v4572, 7
    %v4574 = vsub.s32 7, %v4573
    %v4575 = vrot.slane %v4179, %v4574
    %v4576 = vlaneseq
    %v4577 = vshrl.u32 %v4576, 7
    %v4578 = vsub.s32 0, %v4577
    %v4579 = vrot.slane %v4181, %v4578
    %v4580 = vlaneseq
    %v4581 = vshrl.u32 %v4580, 7
    %v4582 = vsub.s32 1, %v4581
    %v4583 = vrot.slane %v4181, %v4582
    %v4584 = vlaneseq
    %v4585 = vshrl.u32 %v4584, 7
    %v4586 = vsub.s32 2, %v4585
    %v4587 = vrot.slane %v4181, %v4586
    %v4588 = vlaneseq
    %v4589 = vshrl.u32 %v4588, 7
    %v4590 = vsub.s32 3, %v4589
    %v4591 = vrot.slane %v4181, %v4590
    %v4592 = vlaneseq
    %v4593 = vshrl.u32 %v4592, 7
    %v4594 = vsub.s32 4, %v4593
    %v4595 = vrot.slane %v4181, %v4594
    %v4596 = vlaneseq
    %v4597 = vshrl.u32 %v4596, 7
    %v4598 = vsub.s32 5, %v4597
    %v4599 = vrot.slane %v4181, %v4598
    %v4600 = vlaneseq
    %v4601 = vshrl.u32 %v4600, 7
    %v4602 = vsub.s32 6, %v4601
    %v4603 = vrot.slane %v4181, %v4602
    %v4604 = vlaneseq
    %v4605 = vshrl.u32 %v4604, 7
    %v4606 = vsub.s32 7, %v4605
    %v4607 = vrot.slane %v4181, %v4606
    %v4608 = vlaneseq
    %v4609 = vshrl.u32 %v4608, 7
    %v4610 = vsub.s32 0, %v4609
    %v4611 = vrot.slane %v4183, %v4610
    %v4612 = vlaneseq
    %v4613 = vshrl.u32 %v4612, 7
    %v4614 = vsub.s32 1, %v4613
    %v4615 = vrot.slane %v4183, %v4614
    %v4616 = vlaneseq
    %v4617 = vshrl.u32 %v4616, 7
    %v4618 = vsub.s32 2, %v4617
    %v4619 = vrot.slane %v4183, %v4618
    %v4620 = vlaneseq
    %v4621 = vshrl.u32 %v4620, 7
    %v4622 = vsub.s32 3, %v4621
    %v4623 = vrot.slane %v4183, %v4622
    %v4624 = vlaneseq
    %v4625 = vshrl.u32 %v4624, 7
    %v4626 = vsub.s32 4, %v4625
    %v4627 = vrot.slane %v4183, %v4626
    %v4628 = vlaneseq
    %v4629 = vshrl.u32 %v4628, 7
    %v4630 = vsub.s32 5, %v4629
    %v4631 = vrot.slane %v4183, %v4630
    %v4632 = vlaneseq
    %v4633 = vshrl.u32 %v4632, 7
    %v4634 = vsub.s32 6, %v4633
    %v4635 = vrot.slane %v4183, %v4634
    %v4636 = vlaneseq
    %v4637 = vshrl.u32 %v4636, 7
    %v4638 = vsub.s32 7, %v4637
    %v4639 = vrot.slane %v4183, %v4638
    %v4640 = vlaneseq
    %v4641 = vshrl.u32 %v4640, 7
    %v4642 = vsub.s32 0, %v4641
    %v4643 = vrot.slane %v4185, %v4642
    %v4644 = vlaneseq
    %v4645 = vshrl.u32 %v4644, 7
    %v4646 = vsub.s32 1, %v4645
    %v4647 = vrot.slane %v4185, %v4646
    %v4648 = vlaneseq
    %v4649 = vshrl.u32 %v4648, 7
    %v4650 = vsub.s32 2, %v4649
    %v4651 = vrot.slane %v4185, %v4650
    %v4652 = vlaneseq
    %v4653 = vshrl.u32 %v4652, 7
    %v4654 = vsub.s32 3, %v4653
    %v4655 = vrot.slane %v4185, %v4654
    %v4656 = vlaneseq
    %v4657 = vshrl.u32 %v4656, 7
    %v4658 = vsub.s32 4, %v4657
    %v4659 = vrot.slane %v4185, %v4658
    %v4660 = vlaneseq
    %v4661 = vshrl.u32 %v4660, 7
    %v4662 = vsub.s32 5, %v4661
    %v4663 = vrot.slane %v4185, %v4662
    %v4664 = vlaneseq
    %v4665 = vshrl.u32 %v4664, 7
    %v4666 = vsub.s32 6, %v4665
    %v4667 = vrot.slane %v4185, %v4666
    %v4668 = vlaneseq
    %v4669 = vshrl.u32 %v4668, 7
    %v4670 = vsub.s32 7, %v4669
    %v4671 = vrot.slane %v4185, %v4670
    %v4672 = vlaneseq
    %v4673 = vshrl.u32 %v4672, 7
    %v4674 = vsub.s32 0, %v4673
    %v4675 = vrot.slane %v4187, %v4674
    %v4676 = vlaneseq
    %v4677 = vshrl.u32 %v4676, 7
    %v4678 = vsub.s32 1, %v4677
    %v4679 = vrot.slane %v4187, %v4678
    %v4680 = vlaneseq
    %v4681 = vshrl.u32 %v4680, 7
    %v4682 = vsub.s32 2, %v4681
    %v4683 = vrot.slane %v4187, %v4682
    %v4684 = vlaneseq
    %v4685 = vshrl.u32 %v4684, 7
    %v4686 = vsub.s32 3, %v4685
    %v4687 = vrot.slane %v4187, %v4686
    %v4688 = vlaneseq
    %v4689 = vshrl.u32 %v4688, 7
    %v4690 = vsub.s32 4, %v4689
    %v4691 = vrot.slane %v4187, %v4690
    %v4692 = vlaneseq
    %v4693 = vshrl.u32 %v4692, 7
    %v4694 = vsub.s32 5, %v4693
    %v4695 = vrot.slane %v4187, %v4694
    %v4696 = vlaneseq
    %v4697 = vshrl.u32 %v4696, 7
    %v4698 = vsub.s32 6, %v4697
    %v4699 = vrot.slane %v4187, %v4698
    %v4700 = vlaneseq
    %v4701 = vshrl.u32 %v4700, 7
    %v4702 = vsub.s32 7, %v4701
    %v4703 = vrot.slane %v4187, %v4702
    %v4704 = vlaneseq
    %v4705 = vshrl.u32 %v4704, 7
    %v4706 = vsub.s32 0, %v4705
    %v4707 = vrot.slane %v4189, %v4706
    %v4708 = vlaneseq
    %v4709 = vshrl.u32 %v4708, 7
    %v4710 = vsub.s32 1, %v4709
    %v4711 = vrot.slane %v4189, %v4710
    %v4712 = vlaneseq
    %v4713 = vshrl.u32 %v4712, 7
    %v4714 = vsub.s32 2, %v4713
    %v4715 = vrot.slane %v4189, %v4714
    %v4716 = vlaneseq
    %v4717 = vshrl.u32 %v4716, 7
    %v4718 = vsub.s32 3, %v4717
    %v4719 = vrot.slane %v4189, %v4718
    %v4720 = vlaneseq
    %v4721 = vshrl.u32 %v4720, 7
    %v4722 = vsub.s32 4, %v4721
    %v4723 = vrot.slane %v4189, %v4722
    %v4724 = vlaneseq
    %v4725 = vshrl.u32 %v4724, 7
    %v4726 = vsub.s32 5, %v4725
    %v4727 = vrot.slane %v4189, %v4726
    %v4728 = vlaneseq
    %v4729 = vshrl.u32 %v4728, 7
    %v4730 = vsub.s32 6, %v4729
    %v4731 = vrot.slane %v4189, %v4730
    %v4732 = vlaneseq
    %v4733 = vshrl.u32 %v4732, 7
    %v4734 = vsub.s32 7, %v4733
    %v4735 = vrot.slane %v4189, %v4734
    %v4736 = vlaneseq
    %v4737 = vshrl.u32 %v4736, 7
    %v4738 = vsub.s32 0, %v4737
    %v4739 = vrot.slane %v4191, %v4738
    %v4740 = vlaneseq
    %v4741 = vshrl.u32 %v4740, 7
    %v4742 = vsub.s32 1, %v4741
    %v4743 = vrot.slane %v4191, %v4742
    %v4744 = vlaneseq
    %v4745 = vshrl.u32 %v4744, 7
    %v4746 = vsub.s32 2, %v4745
    %v4747 = vrot.slane %v4191, %v4746
    %v4748 = vlaneseq
    %v4749 = vshrl.u32 %v4748, 7
    %v4750 = vsub.s32 3, %v4749
    %v4751 = vrot.slane %v4191, %v4750
    %v4752 = vlaneseq
    %v4753 = vshrl.u32 %v4752, 7
    %v4754 = vsub.s32 4, %v4753
    %v4755 = vrot.slane %v4191, %v4754
    %v4756 = vlaneseq
    %v4757 = vshrl.u32 %v4756, 7
    %v4758 = vsub.s32 5, %v4757
    %v4759 = vrot.slane %v4191, %v4758
    %v4760 = vlaneseq
    %v4761 = vshrl.u32 %v4760, 7
    %v4762 = vsub.s32 6, %v4761
    %v4763 = vrot.slane %v4191, %v4762
    %v4764 = vlaneseq
    %v4765 = vshrl.u32 %v4764, 7
    %v4766 = vsub.s32 7, %v4765
    %v4767 = vrot.slane %v4191, %v4766
    %v4768 = vlaneseq
    %v4769 = vshrl.u32 %v4768, 7
    %v4770 = vsub.s32 0, %v4769
    %v4771 = vrot.slane %v4193, %v4770
    %v4772 = vlaneseq
    %v4773 = vshrl.u32 %v4772, 7
    %v4774 = vsub.s32 1, %v4773
    %v4775 = vrot.slane %v4193, %v4774
    %v4776 = vlaneseq
    %v4777 = vshrl.u32 %v4776, 7
    %v4778 = vsub.s32 2, %v4777
    %v4779 = vrot.slane %v4193, %v4778
    %v4780 = vlaneseq
    %v4781 = vshrl.u32 %v4780, 7
    %v4782 = vsub.s32 3, %v4781
    %v4783 = vrot.slane %v4193, %v4782
    %v4784 = vlaneseq
    %v4785 = vshrl.u32 %v4784, 7
    %v4786 = vsub.s32 4, %v4785
    %v4787 = vrot.slane %v4193, %v4786
    %v4788 = vlaneseq
    %v4789 = vshrl.u32 %v4788, 7
    %v4790 = vsub.s32 5, %v4789
    %v4791 = vrot.slane %v4193, %v4790
    %v4792 = vlaneseq
    %v4793 = vshrl.u32 %v4792, 7
    %v4794 = vsub.s32 6, %v4793
    %v4795 = vrot.slane %v4193, %v4794
    %v4796 = vlaneseq
    %v4797 = vshrl.u32 %v4796, 7
    %v4798 = vsub.s32 7, %v4797
    %v4799 = vrot.slane %v4193, %v4798
    %v4800 = vlaneseq
    %v4801 = vshrl.u32 %v4800, 7
    %v4802 = vsub.s32 0, %v4801
    %v4803 = vrot.slane %v4195, %v4802
    %v4804 = vlaneseq
    %v4805 = vshrl.u32 %v4804, 7
    %v4806 = vsub.s32 1, %v4805
    %v4807 = vrot.slane %v4195, %v4806
    %v4808 = vlaneseq
    %v4809 = vshrl.u32 %v4808, 7
    %v4810 = vsub.s32 2, %v4809
    %v4811 = vrot.slane %v4195, %v4810
    %v4812 = vlaneseq
    %v4813 = vshrl.u32 %v4812, 7
    %v4814 = vsub.s32 3, %v4813
    %v4815 = vrot.slane %v4195, %v4814
    %v4816 = vlaneseq
    %v4817 = vshrl.u32 %v4816, 7
    %v4818 = vsub.s32 4, %v4817
    %v4819 = vrot.slane %v4195, %v4818
    %v4820 = vlaneseq
    %v4821 = vshrl.u32 %v4820, 7
    %v4822 = vsub.s32 5, %v4821
    %v4823 = vrot.slane %v4195, %v4822
    %v4824 = vlaneseq
    %v4825 = vshrl.u32 %v4824, 7
    %v4826 = vsub.s32 6, %v4825
    %v4827 = vrot.slane %v4195, %v4826
    %v4828 = vlaneseq
    %v4829 = vshrl.u32 %v4828, 7
    %v4830 = vsub.s32 7, %v4829
    %v4831 = vrot.slane %v4195, %v4830
    %v4832 = vlaneseq
    %v4833 = vshrl.u32 %v4832, 7
    %v4834 = vsub.s32 0, %v4833
    %v4835 = vrot.slane %v4197, %v4834
    %v4836 = vlaneseq
    %v4837 = vshrl.u32 %v4836, 7
    %v4838 = vsub.s32 1, %v4837
    %v4839 = vrot.slane %v4197, %v4838
    %v4840 = vlaneseq
    %v4841 = vshrl.u32 %v4840, 7
    %v4842 = vsub.s32 2, %v4841
    %v4843 = vrot.slane %v4197, %v4842
    %v4844 = vlaneseq
    %v4845 = vshrl.u32 %v4844, 7
    %v4846 = vsub.s32 3, %v4845
    %v4847 = vrot.slane %v4197, %v4846
    %v4848 = vlaneseq
    %v4849 = vshrl.u32 %v4848, 7
    %v4850 = vsub.s32 4, %v4849
    %v4851 = vrot.slane %v4197, %v4850
    %v4852 = vlaneseq
    %v4853 = vshrl.u32 %v4852, 7
    %v4854 = vsub.s32 5, %v4853
    %v4855 = vrot.slane %v4197, %v4854
    %v4856 = vlaneseq
    %v4857 = vshrl.u32 %v4856, 7
    %v4858 = vsub.s32 6, %v4857
    %v4859 = vrot.slane %v4197, %v4858
    %v4860 = vlaneseq
    %v4861 = vshrl.u32 %v4860, 7
    %v4862 = vsub.s32 7, %v4861
    %v4863 = vrot.slane %v4197, %v4862
    %v4864 = vlaneseq
    %v4865 = vshrl.u32 %v4864, 7
    %v4866 = vsub.s32 0, %v4865
    %v4867 = vrot.slane %v4199, %v4866
    %v4868 = vlaneseq
    %v4869 = vshrl.u32 %v4868, 7
    %v4870 = vsub.s32 1, %v4869
    %v4871 = vrot.slane %v4199, %v4870
    %v4872 = vlaneseq
    %v4873 = vshrl.u32 %v4872, 7
    %v4874 = vsub.s32 2, %v4873
    %v4875 = vrot.slane %v4199, %v4874
    %v4876 = vlaneseq
    %v4877 = vshrl.u32 %v4876, 7
    %v4878 = vsub.s32 3, %v4877
    %v4879 = vrot.slane %v4199, %v4878
    %v4880 = vlaneseq
    %v4881 = vshrl.u32 %v4880, 7
    %v4882 = vsub.s32 4, %v4881
    %v4883 = vrot.slane %v4199, %v4882
    %v4884 = vlaneseq
    %v4885 = vshrl.u32 %v4884, 7
    %v4886 = vsub.s32 5, %v4885
    %v4887 = vrot.slane %v4199, %v4886
    %v4888 = vlaneseq
    %v4889 = vshrl.u32 %v4888, 7
    %v4890 = vsub.s32 6, %v4889
    %v4891 = vrot.slane %v4199, %v4890
    %v4892 = vlaneseq
    %v4893 = vshrl.u32 %v4892, 7
    %v4894 = vsub.s32 7, %v4893
    %v4895 = vrot.slane %v4199, %v4894
    %v4896 = vlaneseq
    %v4897 = vshrl.u32 %v4896, 7
    %v4898 = vsub.s32 0, %v4897
    %v4899 = vrot.slane %v4201, %v4898
    %v4900 = vlaneseq
    %v4901 = vshrl.u32 %v4900, 7
    %v4902 = vsub.s32 1, %v4901
    %v4903 = vrot.slane %v4201, %v4902
    %v4904 = vlaneseq
    %v4905 = vshrl.u32 %v4904, 7
    %v4906 = vsub.s32 2, %v4905
    %v4907 = vrot.slane %v4201, %v4906
    %v4908 = vlaneseq
    %v4909 = vshrl.u32 %v4908, 7
    %v4910 = vsub.s32 3, %v4909
    %v4911 = vrot.slane %v4201, %v4910
    %v4912 = vlaneseq
    %v4913 = vshrl.u32 %v4912, 7
    %v4914 = vsub.s32 4, %v4913
    %v4915 = vrot.slane %v4201, %v4914
    %v4916 = vlaneseq
    %v4917 = vshrl.u32 %v4916, 7
    %v4918 = vsub.s32 5, %v4917
    %v4919 = vrot.slane %v4201, %v4918
    %v4920 = vlaneseq
    %v4921 = vshrl.u32 %v4920, 7
    %v4922 = vsub.s32 6, %v4921
    %v4923 = vrot.slane %v4201, %v4922
    %v4924 = vlaneseq
    %v4925 = vshrl.u32 %v4924, 7
    %v4926 = vsub.s32 7, %v4925
    %v4927 = vrot.slane %v4201, %v4926
    %v4928 = vlaneseq
    %v4929 = vshrl.u32 %v4928, 7
    %v4930 = vsub.s32 0, %v4929
    %v4931 = vrot.slane %v4203, %v4930
    %v4932 = vlaneseq
    %v4933 = vshrl.u32 %v4932, 7
    %v4934 = vsub.s32 1, %v4933
    %v4935 = vrot.slane %v4203, %v4934
    %v4936 = vlaneseq
    %v4937 = vshrl.u32 %v4936, 7
    %v4938 = vsub.s32 2, %v4937
    %v4939 = vrot.slane %v4203, %v4938
    %v4940 = vlaneseq
    %v4941 = vshrl.u32 %v4940, 7
    %v4942 = vsub.s32 3, %v4941
    %v4943 = vrot.slane %v4203, %v4942
    %v4944 = vlaneseq
    %v4945 = vshrl.u32 %v4944, 7
    %v4946 = vsub.s32 4, %v4945
    %v4947 = vrot.slane %v4203, %v4946
    %v4948 = vlaneseq
    %v4949 = vshrl.u32 %v4948, 7
    %v4950 = vsub.s32 5, %v4949
    %v4951 = vrot.slane %v4203, %v4950
    %v4952 = vlaneseq
    %v4953 = vshrl.u32 %v4952, 7
    %v4954 = vsub.s32 6, %v4953
    %v4955 = vrot.slane %v4203, %v4954
    %v4956 = vlaneseq
    %v4957 = vshrl.u32 %v4956, 7
    %v4958 = vsub.s32 7, %v4957
    %v4959 = vrot.slane %v4203, %v4958
    %v4960 = vlaneseq
    %v4961 = vshrl.u32 %v4960, 7
    %v4962 = vsub.s32 0, %v4961
    %v4963 = vrot.slane %v4205, %v4962
    %v4964 = vlaneseq
    %v4965 = vshrl.u32 %v4964, 7
    %v4966 = vsub.s32 1, %v4965
    %v4967 = vrot.slane %v4205, %v4966
    %v4968 = vlaneseq
    %v4969 = vshrl.u32 %v4968, 7
    %v4970 = vsub.s32 2, %v4969
    %v4971 = vrot.slane %v4205, %v4970
    %v4972 = vlaneseq
    %v4973 = vshrl.u32 %v4972, 7
    %v4974 = vsub.s32 3, %v4973
    %v4975 = vrot.slane %v4205, %v4974
    %v4976 = vlaneseq
    %v4977 = vshrl.u32 %v4976, 7
    %v4978 = vsub.s32 4, %v4977
    %v4979 = vrot.slane %v4205, %v4978
    %v4980 = vlaneseq
    %v4981 = vshrl.u32 %v4980, 7
    %v4982 = vsub.s32 5, %v4981
    %v4983 = vrot.slane %v4205, %v4982
    %v4984 = vlaneseq
    %v4985 = vshrl.u32 %v4984, 7
    %v4986 = vsub.s32 6, %v4985
    %v4987 = vrot.slane %v4205, %v4986
    %v4988 = vlaneseq
    %v4989 = vshrl.u32 %v4988, 7
    %v4990 = vsub.s32 7, %v4989
    %v4991 = vrot.slane %v4205, %v4990
    %v4992 = vlaneseq
    %v4993 = vshrl.u32 %v4992, 7
    %v4994 = vsub.s32 0, %v4993
    %v4995 = vrot.slane %v4207, %v4994
    %v4996 = vlaneseq
    %v4997 = vshrl.u32 %v4996, 7
    %v4998 = vsub.s32 1, %v4997
    %v4999 = vrot.slane %v4207, %v4998
    %v5000 = vlaneseq
    %v5001 = vshrl.u32 %v5000, 7
    %v5002 = vsub.s32 2, %v5001
    %v5003 = vrot.slane %v4207, %v5002
    %v5004 = vlaneseq
    %v5005 = vshrl.u32 %v5004, 7
    %v5006 = vsub.s32 3, %v5005
    %v5007 = vrot.slane %v4207, %v5006
    %v5008 = vlaneseq
    %v5009 = vshrl.u32 %v5008, 7
    %v5010 = vsub.s32 4, %v5009
    %v5011 = vrot.slane %v4207, %v5010
    %v5012 = vlaneseq
    %v5013 = vshrl.u32 %v5012, 7
    %v5014 = vsub.s32 5, %v5013
    %v5015 = vrot.slane %v4207, %v5014
    %v5016 = vlaneseq
    %v5017 = vshrl.u32 %v5016, 7
    %v5018 = vsub.s32 6, %v5017
    %v5019 = vrot.slane %v4207, %v5018
    %v5020 = vlaneseq
    %v5021 = vshrl.u32 %v5020, 7
    %v5022 = vsub.s32 7, %v5021
    %v5023 = vrot.slane %v4207, %v5022
    %v5024 = vlaneseq
    %v5025 = vshrl.u32 %v5024, 7
    %v5026 = vsub.s32 0, %v5025
    %v5027 = vrot.slane %v4209, %v5026
    %v5028 = vlaneseq
    %v5029 = vshrl.u32 %v5028, 7
    %v5030 = vsub.s32 1, %v5029
    %v5031 = vrot.slane %v4209, %v5030
    %v5032 = vlaneseq
    %v5033 = vshrl.u32 %v5032, 7
    %v5034 = vsub.s32 2, %v5033
    %v5035 = vrot.slane %v4209, %v5034
    %v5036 = vlaneseq
    %v5037 = vshrl.u32 %v5036, 7
    %v5038 = vsub.s32 3, %v5037
    %v5039 = vrot.slane %v4209, %v5038
    %v5040 = vlaneseq
    %v5041 = vshrl.u32 %v5040, 7
    %v5042 = vsub.s32 4, %v5041
    %v5043 = vrot.slane %v4209, %v5042
    %v5044 = vlaneseq
    %v5045 = vshrl.u32 %v5044, 7
    %v5046 = vsub.s32 5, %v5045
    %v5047 = vrot.slane %v4209, %v5046
    %v5048 = vlaneseq
    %v5049 = vshrl.u32 %v5048, 7
    %v5050 = vsub.s32 6, %v5049
    %v5051 = vrot.slane %v4209, %v5050
    %v5052 = vlaneseq
    %v5053 = vshrl.u32 %v5052, 7
    %v5054 = vsub.s32 7, %v5053
    %v5055 = vrot.slane %v4209, %v5054
    %v5056 = vlaneseq
    %v5057 = vshrl.u32 %v5056, 7
    %v5058 = vsub.s32 0, %v5057
    %v5059 = vrot.slane %v4211, %v5058
    %v5060 = vlaneseq
    %v5061 = vshrl.u32 %v5060, 7
    %v5062 = vsub.s32 1, %v5061
    %v5063 = vrot.slane %v4211, %v5062
    %v5064 = vlaneseq
    %v5065 = vshrl.u32 %v5064, 7
    %v5066 = vsub.s32 2, %v5065
    %v5067 = vrot.slane %v4211, %v5066
    %v5068 = vlaneseq
    %v5069 = vshrl.u32 %v5068, 7
    %v5070 = vsub.s32 3, %v5069
    %v5071 = vrot.slane %v4211, %v5070
    %v5072 = vlaneseq
    %v5073 = vshrl.u32 %v5072, 7
    %v5074 = vsub.s32 4, %v5073
    %v5075 = vrot.slane %v4211, %v5074
    %v5076 = vlaneseq
    %v5077 = vshrl.u32 %v5076, 7
    %v5078 = vsub.s32 5, %v5077
    %v5079 = vrot.slane %v4211, %v5078
    %v5080 = vlaneseq
    %v5081 = vshrl.u32 %v5080, 7
    %v5082 = vsub.s32 6, %v5081
    %v5083 = vrot.slane %v4211, %v5082
    %v5084 = vlaneseq
    %v5085 = vshrl.u32 %v5084, 7
    %v5086 = vsub.s32 7, %v5085
    %v5087 = vrot.slane %v4211, %v5086
    %v5088 = vlaneseq
    %v5089 = vshrl.u32 %v5088, 7
    %v5090 = vsub.s32 0, %v5089
    %v5091 = vrot.slane %v4213, %v5090
    %v5092 = vlaneseq
    %v5093 = vshrl.u32 %v5092, 7
    %v5094 = vsub.s32 1, %v5093
    %v5095 = vrot.slane %v4213, %v5094
    %v5096 = vlaneseq
    %v5097 = vshrl.u32 %v5096, 7
    %v5098 = vsub.s32 2, %v5097
    %v5099 = vrot.slane %v4213, %v5098
    %v5100 = vlaneseq
    %v5101 = vshrl.u32 %v5100, 7
    %v5102 = vsub.s32 3, %v5101
    %v5103 = vrot.slane %v4213, %v5102
    %v5104 = vlaneseq
    %v5105 = vshrl.u32 %v5104, 7
    %v5106 = vsub.s32 4, %v5105
    %v5107 = vrot.slane %v4213, %v5106
    %v5108 = vlaneseq
    %v5109 = vshrl.u32 %v5108, 7
    %v5110 = vsub.s32 5, %v5109
    %v5111 = vrot.slane %v4213, %v5110
    %v5112 = vlaneseq
    %v5113 = vshrl.u32 %v5112, 7
    %v5114 = vsub.s32 6, %v5113
    %v5115 = vrot.slane %v4213, %v5114
    %v5116 = vlaneseq
    %v5117 = vshrl.u32 %v5116, 7
    %v5118 = vsub.s32 7, %v5117
    %v5119 = vrot.slane %v4213, %v5118
    %v5120 = vlaneseq
    %v5121 = vshrl.u32 %v5120, 7
    %v5122 = vsub.s32 0, %v5121
    %v5123 = vrot.slane %v4215, %v5122
    %v5124 = vlaneseq
    %v5125 = vshrl.u32 %v5124, 7
    %v5126 = vsub.s32 1, %v5125
    %v5127 = vrot.slane %v4215, %v5126
    %v5128 = vlaneseq
    %v5129 = vshrl.u32 %v5128, 7
    %v5130 = vsub.s32 2, %v5129
    %v5131 = vrot.slane %v4215, %v5130
    %v5132 = vlaneseq
    %v5133 = vshrl.u32 %v5132, 7
    %v5134 = vsub.s32 3, %v5133
    %v5135 = vrot.slane %v4215, %v5134
    %v5136 = vlaneseq
    %v5137 = vshrl.u32 %v5136, 7
    %v5138 = vsub.s32 4, %v5137
    %v5139 = vrot.slane %v4215, %v5138
    %v5140 = vlaneseq
    %v5141 = vshrl.u32 %v5140, 7
    %v5142 = vsub.s32 5, %v5141
    %v5143 = vrot.slane %v4215, %v5142
    %v5144 = vlaneseq
    %v5145 = vshrl.u32 %v5144, 7
    %v5146 = vsub.s32 6, %v5145
    %v5147 = vrot.slane %v4215, %v5146
    %v5148 = vlaneseq
    %v5149 = vshrl.u32 %v5148, 7
    %v5150 = vsub.s32 7, %v5149
    %v5151 = vrot.slane %v4215, %v5150
    %v5152 = vlaneseq
    %v5153 = vshrl.u32 %v5152, 7
    %v5154 = vsub.s32 0, %v5153
    %v5155 = vrot.slane %v4217, %v5154
    %v5156 = vlaneseq
    %v5157 = vshrl.u32 %v5156, 7
    %v5158 = vsub.s32 1, %v5157
    %v5159 = vrot.slane %v4217, %v5158
    %v5160 = vlaneseq
    %v5161 = vshrl.u32 %v5160, 7
    %v5162 = vsub.s32 2, %v5161
    %v5163 = vrot.slane %v4217, %v5162
    %v5164 = vlaneseq
    %v5165 = vshrl.u32 %v5164, 7
    %v5166 = vsub.s32 3, %v5165
    %v5167 = vrot.slane %v4217, %v5166
    %v5168 = vlaneseq
    %v5169 = vshrl.u32 %v5168, 7
    %v5170 = vsub.s32 4, %v5169
    %v5171 = vrot.slane %v4217, %v5170
    %v5172 = vlaneseq
    %v5173 = vshrl.u32 %v5172, 7
    %v5174 = vsub.s32 5, %v5173
    %v5175 = vrot.slane %v4217, %v5174
    %v5176 = vlaneseq
    %v5177 = vshrl.u32 %v5176, 7
    %v5178 = vsub.s32 6, %v5177
    %v5179 = vrot.slane %v4217, %v5178
    %v5180 = vlaneseq
    %v5181 = vshrl.u32 %v5180, 7
    %v5182 = vsub.s32 7, %v5181
    %v5183 = vrot.slane %v4217, %v5182
    %v5184 = vlaneseq
    %v5185 = vshrl.u32 %v5184, 7
    %v5186 = vsub.s32 0, %v5185
    %v5187 = vrot.slane %v4219, %v5186
    %v5188 = vlaneseq
    %v5189 = vshrl.u32 %v5188, 7
    %v5190 = vsub.s32 1, %v5189
    %v5191 = vrot.slane %v4219, %v5190
    %v5192 = vlaneseq
    %v5193 = vshrl.u32 %v5192, 7
    %v5194 = vsub.s32 2, %v5193
    %v5195 = vrot.slane %v4219, %v5194
    %v5196 = vlaneseq
    %v5197 = vshrl.u32 %v5196, 7
    %v5198 = vsub.s32 3, %v5197
    %v5199 = vrot.slane %v4219, %v5198
    %v5200 = vlaneseq
    %v5201 = vshrl.u32 %v5200, 7
    %v5202 = vsub.s32 4, %v5201
    %v5203 = vrot.slane %v4219, %v5202
    %v5204 = vlaneseq
    %v5205 = vshrl.u32 %v5204, 7
    %v5206 = vsub.s32 5, %v5205
    %v5207 = vrot.slane %v4219, %v5206
    %v5208 = vlaneseq
    %v5209 = vshrl.u32 %v5208, 7
    %v5210 = vsub.s32 6, %v5209
    %v5211 = vrot.slane %v4219, %v5210
    %v5212 = vlaneseq
    %v5213 = vshrl.u32 %v5212, 7
    %v5214 = vsub.s32 7, %v5213
    %v5215 = vrot.slane %v4219, %v5214
    %v5216 = vlaneseq
    %v5217 = vshrl.u32 %v5216, 7
    %v5218 = vsub.s32 0, %v5217
    %v5219 = vrot.slane %v4221, %v5218
    %v5220 = vlaneseq
    %v5221 = vshrl.u32 %v5220, 7
    %v5222 = vsub.s32 1, %v5221
    %v5223 = vrot.slane %v4221, %v5222
    %v5224 = vlaneseq
    %v5225 = vshrl.u32 %v5224, 7
    %v5226 = vsub.s32 2, %v5225
    %v5227 = vrot.slane %v4221, %v5226
    %v5228 = vlaneseq
    %v5229 = vshrl.u32 %v5228, 7
    %v5230 = vsub.s32 3, %v5229
    %v5231 = vrot.slane %v4221, %v5230
    %v5232 = vlaneseq
    %v5233 = vshrl.u32 %v5232, 7
    %v5234 = vsub.s32 4, %v5233
    %v5235 = vrot.slane %v4221, %v5234
    %v5236 = vlaneseq
    %v5237 = vshrl.u32 %v5236, 7
    %v5238 = vsub.s32 5, %v5237
    %v5239 = vrot.slane %v4221, %v5238
    %v5240 = vlaneseq
    %v5241 = vshrl.u32 %v5240, 7
    %v5242 = vsub.s32 6, %v5241
    %v5243 = vrot.slane %v4221, %v5242
    %v5244 = vlaneseq
    %v5245 = vshrl.u32 %v5244, 7
    %v5246 = vsub.s32 7, %v5245
    %v5247 = vrot.slane %v4221, %v5246
    %v5248 = vlaneseq
    %v5249 = vshrl.u32 %v5248, 7
    %v5250 = vsub.s32 0, %v5249
    %v5251 = vrot.slane %v4223, %v5250
    %v5252 = vlaneseq
    %v5253 = vshrl.u32 %v5252, 7
    %v5254 = vsub.s32 1, %v5253
    %v5255 = vrot.slane %v4223, %v5254
    %v5256 = vlaneseq
    %v5257 = vshrl.u32 %v5256, 7
    %v5258 = vsub.s32 2, %v5257
    %v5259 = vrot.slane %v4223, %v5258
    %v5260 = vlaneseq
    %v5261 = vshrl.u32 %v5260, 7
    %v5262 = vsub.s32 3, %v5261
    %v5263 = vrot.slane %v4223, %v5262
    %v5264 = vlaneseq
    %v5265 = vshrl.u32 %v5264, 7
    %v5266 = vsub.s32 4, %v5265
    %v5267 = vrot.slane %v4223, %v5266
    %v5268 = vlaneseq
    %v5269 = vshrl.u32 %v5268, 7
    %v5270 = vsub.s32 5, %v5269
    %v5271 = vrot.slane %v4223, %v5270
    %v5272 = vlaneseq
    %v5273 = vshrl.u32 %v5272, 7
    %v5274 = vsub.s32 6, %v5273
    %v5275 = vrot.slane %v4223, %v5274
    %v5276 = vlaneseq
    %v5277 = vshrl.u32 %v5276, 7
    %v5278 = vsub.s32 7, %v5277
    %v5279 = vrot.slane %v4223, %v5278
    %v5280 = vcombine.low %v4259, %v4263
    %v5281 = vcombine.low %v4267, %v4271
    %v5282 = vcombine.low %v4275, %v4279
    %v5283 = vcombine.low %v4283, %v4287
    %v5285 = vunpack.c.l.s4 1966171168
    %v5286 = vunpack.c.0.s8 %v5285
    %v5287 = vlaneseq
    %v5288 = vshrl.u32 %v5287, 7
    %v5289 = vsub.s32 %v5286, %v5288
    %v5290 = vrot.slane %v5280, %v5289
    %v5292 = vunpack.c.l.s4 1966171168
    %v5293 = vunpack.c.0.s8 %v5292
    %v5294 = vlaneseq
    %v5295 = vshrl.u32 %v5294, 7
    %v5296 = vsub.s32 %v5293, %v5295
    %v5297 = vrot.slane %v5281, %v5296
    %v5299 = vunpack.c.l.s4 1966171168
    %v5300 = vunpack.c.0.s8 %v5299
    %v5301 = vlaneseq
    %v5302 = vshrl.u32 %v5301, 7
    %v5303 = vsub.s32 %v5300, %v5302
    %v5304 = vrot.slane %v5282, %v5303
    %v5306 = vunpack.c.l.s4 1966171168
    %v5307 = vunpack.c.0.s8 %v5306
    %v5308 = vlaneseq
    %v5309 = vshrl.u32 %v5308, 7
    %v5310 = vsub.s32 %v5307, %v5309
    %v5311 = vrot.slane %v5283, %v5310
    %v5312 = vcombine.low %v5290, %v5297
    %v5313 = vcombine.low %v5304, %v5311
    %v5315 = vunpack.c.l.s4 1966171168
    %v5316 = vunpack.c.0.s8 %v5315
    %v5317 = vlaneseq
    %v5318 = vshrl.u32 %v5317, 7
    %v5319 = vsub.s32 %v5316, %v5318
    %v5320 = vrot.slane %v5312, %v5319
    %v5322 = vunpack.c.l.s4 1966171168
    %v5323 = vunpack.c.0.s8 %v5322
    %v5324 = vlaneseq
    %v5325 = vshrl.u32 %v5324, 7
    %v5326 = vsub.s32 %v5323, %v5325
    %v5327 = vrot.slane %v5313, %v5326
    %v5328 = vcombine.low %v5320, %v5327
    %v5329 = vcombine.low %v4291, %v4295
    %v5330 = vcombine.low %v4299, %v4303
    %v5331 = vcombine.low %v4307, %v4311
    %v5332 = vcombine.low %v4315, %v4319
    %v5334 = vunpack.c.l.s4 1966171168
    %v5335 = vunpack.c.0.s8 %v5334
    %v5336 = vlaneseq
    %v5337 = vshrl.u32 %v5336, 7
    %v5338 = vsub.s32 %v5335, %v5337
    %v5339 = vrot.slane %v5329, %v5338
    %v5341 = vunpack.c.l.s4 1966171168
    %v5342 = vunpack.c.0.s8 %v5341
    %v5343 = vlaneseq
    %v5344 = vshrl.u32 %v5343, 7
    %v5345 = vsub.s32 %v5342, %v5344
    %v5346 = vrot.slane %v5330, %v5345
    %v5348 = vunpack.c.l.s4 1966171168
    %v5349 = vunpack.c.0.s8 %v5348
    %v5350 = vlaneseq
    %v5351 = vshrl.u32 %v5350, 7
    %v5352 = vsub.s32 %v5349, %v5351
    %v5353 = vrot.slane %v5331, %v5352
    %v5355 = vunpack.c.l.s4 1966171168
    %v5356 = vunpack.c.0.s8 %v5355
    %v5357 = vlaneseq
    %v5358 = vshrl.u32 %v5357, 7
    %v5359 = vsub.s32 %v5356, %v5358
    %v5360 = vrot.slane %v5332, %v5359
    %v5361 = vcombine.low %v5339, %v5346
    %v5362 = vcombine.low %v5353, %v5360
    %v5364 = vunpack.c.l.s4 1966171168
    %v5365 = vunpack.c.0.s8 %v5364
    %v5366 = vlaneseq
    %v5367 = vshrl.u32 %v5366, 7
    %v5368 = vsub.s32 %v5365, %v5367
    %v5369 = vrot.slane %v5361, %v5368
    %v5371 = vunpack.c.l.s4 1966171168
    %v5372 = vunpack.c.0.s8 %v5371
    %v5373 = vlaneseq
    %v5374 = vshrl.u32 %v5373, 7
    %v5375 = vsub.s32 %v5372, %v5374
    %v5376 = vrot.slane %v5362, %v5375
    %v5377 = vcombine.low %v5369, %v5376
    %v5378 = vcombine.low %v4323, %v4327
    %v5379 = vcombine.low %v4331, %v4335
    %v5380 = vcombine.low %v4339, %v4343
    %v5381 = vcombine.low %v4347, %v4351
    %v5383 = vunpack.c.l.s4 1966171168
    %v5384 = vunpack.c.0.s8 %v5383
    %v5385 = vlaneseq
    %v5386 = vshrl.u32 %v5385, 7
    %v5387 = vsub.s32 %v5384, %v5386
    %v5388 = vrot.slane %v5378, %v5387
    %v5390 = vunpack.c.l.s4 1966171168
    %v5391 = vunpack.c.0.s8 %v5390
    %v5392 = vlaneseq
    %v5393 = vshrl.u32 %v5392, 7
    %v5394 = vsub.s32 %v5391, %v5393
    %v5395 = vrot.slane %v5379, %v5394
    %v5397 = vunpack.c.l.s4 1966171168
    %v5398 = vunpack.c.0.s8 %v5397
    %v5399 = vlaneseq
    %v5400 = vshrl.u32 %v5399, 7
    %v5401 = vsub.s32 %v5398, %v5400
    %v5402 = vrot.slane %v5380, %v5401
    %v5404 = vunpack.c.l.s4 1966171168
    %v5405 = vunpack.c.0.s8 %v5404
    %v5406 = vlaneseq
    %v5407 = vshrl.u32 %v5406, 7
    %v5408 = vsub.s32 %v5405, %v5407
    %v5409 = vrot.slane %v5381, %v5408
    %v5410 = vcombine.low %v5388, %v5395
    %v5411 = vcombine.low %v5402, %v5409
    %v5413 = vunpack.c.l.s4 1966171168
    %v5414 = vunpack.c.0.s8 %v5413
    %v5415 = vlaneseq
    %v5416 = vshrl.u32 %v5415, 7
    %v5417 = vsub.s32 %v5414, %v5416
    %v5418 = vrot.slane %v5410, %v5417
    %v5420 = vunpack.c.l.s4 1966171168
    %v5421 = vunpack.c.0.s8 %v5420
    %v5422 = vlaneseq
    %v5423 = vshrl.u32 %v5422, 7
    %v5424 = vsub.s32 %v5421, %v5423
    %v5425 = vrot.slane %v5411, %v5424
    %v5426 = vcombine.low %v5418, %v5425
    %v5427 = vcombine.low %v4355, %v4359
    %v5428 = vcombine.low %v4363, %v4367
    %v5429 = vcombine.low %v4371, %v4375
    %v5430 = vcombine.low %v4379, %v4383
    %v5432 = vunpack.c.l.s4 1966171168
    %v5433 = vunpack.c.0.s8 %v5432
    %v5434 = vlaneseq
    %v5435 = vshrl.u32 %v5434, 7
    %v5436 = vsub.s32 %v5433, %v5435
    %v5437 = vrot.slane %v5427, %v5436
    %v5439 = vunpack.c.l.s4 1966171168
    %v5440 = vunpack.c.0.s8 %v5439
    %v5441 = vlaneseq
    %v5442 = vshrl.u32 %v5441, 7
    %v5443 = vsub.s32 %v5440, %v5442
    %v5444 = vrot.slane %v5428, %v5443
    %v5446 = vunpack.c.l.s4 1966171168
    %v5447 = vunpack.c.0.s8 %v5446
    %v5448 = vlaneseq
    %v5449 = vshrl.u32 %v5448, 7
    %v5450 = vsub.s32 %v5447, %v5449
    %v5451 = vrot.slane %v5429, %v5450
    %v5453 = vunpack.c.l.s4 1966171168
    %v5454 = vunpack.c.0.s8 %v5453
    %v5455 = vlaneseq
    %v5456 = vshrl.u32 %v5455, 7
    %v5457 = vsub.s32 %v5454, %v5456
    %v5458 = vrot.slane %v5430, %v5457
    %v5459 = vcombine.low %v5437, %v5444
    %v5460 = vcombine.low %v5451, %v5458
    %v5462 = vunpack.c.l.s4 1966171168
    %v5463 = vunpack.c.0.s8 %v5462
    %v5464 = vlaneseq
    %v5465 = vshrl.u32 %v5464, 7
    %v5466 = vsub.s32 %v5463, %v5465
    %v5467 = vrot.slane %v5459, %v5466
    %v5469 = vunpack.c.l.s4 1966171168
    %v5470 = vunpack.c.0.s8 %v5469
    %v5471 = vlaneseq
    %v5472 = vshrl.u32 %v5471, 7
    %v5473 = vsub.s32 %v5470, %v5472
    %v5474 = vrot.slane %v5460, %v5473
    %v5475 = vcombine.low %v5467, %v5474
    %v5476 = vcombine.low %v4387, %v4391
    %v5477 = vcombine.low %v4395, %v4399
    %v5478 = vcombine.low %v4403, %v4407
    %v5479 = vcombine.low %v4411, %v4415
    %v5481 = vunpack.c.l.s4 1966171168
    %v5482 = vunpack.c.0.s8 %v5481
    %v5483 = vlaneseq
    %v5484 = vshrl.u32 %v5483, 7
    %v5485 = vsub.s32 %v5482, %v5484
    %v5486 = vrot.slane %v5476, %v5485
    %v5488 = vunpack.c.l.s4 1966171168
    %v5489 = vunpack.c.0.s8 %v5488
    %v5490 = vlaneseq
    %v5491 = vshrl.u32 %v5490, 7
    %v5492 = vsub.s32 %v5489, %v5491
    %v5493 = vrot.slane %v5477, %v5492
    %v5495 = vunpack.c.l.s4 1966171168
    %v5496 = vunpack.c.0.s8 %v5495
    %v5497 = vlaneseq
    %v5498 = vshrl.u32 %v5497, 7
    %v5499 = vsub.s32 %v5496, %v5498
    %v5500 = vrot.slane %v5478, %v5499
    %v5502 = vunpack.c.l.s4 1966171168
    %v5503 = vunpack.c.0.s8 %v5502
    %v5504 = vlaneseq
    %v5505 = vshrl.u32 %v5504, 7
    %v5506 = vsub.s32 %v5503, %v5505
    %v5507 = vrot.slane %v5479, %v5506
    %v5508 = vcombine.low %v5486, %v5493
    %v5509 = vcombine.low %v5500, %v5507
    %v5511 = vunpack.c.l.s4 1966171168
    %v5512 = vunpack.c.0.s8 %v5511
    %v5513 = vlaneseq
    %v5514 = vshrl.u32 %v5513, 7
    %v5515 = vsub.s32 %v5512, %v5514
    %v5516 = vrot.slane %v5508, %v5515
    %v5518 = vunpack.c.l.s4 1966171168
    %v5519 = vunpack.c.0.s8 %v5518
    %v5520 = vlaneseq
    %v5521 = vshrl.u32 %v5520, 7
    %v5522 = vsub.s32 %v5519, %v5521
    %v5523 = vrot.slane %v5509, %v5522
    %v5524 = vcombine.low %v5516, %v5523
    %v5525 = vcombine.low %v4419, %v4423
    %v5526 = vcombine.low %v4427, %v4431
    %v5527 = vcombine.low %v4435, %v4439
    %v5528 = vcombine.low %v4443, %v4447
    %v5530 = vunpack.c.l.s4 1966171168
    %v5531 = vunpack.c.0.s8 %v5530
    %v5532 = vlaneseq
    %v5533 = vshrl.u32 %v5532, 7
    %v5534 = vsub.s32 %v5531, %v5533
    %v5535 = vrot.slane %v5525, %v5534
    %v5537 = vunpack.c.l.s4 1966171168
    %v5538 = vunpack.c.0.s8 %v5537
    %v5539 = vlaneseq
    %v5540 = vshrl.u32 %v5539, 7
    %v5541 = vsub.s32 %v5538, %v5540
    %v5542 = vrot.slane %v5526, %v5541
    %v5544 = vunpack.c.l.s4 1966171168
    %v5545 = vunpack.c.0.s8 %v5544
    %v5546 = vlaneseq
    %v5547 = vshrl.u32 %v5546, 7
    %v5548 = vsub.s32 %v5545, %v5547
    %v5549 = vrot.slane %v5527, %v5548
    %v5551 = vunpack.c.l.s4 1966171168
    %v5552 = vunpack.c.0.s8 %v5551
    %v5553 = vlaneseq
    %v5554 = vshrl.u32 %v5553, 7
    %v5555 = vsub.s32 %v5552, %v5554
    %v5556 = vrot.slane %v5528, %v5555
    %v5557 = vcombine.low %v5535, %v5542
    %v5558 = vcombine.low %v5549, %v5556
    %v5560 = vunpack.c.l.s4 1966171168
    %v5561 = vunpack.c.0.s8 %v5560
    %v5562 = vlaneseq
    %v5563 = vshrl.u32 %v5562, 7
    %v5564 = vsub.s32 %v5561, %v5563
    %v5565 = vrot.slane %v5557, %v5564
    %v5567 = vunpack.c.l.s4 1966171168
    %v5568 = vunpack.c.0.s8 %v5567
    %v5569 = vlaneseq
    %v5570 = vshrl.u32 %v5569, 7
    %v5571 = vsub.s32 %v5568, %v5570
    %v5572 = vrot.slane %v5558, %v5571
    %v5573 = vcombine.low %v5565, %v5572
    %v5574 = vcombine.low %v4451, %v4455
    %v5575 = vcombine.low %v4459, %v4463
    %v5576 = vcombine.low %v4467, %v4471
    %v5577 = vcombine.low %v4475, %v4479
    %v5579 = vunpack.c.l.s4 1966171168
    %v5580 = vunpack.c.0.s8 %v5579
    %v5581 = vlaneseq
    %v5582 = vshrl.u32 %v5581, 7
    %v5583 = vsub.s32 %v5580, %v5582
    %v5584 = vrot.slane %v5574, %v5583
    %v5586 = vunpack.c.l.s4 1966171168
    %v5587 = vunpack.c.0.s8 %v5586
    %v5588 = vlaneseq
    %v5589 = vshrl.u32 %v5588, 7
    %v5590 = vsub.s32 %v5587, %v5589
    %v5591 = vrot.slane %v5575, %v5590
    %v5593 = vunpack.c.l.s4 1966171168
    %v5594 = vunpack.c.0.s8 %v5593
    %v5595 = vlaneseq
    %v5596 = vshrl.u32 %v5595, 7
    %v5597 = vsub.s32 %v5594, %v5596
    %v5598 = vrot.slane %v5576, %v5597
    %v5600 = vunpack.c.l.s4 1966171168
    %v5601 = vunpack.c.0.s8 %v5600
    %v5602 = vlaneseq
    %v5603 = vshrl.u32 %v5602, 7
    %v5604 = vsub.s32 %v5601, %v5603
    %v5605 = vrot.slane %v5577, %v5604
    %v5606 = vcombine.low %v5584, %v5591
    %v5607 = vcombine.low %v5598, %v5605
    %v5609 = vunpack.c.l.s4 1966171168
    %v5610 = vunpack.c.0.s8 %v5609
    %v5611 = vlaneseq
    %v5612 = vshrl.u32 %v5611, 7
    %v5613 = vsub.s32 %v5610, %v5612
    %v5614 = vrot.slane %v5606, %v5613
    %v5616 = vunpack.c.l.s4 1966171168
    %v5617 = vunpack.c.0.s8 %v5616
    %v5618 = vlaneseq
    %v5619 = vshrl.u32 %v5618, 7
    %v5620 = vsub.s32 %v5617, %v5619
    %v5621 = vrot.slane %v5607, %v5620
    %v5622 = vcombine.low %v5614, %v5621
    %v5623 = vcombine.low %v4483, %v4487
    %v5624 = vcombine.low %v4491, %v4495
    %v5625 = vcombine.low %v4499, %v4503
    %v5626 = vcombine.low %v4507, %v4511
    %v5628 = vunpack.c.l.s4 1966171168
    %v5629 = vunpack.c.0.s8 %v5628
    %v5630 = vlaneseq
    %v5631 = vshrl.u32 %v5630, 7
    %v5632 = vsub.s32 %v5629, %v5631
    %v5633 = vrot.slane %v5623, %v5632
    %v5635 = vunpack.c.l.s4 1966171168
    %v5636 = vunpack.c.0.s8 %v5635
    %v5637 = vlaneseq
    %v5638 = vshrl.u32 %v5637, 7
    %v5639 = vsub.s32 %v5636, %v5638
    %v5640 = vrot.slane %v5624, %v5639
    %v5642 = vunpack.c.l.s4 1966171168
    %v5643 = vunpack.c.0.s8 %v5642
    %v5644 = vlaneseq
    %v5645 = vshrl.u32 %v5644, 7
    %v5646 = vsub.s32 %v5643, %v5645
    %v5647 = vrot.slane %v5625, %v5646
    %v5649 = vunpack.c.l.s4 1966171168
    %v5650 = vunpack.c.0.s8 %v5649
    %v5651 = vlaneseq
    %v5652 = vshrl.u32 %v5651, 7
    %v5653 = vsub.s32 %v5650, %v5652
    %v5654 = vrot.slane %v5626, %v5653
    %v5655 = vcombine.low %v5633, %v5640
    %v5656 = vcombine.low %v5647, %v5654
    %v5658 = vunpack.c.l.s4 1966171168
    %v5659 = vunpack.c.0.s8 %v5658
    %v5660 = vlaneseq
    %v5661 = vshrl.u32 %v5660, 7
    %v5662 = vsub.s32 %v5659, %v5661
    %v5663 = vrot.slane %v5655, %v5662
    %v5665 = vunpack.c.l.s4 1966171168
    %v5666 = vunpack.c.0.s8 %v5665
    %v5667 = vlaneseq
    %v5668 = vshrl.u32 %v5667, 7
    %v5669 = vsub.s32 %v5666, %v5668
    %v5670 = vrot.slane %v5656, %v5669
    %v5671 = vcombine.low %v5663, %v5670
    %v5672 = vcombine.low %v4515, %v4519
    %v5673 = vcombine.low %v4523, %v4527
    %v5674 = vcombine.low %v4531, %v4535
    %v5675 = vcombine.low %v4539, %v4543
    %v5677 = vunpack.c.l.s4 1966171168
    %v5678 = vunpack.c.0.s8 %v5677
    %v5679 = vlaneseq
    %v5680 = vshrl.u32 %v5679, 7
    %v5681 = vsub.s32 %v5678, %v5680
    %v5682 = vrot.slane %v5672, %v5681
    %v5684 = vunpack.c.l.s4 1966171168
    %v5685 = vunpack.c.0.s8 %v5684
    %v5686 = vlaneseq
    %v5687 = vshrl.u32 %v5686, 7
    %v5688 = vsub.s32 %v5685, %v5687
    %v5689 = vrot.slane %v5673, %v5688
    %v5691 = vunpack.c.l.s4 1966171168
    %v5692 = vunpack.c.0.s8 %v5691
    %v5693 = vlaneseq
    %v5694 = vshrl.u32 %v5693, 7
    %v5695 = vsub.s32 %v5692, %v5694
    %v5696 = vrot.slane %v5674, %v5695
    %v5698 = vunpack.c.l.s4 1966171168
    %v5699 = vunpack.c.0.s8 %v5698
    %v5700 = vlaneseq
    %v5701 = vshrl.u32 %v5700, 7
    %v5702 = vsub.s32 %v5699, %v5701
    %v5703 = vrot.slane %v5675, %v5702
    %v5704 = vcombine.low %v5682, %v5689
    %v5705 = vcombine.low %v5696, %v5703
    %v5707 = vunpack.c.l.s4 1966171168
    %v5708 = vunpack.c.0.s8 %v5707
    %v5709 = vlaneseq
    %v5710 = vshrl.u32 %v5709, 7
    %v5711 = vsub.s32 %v5708, %v5710
    %v5712 = vrot.slane %v5704, %v5711
    %v5714 = vunpack.c.l.s4 1966171168
    %v5715 = vunpack.c.0.s8 %v5714
    %v5716 = vlaneseq
    %v5717 = vshrl.u32 %v5716, 7
    %v5718 = vsub.s32 %v5715, %v5717
    %v5719 = vrot.slane %v5705, %v5718
    %v5720 = vcombine.low %v5712, %v5719
    %v5721 = vcombine.low %v4547, %v4551
    %v5722 = vcombine.low %v4555, %v4559
    %v5723 = vcombine.low %v4563, %v4567
    %v5724 = vcombine.low %v4571, %v4575
    %v5726 = vunpack.c.l.s4 1966171168
    %v5727 = vunpack.c.0.s8 %v5726
    %v5728 = vlaneseq
    %v5729 = vshrl.u32 %v5728, 7
    %v5730 = vsub.s32 %v5727, %v5729
    %v5731 = vrot.slane %v5721, %v5730
    %v5733 = vunpack.c.l.s4 1966171168
    %v5734 = vunpack.c.0.s8 %v5733
    %v5735 = vlaneseq
    %v5736 = vshrl.u32 %v5735, 7
    %v5737 = vsub.s32 %v5734, %v5736
    %v5738 = vrot.slane %v5722, %v5737
    %v5740 = vunpack.c.l.s4 1966171168
    %v5741 = vunpack.c.0.s8 %v5740
    %v5742 = vlaneseq
    %v5743 = vshrl.u32 %v5742, 7
    %v5744 = vsub.s32 %v5741, %v5743
    %v5745 = vrot.slane %v5723, %v5744
    %v5747 = vunpack.c.l.s4 1966171168
    %v5748 = vunpack.c.0.s8 %v5747
    %v5749 = vlaneseq
    %v5750 = vshrl.u32 %v5749, 7
    %v5751 = vsub.s32 %v5748, %v5750
    %v5752 = vrot.slane %v5724, %v5751
    %v5753 = vcombine.low %v5731, %v5738
    %v5754 = vcombine.low %v5745, %v5752
    %v5756 = vunpack.c.l.s4 1966171168
    %v5757 = vunpack.c.0.s8 %v5756
    %v5758 = vlaneseq
    %v5759 = vshrl.u32 %v5758, 7
    %v5760 = vsub.s32 %v5757, %v5759
    %v5761 = vrot.slane %v5753, %v5760
    %v5763 = vunpack.c.l.s4 1966171168
    %v5764 = vunpack.c.0.s8 %v5763
    %v5765 = vlaneseq
    %v5766 = vshrl.u32 %v5765, 7
    %v5767 = vsub.s32 %v5764, %v5766
    %v5768 = vrot.slane %v5754, %v5767
    %v5769 = vcombine.low %v5761, %v5768
    %v5770 = vcombine.low %v4579, %v4583
    %v5771 = vcombine.low %v4587, %v4591
    %v5772 = vcombine.low %v4595, %v4599
    %v5773 = vcombine.low %v4603, %v4607
    %v5775 = vunpack.c.l.s4 1966171168
    %v5776 = vunpack.c.0.s8 %v5775
    %v5777 = vlaneseq
    %v5778 = vshrl.u32 %v5777, 7
    %v5779 = vsub.s32 %v5776, %v5778
    %v5780 = vrot.slane %v5770, %v5779
    %v5782 = vunpack.c.l.s4 1966171168
    %v5783 = vunpack.c.0.s8 %v5782
    %v5784 = vlaneseq
    %v5785 = vshrl.u32 %v5784, 7
    %v5786 = vsub.s32 %v5783, %v5785
    %v5787 = vrot.slane %v5771, %v5786
    %v5789 = vunpack.c.l.s4 1966171168
    %v5790 = vunpack.c.0.s8 %v5789
    %v5791 = vlaneseq
    %v5792 = vshrl.u32 %v5791, 7
    %v5793 = vsub.s32 %v5790, %v5792
    %v5794 = vrot.slane %v5772, %v5793
    %v5796 = vunpack.c.l.s4 1966171168
    %v5797 = vunpack.c.0.s8 %v5796
    %v5798 = vlaneseq
    %v5799 = vshrl.u32 %v5798, 7
    %v5800 = vsub.s32 %v5797, %v5799
    %v5801 = vrot.slane %v5773, %v5800
    %v5802 = vcombine.low %v5780, %v5787
    %v5803 = vcombine.low %v5794, %v5801
    %v5805 = vunpack.c.l.s4 1966171168
    %v5806 = vunpack.c.0.s8 %v5805
    %v5807 = vlaneseq
    %v5808 = vshrl.u32 %v5807, 7
    %v5809 = vsub.s32 %v5806, %v5808
    %v5810 = vrot.slane %v5802, %v5809
    %v5812 = vunpack.c.l.s4 1966171168
    %v5813 = vunpack.c.0.s8 %v5812
    %v5814 = vlaneseq
    %v5815 = vshrl.u32 %v5814, 7
    %v5816 = vsub.s32 %v5813, %v5815
    %v5817 = vrot.slane %v5803, %v5816
    %v5818 = vcombine.low %v5810, %v5817
    %v5819 = vcombine.low %v4611, %v4615
    %v5820 = vcombine.low %v4619, %v4623
    %v5821 = vcombine.low %v4627, %v4631
    %v5822 = vcombine.low %v4635, %v4639
    %v5824 = vunpack.c.l.s4 1966171168
    %v5825 = vunpack.c.0.s8 %v5824
    %v5826 = vlaneseq
    %v5827 = vshrl.u32 %v5826, 7
    %v5828 = vsub.s32 %v5825, %v5827
    %v5829 = vrot.slane %v5819, %v5828
    %v5831 = vunpack.c.l.s4 1966171168
    %v5832 = vunpack.c.0.s8 %v5831
    %v5833 = vlaneseq
    %v5834 = vshrl.u32 %v5833, 7
    %v5835 = vsub.s32 %v5832, %v5834
    %v5836 = vrot.slane %v5820, %v5835
    %v5838 = vunpack.c.l.s4 1966171168
    %v5839 = vunpack.c.0.s8 %v5838
    %v5840 = vlaneseq
    %v5841 = vshrl.u32 %v5840, 7
    %v5842 = vsub.s32 %v5839, %v5841
    %v5843 = vrot.slane %v5821, %v5842
    %v5845 = vunpack.c.l.s4 1966171168
    %v5846 = vunpack.c.0.s8 %v5845
    %v5847 = vlaneseq
    %v5848 = vshrl.u32 %v5847, 7
    %v5849 = vsub.s32 %v5846, %v5848
    %v5850 = vrot.slane %v5822, %v5849
    %v5851 = vcombine.low %v5829, %v5836
    %v5852 = vcombine.low %v5843, %v5850
    %v5854 = vunpack.c.l.s4 1966171168
    %v5855 = vunpack.c.0.s8 %v5854
    %v5856 = vlaneseq
    %v5857 = vshrl.u32 %v5856, 7
    %v5858 = vsub.s32 %v5855, %v5857
    %v5859 = vrot.slane %v5851, %v5858
    %v5861 = vunpack.c.l.s4 1966171168
    %v5862 = vunpack.c.0.s8 %v5861
    %v5863 = vlaneseq
    %v5864 = vshrl.u32 %v5863, 7
    %v5865 = vsub.s32 %v5862, %v5864
    %v5866 = vrot.slane %v5852, %v5865
    %v5867 = vcombine.low %v5859, %v5866
    %v5868 = vcombine.low %v4643, %v4647
    %v5869 = vcombine.low %v4651, %v4655
    %v5870 = vcombine.low %v4659, %v4663
    %v5871 = vcombine.low %v4667, %v4671
    %v5873 = vunpack.c.l.s4 1966171168
    %v5874 = vunpack.c.0.s8 %v5873
    %v5875 = vlaneseq
    %v5876 = vshrl.u32 %v5875, 7
    %v5877 = vsub.s32 %v5874, %v5876
    %v5878 = vrot.slane %v5868, %v5877
    %v5880 = vunpack.c.l.s4 1966171168
    %v5881 = vunpack.c.0.s8 %v5880
    %v5882 = vlaneseq
    %v5883 = vshrl.u32 %v5882, 7
    %v5884 = vsub.s32 %v5881, %v5883
    %v5885 = vrot.slane %v5869, %v5884
    %v5887 = vunpack.c.l.s4 1966171168
    %v5888 = vunpack.c.0.s8 %v5887
    %v5889 = vlaneseq
    %v5890 = vshrl.u32 %v5889, 7
    %v5891 = vsub.s32 %v5888, %v5890
    %v5892 = vrot.slane %v5870, %v5891
    %v5894 = vunpack.c.l.s4 1966171168
    %v5895 = vunpack.c.0.s8 %v5894
    %v5896 = vlaneseq
    %v5897 = vshrl.u32 %v5896, 7
    %v5898 = vsub.s32 %v5895, %v5897
    %v5899 = vrot.slane %v5871, %v5898
    %v5900 = vcombine.low %v5878, %v5885
    %v5901 = vcombine.low %v5892, %v5899
    %v5903 = vunpack.c.l.s4 1966171168
    %v5904 = vunpack.c.0.s8 %v5903
    %v5905 = vlaneseq
    %v5906 = vshrl.u32 %v5905, 7
    %v5907 = vsub.s32 %v5904, %v5906
    %v5908 = vrot.slane %v5900, %v5907
    %v5910 = vunpack.c.l.s4 1966171168
    %v5911 = vunpack.c.0.s8 %v5910
    %v5912 = vlaneseq
    %v5913 = vshrl.u32 %v5912, 7
    %v5914 = vsub.s32 %v5911, %v5913
    %v5915 = vrot.slane %v5901, %v5914
    %v5916 = vcombine.low %v5908, %v5915
    %v5917 = vcombine.low %v4675, %v4679
    %v5918 = vcombine.low %v4683, %v4687
    %v5919 = vcombine.low %v4691, %v4695
    %v5920 = vcombine.low %v4699, %v4703
    %v5922 = vunpack.c.l.s4 1966171168
    %v5923 = vunpack.c.0.s8 %v5922
    %v5924 = vlaneseq
    %v5925 = vshrl.u32 %v5924, 7
    %v5926 = vsub.s32 %v5923, %v5925
    %v5927 = vrot.slane %v5917, %v5926
    %v5929 = vunpack.c.l.s4 1966171168
    %v5930 = vunpack.c.0.s8 %v5929
    %v5931 = vlaneseq
    %v5932 = vshrl.u32 %v5931, 7
    %v5933 = vsub.s32 %v5930, %v5932
    %v5934 = vrot.slane %v5918, %v5933
    %v5936 = vunpack.c.l.s4 1966171168
    %v5937 = vunpack.c.0.s8 %v5936
    %v5938 = vlaneseq
    %v5939 = vshrl.u32 %v5938, 7
    %v5940 = vsub.s32 %v5937, %v5939
    %v5941 = vrot.slane %v5919, %v5940
    %v5943 = vunpack.c.l.s4 1966171168
    %v5944 = vunpack.c.0.s8 %v5943
    %v5945 = vlaneseq
    %v5946 = vshrl.u32 %v5945, 7
    %v5947 = vsub.s32 %v5944, %v5946
    %v5948 = vrot.slane %v5920, %v5947
    %v5949 = vcombine.low %v5927, %v5934
    %v5950 = vcombine.low %v5941, %v5948
    %v5952 = vunpack.c.l.s4 1966171168
    %v5953 = vunpack.c.0.s8 %v5952
    %v5954 = vlaneseq
    %v5955 = vshrl.u32 %v5954, 7
    %v5956 = vsub.s32 %v5953, %v5955
    %v5957 = vrot.slane %v5949, %v5956
    %v5959 = vunpack.c.l.s4 1966171168
    %v5960 = vunpack.c.0.s8 %v5959
    %v5961 = vlaneseq
    %v5962 = vshrl.u32 %v5961, 7
    %v5963 = vsub.s32 %v5960, %v5962
    %v5964 = vrot.slane %v5950, %v5963
    %v5965 = vcombine.low %v5957, %v5964
    %v5966 = vcombine.low %v4707, %v4711
    %v5967 = vcombine.low %v4715, %v4719
    %v5968 = vcombine.low %v4723, %v4727
    %v5969 = vcombine.low %v4731, %v4735
    %v5971 = vunpack.c.l.s4 1966171168
    %v5972 = vunpack.c.0.s8 %v5971
    %v5973 = vlaneseq
    %v5974 = vshrl.u32 %v5973, 7
    %v5975 = vsub.s32 %v5972, %v5974
    %v5976 = vrot.slane %v5966, %v5975
    %v5978 = vunpack.c.l.s4 1966171168
    %v5979 = vunpack.c.0.s8 %v5978
    %v5980 = vlaneseq
    %v5981 = vshrl.u32 %v5980, 7
    %v5982 = vsub.s32 %v5979, %v5981
    %v5983 = vrot.slane %v5967, %v5982
    %v5985 = vunpack.c.l.s4 1966171168
    %v5986 = vunpack.c.0.s8 %v5985
    %v5987 = vlaneseq
    %v5988 = vshrl.u32 %v5987, 7
    %v5989 = vsub.s32 %v5986, %v5988
    %v5990 = vrot.slane %v5968, %v5989
    %v5992 = vunpack.c.l.s4 1966171168
    %v5993 = vunpack.c.0.s8 %v5992
    %v5994 = vlaneseq
    %v5995 = vshrl.u32 %v5994, 7
    %v5996 = vsub.s32 %v5993, %v5995
    %v5997 = vrot.slane %v5969, %v5996
    %v5998 = vcombine.low %v5976, %v5983
    %v5999 = vcombine.low %v5990, %v5997
    %v6001 = vunpack.c.l.s4 1966171168
    %v6002 = vunpack.c.0.s8 %v6001
    %v6003 = vlaneseq
    %v6004 = vshrl.u32 %v6003, 7
    %v6005 = vsub.s32 %v6002, %v6004
    %v6006 = vrot.slane %v5998, %v6005
    %v6008 = vunpack.c.l.s4 1966171168
    %v6009 = vunpack.c.0.s8 %v6008
    %v6010 = vlaneseq
    %v6011 = vshrl.u32 %v6010, 7
    %v6012 = vsub.s32 %v6009, %v6011
    %v6013 = vrot.slane %v5999, %v6012
    %v6014 = vcombine.low %v6006, %v6013
    %v6015 = vcombine.low %v4739, %v4743
    %v6016 = vcombine.low %v4747, %v4751
    %v6017 = vcombine.low %v4755, %v4759
    %v6018 = vcombine.low %v4763, %v4767
    %v6020 = vunpack.c.l.s4 1966171168
    %v6021 = vunpack.c.0.s8 %v6020
    %v6022 = vlaneseq
    %v6023 = vshrl.u32 %v6022, 7
    %v6024 = vsub.s32 %v6021, %v6023
    %v6025 = vrot.slane %v6015, %v6024
    %v6027 = vunpack.c.l.s4 1966171168
    %v6028 = vunpack.c.0.s8 %v6027
    %v6029 = vlaneseq
    %v6030 = vshrl.u32 %v6029, 7
    %v6031 = vsub.s32 %v6028, %v6030
    %v6032 = vrot.slane %v6016, %v6031
    %v6034 = vunpack.c.l.s4 1966171168
    %v6035 = vunpack.c.0.s8 %v6034
    %v6036 = vlaneseq
    %v6037 = vshrl.u32 %v6036, 7
    %v6038 = vsub.s32 %v6035, %v6037
    %v6039 = vrot.slane %v6017, %v6038
    %v6041 = vunpack.c.l.s4 1966171168
    %v6042 = vunpack.c.0.s8 %v6041
    %v6043 = vlaneseq
    %v6044 = vshrl.u32 %v6043, 7
    %v6045 = vsub.s32 %v6042, %v6044
    %v6046 = vrot.slane %v6018, %v6045
    %v6047 = vcombine.low %v6025, %v6032
    %v6048 = vcombine.low %v6039, %v6046
    %v6050 = vunpack.c.l.s4 1966171168
    %v6051 = vunpack.c.0.s8 %v6050
    %v6052 = vlaneseq
    %v6053 = vshrl.u32 %v6052, 7
    %v6054 = vsub.s32 %v6051, %v6053
    %v6055 = vrot.slane %v6047, %v6054
    %v6057 = vunpack.c.l.s4 1966171168
    %v6058 = vunpack.c.0.s8 %v6057
    %v6059 = vlaneseq
    %v6060 = vshrl.u32 %v6059, 7
    %v6061 = vsub.s32 %v6058, %v6060
    %v6062 = vrot.slane %v6048, %v6061
    %v6063 = vcombine.low %v6055, %v6062
    %v6064 = vcombine.low %v4771, %v4775
    %v6065 = vcombine.low %v4779, %v4783
    %v6066 = vcombine.low %v4787, %v4791
    %v6067 = vcombine.low %v4795, %v4799
    %v6069 = vunpack.c.l.s4 1966171168
    %v6070 = vunpack.c.0.s8 %v6069
    %v6071 = vlaneseq
    %v6072 = vshrl.u32 %v6071, 7
    %v6073 = vsub.s32 %v6070, %v6072
    %v6074 = vrot.slane %v6064, %v6073
    %v6076 = vunpack.c.l.s4 1966171168
    %v6077 = vunpack.c.0.s8 %v6076
    %v6078 = vlaneseq
    %v6079 = vshrl.u32 %v6078, 7
    %v6080 = vsub.s32 %v6077, %v6079
    %v6081 = vrot.slane %v6065, %v6080
    %v6083 = vunpack.c.l.s4 1966171168
    %v6084 = vunpack.c.0.s8 %v6083
    %v6085 = vlaneseq
    %v6086 = vshrl.u32 %v6085, 7
    %v6087 = vsub.s32 %v6084, %v6086
    %v6088 = vrot.slane %v6066, %v6087
    %v6090 = vunpack.c.l.s4 1966171168
    %v6091 = vunpack.c.0.s8 %v6090
    %v6092 = vlaneseq
    %v6093 = vshrl.u32 %v6092, 7
    %v6094 = vsub.s32 %v6091, %v6093
    %v6095 = vrot.slane %v6067, %v6094
    %v6096 = vcombine.low %v6074, %v6081
    %v6097 = vcombine.low %v6088, %v6095
    %v6099 = vunpack.c.l.s4 1966171168
    %v6100 = vunpack.c.0.s8 %v6099
    %v6101 = vlaneseq
    %v6102 = vshrl.u32 %v6101, 7
    %v6103 = vsub.s32 %v6100, %v6102
    %v6104 = vrot.slane %v6096, %v6103
    %v6106 = vunpack.c.l.s4 1966171168
    %v6107 = vunpack.c.0.s8 %v6106
    %v6108 = vlaneseq
    %v6109 = vshrl.u32 %v6108, 7
    %v6110 = vsub.s32 %v6107, %v6109
    %v6111 = vrot.slane %v6097, %v6110
    %v6112 = vcombine.low %v6104, %v6111
    %v6113 = vcombine.low %v4803, %v4807
    %v6114 = vcombine.low %v4811, %v4815
    %v6115 = vcombine.low %v4819, %v4823
    %v6116 = vcombine.low %v4827, %v4831
    %v6118 = vunpack.c.l.s4 1966171168
    %v6119 = vunpack.c.0.s8 %v6118
    %v6120 = vlaneseq
    %v6121 = vshrl.u32 %v6120, 7
    %v6122 = vsub.s32 %v6119, %v6121
    %v6123 = vrot.slane %v6113, %v6122
    %v6125 = vunpack.c.l.s4 1966171168
    %v6126 = vunpack.c.0.s8 %v6125
    %v6127 = vlaneseq
    %v6128 = vshrl.u32 %v6127, 7
    %v6129 = vsub.s32 %v6126, %v6128
    %v6130 = vrot.slane %v6114, %v6129
    %v6132 = vunpack.c.l.s4 1966171168
    %v6133 = vunpack.c.0.s8 %v6132
    %v6134 = vlaneseq
    %v6135 = vshrl.u32 %v6134, 7
    %v6136 = vsub.s32 %v6133, %v6135
    %v6137 = vrot.slane %v6115, %v6136
    %v6139 = vunpack.c.l.s4 1966171168
    %v6140 = vunpack.c.0.s8 %v6139
    %v6141 = vlaneseq
    %v6142 = vshrl.u32 %v6141, 7
    %v6143 = vsub.s32 %v6140, %v6142
    %v6144 = vrot.slane %v6116, %v6143
    %v6145 = vcombine.low %v6123, %v6130
    %v6146 = vcombine.low %v6137, %v6144
    %v6148 = vunpack.c.l.s4 1966171168
    %v6149 = vunpack.c.0.s8 %v6148
    %v6150 = vlaneseq
    %v6151 = vshrl.u32 %v6150, 7
    %v6152 = vsub.s32 %v6149, %v6151
    %v6153 = vrot.slane %v6145, %v6152
    %v6155 = vunpack.c.l.s4 1966171168
    %v6156 = vunpack.c.0.s8 %v6155
    %v6157 = vlaneseq
    %v6158 = vshrl.u32 %v6157, 7
    %v6159 = vsub.s32 %v6156, %v6158
    %v6160 = vrot.slane %v6146, %v6159
    %v6161 = vcombine.low %v6153, %v6160
    %v6162 = vcombine.low %v4835, %v4839
    %v6163 = vcombine.low %v4843, %v4847
    %v6164 = vcombine.low %v4851, %v4855
    %v6165 = vcombine.low %v4859, %v4863
    %v6167 = vunpack.c.l.s4 1966171168
    %v6168 = vunpack.c.0.s8 %v6167
    %v6169 = vlaneseq
    %v6170 = vshrl.u32 %v6169, 7
    %v6171 = vsub.s32 %v6168, %v6170
    %v6172 = vrot.slane %v6162, %v6171
    %v6174 = vunpack.c.l.s4 1966171168
    %v6175 = vunpack.c.0.s8 %v6174
    %v6176 = vlaneseq
    %v6177 = vshrl.u32 %v6176, 7
    %v6178 = vsub.s32 %v6175, %v6177
    %v6179 = vrot.slane %v6163, %v6178
    %v6181 = vunpack.c.l.s4 1966171168
    %v6182 = vunpack.c.0.s8 %v6181
    %v6183 = vlaneseq
    %v6184 = vshrl.u32 %v6183, 7
    %v6185 = vsub.s32 %v6182, %v6184
    %v6186 = vrot.slane %v6164, %v6185
    %v6188 = vunpack.c.l.s4 1966171168
    %v6189 = vunpack.c.0.s8 %v6188
    %v6190 = vlaneseq
    %v6191 = vshrl.u32 %v6190, 7
    %v6192 = vsub.s32 %v6189, %v6191
    %v6193 = vrot.slane %v6165, %v6192
    %v6194 = vcombine.low %v6172, %v6179
    %v6195 = vcombine.low %v6186, %v6193
    %v6197 = vunpack.c.l.s4 1966171168
    %v6198 = vunpack.c.0.s8 %v6197
    %v6199 = vlaneseq
    %v6200 = vshrl.u32 %v6199, 7
    %v6201 = vsub.s32 %v6198, %v6200
    %v6202 = vrot.slane %v6194, %v6201
    %v6204 = vunpack.c.l.s4 1966171168
    %v6205 = vunpack.c.0.s8 %v6204
    %v6206 = vlaneseq
    %v6207 = vshrl.u32 %v6206, 7
    %v6208 = vsub.s32 %v6205, %v6207
    %v6209 = vrot.slane %v6195, %v6208
    %v6210 = vcombine.low %v6202, %v6209
    %v6211 = vcombine.low %v4867, %v4871
    %v6212 = vcombine.low %v4875, %v4879
    %v6213 = vcombine.low %v4883, %v4887
    %v6214 = vcombine.low %v4891, %v4895
    %v6216 = vunpack.c.l.s4 1966171168
    %v6217 = vunpack.c.0.s8 %v6216
    %v6218 = vlaneseq
    %v6219 = vshrl.u32 %v6218, 7
    %v6220 = vsub.s32 %v6217, %v6219
    %v6221 = vrot.slane %v6211, %v6220
    %v6223 = vunpack.c.l.s4 1966171168
    %v6224 = vunpack.c.0.s8 %v6223
    %v6225 = vlaneseq
    %v6226 = vshrl.u32 %v6225, 7
    %v6227 = vsub.s32 %v6224, %v6226
    %v6228 = vrot.slane %v6212, %v6227
    %v6230 = vunpack.c.l.s4 1966171168
    %v6231 = vunpack.c.0.s8 %v6230
    %v6232 = vlaneseq
    %v6233 = vshrl.u32 %v6232, 7
    %v6234 = vsub.s32 %v6231, %v6233
    %v6235 = vrot.slane %v6213, %v6234
    %v6237 = vunpack.c.l.s4 1966171168
    %v6238 = vunpack.c.0.s8 %v6237
    %v6239 = vlaneseq
    %v6240 = vshrl.u32 %v6239, 7
    %v6241 = vsub.s32 %v6238, %v6240
    %v6242 = vrot.slane %v6214, %v6241
    %v6243 = vcombine.low %v6221, %v6228
    %v6244 = vcombine.low %v6235, %v6242
    %v6246 = vunpack.c.l.s4 1966171168
    %v6247 = vunpack.c.0.s8 %v6246
    %v6248 = vlaneseq
    %v6249 = vshrl.u32 %v6248, 7
    %v6250 = vsub.s32 %v6247, %v6249
    %v6251 = vrot.slane %v6243, %v6250
    %v6253 = vunpack.c.l.s4 1966171168
    %v6254 = vunpack.c.0.s8 %v6253
    %v6255 = vlaneseq
    %v6256 = vshrl.u32 %v6255, 7
    %v6257 = vsub.s32 %v6254, %v6256
    %v6258 = vrot.slane %v6244, %v6257
    %v6259 = vcombine.low %v6251, %v6258
    %v6260 = vcombine.low %v4899, %v4903
    %v6261 = vcombine.low %v4907, %v4911
    %v6262 = vcombine.low %v4915, %v4919
    %v6263 = vcombine.low %v4923, %v4927
    %v6265 = vunpack.c.l.s4 1966171168
    %v6266 = vunpack.c.0.s8 %v6265
    %v6267 = vlaneseq
    %v6268 = vshrl.u32 %v6267, 7
    %v6269 = vsub.s32 %v6266, %v6268
    %v6270 = vrot.slane %v6260, %v6269
    %v6272 = vunpack.c.l.s4 1966171168
    %v6273 = vunpack.c.0.s8 %v6272
    %v6274 = vlaneseq
    %v6275 = vshrl.u32 %v6274, 7
    %v6276 = vsub.s32 %v6273, %v6275
    %v6277 = vrot.slane %v6261, %v6276
    %v6279 = vunpack.c.l.s4 1966171168
    %v6280 = vunpack.c.0.s8 %v6279
    %v6281 = vlaneseq
    %v6282 = vshrl.u32 %v6281, 7
    %v6283 = vsub.s32 %v6280, %v6282
    %v6284 = vrot.slane %v6262, %v6283
    %v6286 = vunpack.c.l.s4 1966171168
    %v6287 = vunpack.c.0.s8 %v6286
    %v6288 = vlaneseq
    %v6289 = vshrl.u32 %v6288, 7
    %v6290 = vsub.s32 %v6287, %v6289
    %v6291 = vrot.slane %v6263, %v6290
    %v6292 = vcombine.low %v6270, %v6277
    %v6293 = vcombine.low %v6284, %v6291
    %v6295 = vunpack.c.l.s4 1966171168
    %v6296 = vunpack.c.0.s8 %v6295
    %v6297 = vlaneseq
    %v6298 = vshrl.u32 %v6297, 7
    %v6299 = vsub.s32 %v6296, %v6298
    %v6300 = vrot.slane %v6292, %v6299
    %v6302 = vunpack.c.l.s4 1966171168
    %v6303 = vunpack.c.0.s8 %v6302
    %v6304 = vlaneseq
    %v6305 = vshrl.u32 %v6304, 7
    %v6306 = vsub.s32 %v6303, %v6305
    %v6307 = vrot.slane %v6293, %v6306
    %v6308 = vcombine.low %v6300, %v6307
    %v6309 = vcombine.low %v4931, %v4935
    %v6310 = vcombine.low %v4939, %v4943
    %v6311 = vcombine.low %v4947, %v4951
    %v6312 = vcombine.low %v4955, %v4959
    %v6314 = vunpack.c.l.s4 1966171168
    %v6315 = vunpack.c.0.s8 %v6314
    %v6316 = vlaneseq
    %v6317 = vshrl.u32 %v6316, 7
    %v6318 = vsub.s32 %v6315, %v6317
    %v6319 = vrot.slane %v6309, %v6318
    %v6321 = vunpack.c.l.s4 1966171168
    %v6322 = vunpack.c.0.s8 %v6321
    %v6323 = vlaneseq
    %v6324 = vshrl.u32 %v6323, 7
    %v6325 = vsub.s32 %v6322, %v6324
    %v6326 = vrot.slane %v6310, %v6325
    %v6328 = vunpack.c.l.s4 1966171168
    %v6329 = vunpack.c.0.s8 %v6328
    %v6330 = vlaneseq
    %v6331 = vshrl.u32 %v6330, 7
    %v6332 = vsub.s32 %v6329, %v6331
    %v6333 = vrot.slane %v6311, %v6332
    %v6335 = vunpack.c.l.s4 1966171168
    %v6336 = vunpack.c.0.s8 %v6335
    %v6337 = vlaneseq
    %v6338 = vshrl.u32 %v6337, 7
    %v6339 = vsub.s32 %v6336, %v6338
    %v6340 = vrot.slane %v6312, %v6339
    %v6341 = vcombine.low %v6319, %v6326
    %v6342 = vcombine.low %v6333, %v6340
    %v6344 = vunpack.c.l.s4 1966171168
    %v6345 = vunpack.c.0.s8 %v6344
    %v6346 = vlaneseq
    %v6347 = vshrl.u32 %v6346, 7
    %v6348 = vsub.s32 %v6345, %v6347
    %v6349 = vrot.slane %v6341, %v6348
    %v6351 = vunpack.c.l.s4 1966171168
    %v6352 = vunpack.c.0.s8 %v6351
    %v6353 = vlaneseq
    %v6354 = vshrl.u32 %v6353, 7
    %v6355 = vsub.s32 %v6352, %v6354
    %v6356 = vrot.slane %v6342, %v6355
    %v6357 = vcombine.low %v6349, %v6356
    %v6358 = vcombine.low %v4963, %v4967
    %v6359 = vcombine.low %v4971, %v4975
    %v6360 = vcombine.low %v4979, %v4983
    %v6361 = vcombine.low %v4987, %v4991
    %v6363 = vunpack.c.l.s4 1966171168
    %v6364 = vunpack.c.0.s8 %v6363
    %v6365 = vlaneseq
    %v6366 = vshrl.u32 %v6365, 7
    %v6367 = vsub.s32 %v6364, %v6366
    %v6368 = vrot.slane %v6358, %v6367
    %v6370 = vunpack.c.l.s4 1966171168
    %v6371 = vunpack.c.0.s8 %v6370
    %v6372 = vlaneseq
    %v6373 = vshrl.u32 %v6372, 7
    %v6374 = vsub.s32 %v6371, %v6373
    %v6375 = vrot.slane %v6359, %v6374
    %v6377 = vunpack.c.l.s4 1966171168
    %v6378 = vunpack.c.0.s8 %v6377
    %v6379 = vlaneseq
    %v6380 = vshrl.u32 %v6379, 7
    %v6381 = vsub.s32 %v6378, %v6380
    %v6382 = vrot.slane %v6360, %v6381
    %v6384 = vunpack.c.l.s4 1966171168
    %v6385 = vunpack.c.0.s8 %v6384
    %v6386 = vlaneseq
    %v6387 = vshrl.u32 %v6386, 7
    %v6388 = vsub.s32 %v6385, %v6387
    %v6389 = vrot.slane %v6361, %v6388
    %v6390 = vcombine.low %v6368, %v6375
    %v6391 = vcombine.low %v6382, %v6389
    %v6393 = vunpack.c.l.s4 1966171168
    %v6394 = vunpack.c.0.s8 %v6393
    %v6395 = vlaneseq
    %v6396 = vshrl.u32 %v6395, 7
    %v6397 = vsub.s32 %v6394, %v6396
    %v6398 = vrot.slane %v6390, %v6397
    %v6400 = vunpack.c.l.s4 1966171168
    %v6401 = vunpack.c.0.s8 %v6400
    %v6402 = vlaneseq
    %v6403 = vshrl.u32 %v6402, 7
    %v6404 = vsub.s32 %v6401, %v6403
    %v6405 = vrot.slane %v6391, %v6404
    %v6406 = vcombine.low %v6398, %v6405
    %v6407 = vcombine.low %v4995, %v4999
    %v6408 = vcombine.low %v5003, %v5007
    %v6409 = vcombine.low %v5011, %v5015
    %v6410 = vcombine.low %v5019, %v5023
    %v6412 = vunpack.c.l.s4 1966171168
    %v6413 = vunpack.c.0.s8 %v6412
    %v6414 = vlaneseq
    %v6415 = vshrl.u32 %v6414, 7
    %v6416 = vsub.s32 %v6413, %v6415
    %v6417 = vrot.slane %v6407, %v6416
    %v6419 = vunpack.c.l.s4 1966171168
    %v6420 = vunpack.c.0.s8 %v6419
    %v6421 = vlaneseq
    %v6422 = vshrl.u32 %v6421, 7
    %v6423 = vsub.s32 %v6420, %v6422
    %v6424 = vrot.slane %v6408, %v6423
    %v6426 = vunpack.c.l.s4 1966171168
    %v6427 = vunpack.c.0.s8 %v6426
    %v6428 = vlaneseq
    %v6429 = vshrl.u32 %v6428, 7
    %v6430 = vsub.s32 %v6427, %v6429
    %v6431 = vrot.slane %v6409, %v6430
    %v6433 = vunpack.c.l.s4 1966171168
    %v6434 = vunpack.c.0.s8 %v6433
    %v6435 = vlaneseq
    %v6436 = vshrl.u32 %v6435, 7
    %v6437 = vsub.s32 %v6434, %v6436
    %v6438 = vrot.slane %v6410, %v6437
    %v6439 = vcombine.low %v6417, %v6424
    %v6440 = vcombine.low %v6431, %v6438
    %v6442 = vunpack.c.l.s4 1966171168
    %v6443 = vunpack.c.0.s8 %v6442
    %v6444 = vlaneseq
    %v6445 = vshrl.u32 %v6444, 7
    %v6446 = vsub.s32 %v6443, %v6445
    %v6447 = vrot.slane %v6439, %v6446
    %v6449 = vunpack.c.l.s4 1966171168
    %v6450 = vunpack.c.0.s8 %v6449
    %v6451 = vlaneseq
    %v6452 = vshrl.u32 %v6451, 7
    %v6453 = vsub.s32 %v6450, %v6452
    %v6454 = vrot.slane %v6440, %v6453
    %v6455 = vcombine.low %v6447, %v6454
    %v6456 = vcombine.low %v5027, %v5031
    %v6457 = vcombine.low %v5035, %v5039
    %v6458 = vcombine.low %v5043, %v5047
    %v6459 = vcombine.low %v5051, %v5055
    %v6461 = vunpack.c.l.s4 1966171168
    %v6462 = vunpack.c.0.s8 %v6461
    %v6463 = vlaneseq
    %v6464 = vshrl.u32 %v6463, 7
    %v6465 = vsub.s32 %v6462, %v6464
    %v6466 = vrot.slane %v6456, %v6465
    %v6468 = vunpack.c.l.s4 1966171168
    %v6469 = vunpack.c.0.s8 %v6468
    %v6470 = vlaneseq
    %v6471 = vshrl.u32 %v6470, 7
    %v6472 = vsub.s32 %v6469, %v6471
    %v6473 = vrot.slane %v6457, %v6472
    %v6475 = vunpack.c.l.s4 1966171168
    %v6476 = vunpack.c.0.s8 %v6475
    %v6477 = vlaneseq
    %v6478 = vshrl.u32 %v6477, 7
    %v6479 = vsub.s32 %v6476, %v6478
    %v6480 = vrot.slane %v6458, %v6479
    %v6482 = vunpack.c.l.s4 1966171168
    %v6483 = vunpack.c.0.s8 %v6482
    %v6484 = vlaneseq
    %v6485 = vshrl.u32 %v6484, 7
    %v6486 = vsub.s32 %v6483, %v6485
    %v6487 = vrot.slane %v6459, %v6486
    %v6488 = vcombine.low %v6466, %v6473
    %v6489 = vcombine.low %v6480, %v6487
    %v6491 = vunpack.c.l.s4 1966171168
    %v6492 = vunpack.c.0.s8 %v6491
    %v6493 = vlaneseq
    %v6494 = vshrl.u32 %v6493, 7
    %v6495 = vsub.s32 %v6492, %v6494
    %v6496 = vrot.slane %v6488, %v6495
    %v6498 = vunpack.c.l.s4 1966171168
    %v6499 = vunpack.c.0.s8 %v6498
    %v6500 = vlaneseq
    %v6501 = vshrl.u32 %v6500, 7
    %v6502 = vsub.s32 %v6499, %v6501
    %v6503 = vrot.slane %v6489, %v6502
    %v6504 = vcombine.low %v6496, %v6503
    %v6505 = vcombine.low %v5059, %v5063
    %v6506 = vcombine.low %v5067, %v5071
    %v6507 = vcombine.low %v5075, %v5079
    %v6508 = vcombine.low %v5083, %v5087
    %v6510 = vunpack.c.l.s4 1966171168
    %v6511 = vunpack.c.0.s8 %v6510
    %v6512 = vlaneseq
    %v6513 = vshrl.u32 %v6512, 7
    %v6514 = vsub.s32 %v6511, %v6513
    %v6515 = vrot.slane %v6505, %v6514
    %v6517 = vunpack.c.l.s4 1966171168
    %v6518 = vunpack.c.0.s8 %v6517
    %v6519 = vlaneseq
    %v6520 = vshrl.u32 %v6519, 7
    %v6521 = vsub.s32 %v6518, %v6520
    %v6522 = vrot.slane %v6506, %v6521
    %v6524 = vunpack.c.l.s4 1966171168
    %v6525 = vunpack.c.0.s8 %v6524
    %v6526 = vlaneseq
    %v6527 = vshrl.u32 %v6526, 7
    %v6528 = vsub.s32 %v6525, %v6527
    %v6529 = vrot.slane %v6507, %v6528
    %v6531 = vunpack.c.l.s4 1966171168
    %v6532 = vunpack.c.0.s8 %v6531
    %v6533 = vlaneseq
    %v6534 = vshrl.u32 %v6533, 7
    %v6535 = vsub.s32 %v6532, %v6534
    %v6536 = vrot.slane %v6508, %v6535
    %v6537 = vcombine.low %v6515, %v6522
    %v6538 = vcombine.low %v6529, %v6536
    %v6540 = vunpack.c.l.s4 1966171168
    %v6541 = vunpack.c.0.s8 %v6540
    %v6542 = vlaneseq
    %v6543 = vshrl.u32 %v6542, 7
    %v6544 = vsub.s32 %v6541, %v6543
    %v6545 = vrot.slane %v6537, %v6544
    %v6547 = vunpack.c.l.s4 1966171168
    %v6548 = vunpack.c.0.s8 %v6547
    %v6549 = vlaneseq
    %v6550 = vshrl.u32 %v6549, 7
    %v6551 = vsub.s32 %v6548, %v6550
    %v6552 = vrot.slane %v6538, %v6551
    %v6553 = vcombine.low %v6545, %v6552
    %v6554 = vcombine.low %v5091, %v5095
    %v6555 = vcombine.low %v5099, %v5103
    %v6556 = vcombine.low %v5107, %v5111
    %v6557 = vcombine.low %v5115, %v5119
    %v6559 = vunpack.c.l.s4 1966171168
    %v6560 = vunpack.c.0.s8 %v6559
    %v6561 = vlaneseq
    %v6562 = vshrl.u32 %v6561, 7
    %v6563 = vsub.s32 %v6560, %v6562
    %v6564 = vrot.slane %v6554, %v6563
    %v6566 = vunpack.c.l.s4 1966171168
    %v6567 = vunpack.c.0.s8 %v6566
    %v6568 = vlaneseq
    %v6569 = vshrl.u32 %v6568, 7
    %v6570 = vsub.s32 %v6567, %v6569
    %v6571 = vrot.slane %v6555, %v6570
    %v6573 = vunpack.c.l.s4 1966171168
    %v6574 = vunpack.c.0.s8 %v6573
    %v6575 = vlaneseq
    %v6576 = vshrl.u32 %v6575, 7
    %v6577 = vsub.s32 %v6574, %v6576
    %v6578 = vrot.slane %v6556, %v6577
    %v6580 = vunpack.c.l.s4 1966171168
    %v6581 = vunpack.c.0.s8 %v6580
    %v6582 = vlaneseq
    %v6583 = vshrl.u32 %v6582, 7
    %v6584 = vsub.s32 %v6581, %v6583
    %v6585 = vrot.slane %v6557, %v6584
    %v6586 = vcombine.low %v6564, %v6571
    %v6587 = vcombine.low %v6578, %v6585
    %v6589 = vunpack.c.l.s4 1966171168
    %v6590 = vunpack.c.0.s8 %v6589
    %v6591 = vlaneseq
    %v6592 = vshrl.u32 %v6591, 7
    %v6593 = vsub.s32 %v6590, %v6592
    %v6594 = vrot.slane %v6586, %v6593
    %v6596 = vunpack.c.l.s4 1966171168
    %v6597 = vunpack.c.0.s8 %v6596
    %v6598 = vlaneseq
    %v6599 = vshrl.u32 %v6598, 7
    %v6600 = vsub.s32 %v6597, %v6599
    %v6601 = vrot.slane %v6587, %v6600
    %v6602 = vcombine.low %v6594, %v6601
    %v6603 = vcombine.low %v5123, %v5127
    %v6604 = vcombine.low %v5131, %v5135
    %v6605 = vcombine.low %v5139, %v5143
    %v6606 = vcombine.low %v5147, %v5151
    %v6608 = vunpack.c.l.s4 1966171168
    %v6609 = vunpack.c.0.s8 %v6608
    %v6610 = vlaneseq
    %v6611 = vshrl.u32 %v6610, 7
    %v6612 = vsub.s32 %v6609, %v6611
    %v6613 = vrot.slane %v6603, %v6612
    %v6615 = vunpack.c.l.s4 1966171168
    %v6616 = vunpack.c.0.s8 %v6615
    %v6617 = vlaneseq
    %v6618 = vshrl.u32 %v6617, 7
    %v6619 = vsub.s32 %v6616, %v6618
    %v6620 = vrot.slane %v6604, %v6619
    %v6622 = vunpack.c.l.s4 1966171168
    %v6623 = vunpack.c.0.s8 %v6622
    %v6624 = vlaneseq
    %v6625 = vshrl.u32 %v6624, 7
    %v6626 = vsub.s32 %v6623, %v6625
    %v6627 = vrot.slane %v6605, %v6626
    %v6629 = vunpack.c.l.s4 1966171168
    %v6630 = vunpack.c.0.s8 %v6629
    %v6631 = vlaneseq
    %v6632 = vshrl.u32 %v6631, 7
    %v6633 = vsub.s32 %v6630, %v6632
    %v6634 = vrot.slane %v6606, %v6633
    %v6635 = vcombine.low %v6613, %v6620
    %v6636 = vcombine.low %v6627, %v6634
    %v6638 = vunpack.c.l.s4 1966171168
    %v6639 = vunpack.c.0.s8 %v6638
    %v6640 = vlaneseq
    %v6641 = vshrl.u32 %v6640, 7
    %v6642 = vsub.s32 %v6639, %v6641
    %v6643 = vrot.slane %v6635, %v6642
    %v6645 = vunpack.c.l.s4 1966171168
    %v6646 = vunpack.c.0.s8 %v6645
    %v6647 = vlaneseq
    %v6648 = vshrl.u32 %v6647, 7
    %v6649 = vsub.s32 %v6646, %v6648
    %v6650 = vrot.slane %v6636, %v6649
    %v6651 = vcombine.low %v6643, %v6650
    %v6652 = vcombine.low %v5155, %v5159
    %v6653 = vcombine.low %v5163, %v5167
    %v6654 = vcombine.low %v5171, %v5175
    %v6655 = vcombine.low %v5179, %v5183
    %v6657 = vunpack.c.l.s4 1966171168
    %v6658 = vunpack.c.0.s8 %v6657
    %v6659 = vlaneseq
    %v6660 = vshrl.u32 %v6659, 7
    %v6661 = vsub.s32 %v6658, %v6660
    %v6662 = vrot.slane %v6652, %v6661
    %v6664 = vunpack.c.l.s4 1966171168
    %v6665 = vunpack.c.0.s8 %v6664
    %v6666 = vlaneseq
    %v6667 = vshrl.u32 %v6666, 7
    %v6668 = vsub.s32 %v6665, %v6667
    %v6669 = vrot.slane %v6653, %v6668
    %v6671 = vunpack.c.l.s4 1966171168
    %v6672 = vunpack.c.0.s8 %v6671
    %v6673 = vlaneseq
    %v6674 = vshrl.u32 %v6673, 7
    %v6675 = vsub.s32 %v6672, %v6674
    %v6676 = vrot.slane %v6654, %v6675
    %v6678 = vunpack.c.l.s4 1966171168
    %v6679 = vunpack.c.0.s8 %v6678
    %v6680 = vlaneseq
    %v6681 = vshrl.u32 %v6680, 7
    %v6682 = vsub.s32 %v6679, %v6681
    %v6683 = vrot.slane %v6655, %v6682
    %v6684 = vcombine.low %v6662, %v6669
    %v6685 = vcombine.low %v6676, %v6683
    %v6687 = vunpack.c.l.s4 1966171168
    %v6688 = vunpack.c.0.s8 %v6687
    %v6689 = vlaneseq
    %v6690 = vshrl.u32 %v6689, 7
    %v6691 = vsub.s32 %v6688, %v6690
    %v6692 = vrot.slane %v6684, %v6691
    %v6694 = vunpack.c.l.s4 1966171168
    %v6695 = vunpack.c.0.s8 %v6694
    %v6696 = vlaneseq
    %v6697 = vshrl.u32 %v6696, 7
    %v6698 = vsub.s32 %v6695, %v6697
    %v6699 = vrot.slane %v6685, %v6698
    %v6700 = vcombine.low %v6692, %v6699
    %v6701 = vcombine.low %v5187, %v5191
    %v6702 = vcombine.low %v5195, %v5199
    %v6703 = vcombine.low %v5203, %v5207
    %v6704 = vcombine.low %v5211, %v5215
    %v6706 = vunpack.c.l.s4 1966171168
    %v6707 = vunpack.c.0.s8 %v6706
    %v6708 = vlaneseq
    %v6709 = vshrl.u32 %v6708, 7
    %v6710 = vsub.s32 %v6707, %v6709
    %v6711 = vrot.slane %v6701, %v6710
    %v6713 = vunpack.c.l.s4 1966171168
    %v6714 = vunpack.c.0.s8 %v6713
    %v6715 = vlaneseq
    %v6716 = vshrl.u32 %v6715, 7
    %v6717 = vsub.s32 %v6714, %v6716
    %v6718 = vrot.slane %v6702, %v6717
    %v6720 = vunpack.c.l.s4 1966171168
    %v6721 = vunpack.c.0.s8 %v6720
    %v6722 = vlaneseq
    %v6723 = vshrl.u32 %v6722, 7
    %v6724 = vsub.s32 %v6721, %v6723
    %v6725 = vrot.slane %v6703, %v6724
    %v6727 = vunpack.c.l.s4 1966171168
    %v6728 = vunpack.c.0.s8 %v6727
    %v6729 = vlaneseq
    %v6730 = vshrl.u32 %v6729, 7
    %v6731 = vsub.s32 %v6728, %v6730
    %v6732 = vrot.slane %v6704, %v6731
    %v6733 = vcombine.low %v6711, %v6718
    %v6734 = vcombine.low %v6725, %v6732
    %v6736 = vunpack.c.l.s4 1966171168
    %v6737 = vunpack.c.0.s8 %v6736
    %v6738 = vlaneseq
    %v6739 = vshrl.u32 %v6738, 7
    %v6740 = vsub.s32 %v6737, %v6739
    %v6741 = vrot.slane %v6733, %v6740
    %v6743 = vunpack.c.l.s4 1966171168
    %v6744 = vunpack.c.0.s8 %v6743
    %v6745 = vlaneseq
    %v6746 = vshrl.u32 %v6745, 7
    %v6747 = vsub.s32 %v6744, %v6746
    %v6748 = vrot.slane %v6734, %v6747
    %v6749 = vcombine.low %v6741, %v6748
    %v6750 = vcombine.low %v5219, %v5223
    %v6751 = vcombine.low %v5227, %v5231
    %v6752 = vcombine.low %v5235, %v5239
    %v6753 = vcombine.low %v5243, %v5247
    %v6755 = vunpack.c.l.s4 1966171168
    %v6756 = vunpack.c.0.s8 %v6755
    %v6757 = vlaneseq
    %v6758 = vshrl.u32 %v6757, 7
    %v6759 = vsub.s32 %v6756, %v6758
    %v6760 = vrot.slane %v6750, %v6759
    %v6762 = vunpack.c.l.s4 1966171168
    %v6763 = vunpack.c.0.s8 %v6762
    %v6764 = vlaneseq
    %v6765 = vshrl.u32 %v6764, 7
    %v6766 = vsub.s32 %v6763, %v6765
    %v6767 = vrot.slane %v6751, %v6766
    %v6769 = vunpack.c.l.s4 1966171168
    %v6770 = vunpack.c.0.s8 %v6769
    %v6771 = vlaneseq
    %v6772 = vshrl.u32 %v6771, 7
    %v6773 = vsub.s32 %v6770, %v6772
    %v6774 = vrot.slane %v6752, %v6773
    %v6776 = vunpack.c.l.s4 1966171168
    %v6777 = vunpack.c.0.s8 %v6776
    %v6778 = vlaneseq
    %v6779 = vshrl.u32 %v6778, 7
    %v6780 = vsub.s32 %v6777, %v6779
    %v6781 = vrot.slane %v6753, %v6780
    %v6782 = vcombine.low %v6760, %v6767
    %v6783 = vcombine.low %v6774, %v6781
    %v6785 = vunpack.c.l.s4 1966171168
    %v6786 = vunpack.c.0.s8 %v6785
    %v6787 = vlaneseq
    %v6788 = vshrl.u32 %v6787, 7
    %v6789 = vsub.s32 %v6786, %v6788
    %v6790 = vrot.slane %v6782, %v6789
    %v6792 = vunpack.c.l.s4 1966171168
    %v6793 = vunpack.c.0.s8 %v6792
    %v6794 = vlaneseq
    %v6795 = vshrl.u32 %v6794, 7
    %v6796 = vsub.s32 %v6793, %v6795
    %v6797 = vrot.slane %v6783, %v6796
    %v6798 = vcombine.low %v6790, %v6797
    %v6799 = vcombine.low %v5251, %v5255
    %v6800 = vcombine.low %v5259, %v5263
    %v6801 = vcombine.low %v5267, %v5271
    %v6802 = vcombine.low %v5275, %v5279
    %v6804 = vunpack.c.l.s4 1966171168
    %v6805 = vunpack.c.0.s8 %v6804
    %v6806 = vlaneseq
    %v6807 = vshrl.u32 %v6806, 7
    %v6808 = vsub.s32 %v6805, %v6807
    %v6809 = vrot.slane %v6799, %v6808
    %v6811 = vunpack.c.l.s4 1966171168
    %v6812 = vunpack.c.0.s8 %v6811
    %v6813 = vlaneseq
    %v6814 = vshrl.u32 %v6813, 7
    %v6815 = vsub.s32 %v6812, %v6814
    %v6816 = vrot.slane %v6800, %v6815
    %v6818 = vunpack.c.l.s4 1966171168
    %v6819 = vunpack.c.0.s8 %v6818
    %v6820 = vlaneseq
    %v6821 = vshrl.u32 %v6820, 7
    %v6822 = vsub.s32 %v6819, %v6821
    %v6823 = vrot.slane %v6801, %v6822
    %v6825 = vunpack.c.l.s4 1966171168
    %v6826 = vunpack.c.0.s8 %v6825
    %v6827 = vlaneseq
    %v6828 = vshrl.u32 %v6827, 7
    %v6829 = vsub.s32 %v6826, %v6828
    %v6830 = vrot.slane %v6802, %v6829
    %v6831 = vcombine.low %v6809, %v6816
    %v6832 = vcombine.low %v6823, %v6830
    %v6834 = vunpack.c.l.s4 1966171168
    %v6835 = vunpack.c.0.s8 %v6834
    %v6836 = vlaneseq
    %v6837 = vshrl.u32 %v6836, 7
    %v6838 = vsub.s32 %v6835, %v6837
    %v6839 = vrot.slane %v6831, %v6838
    %v6841 = vunpack.c.l.s4 1966171168
    %v6842 = vunpack.c.0.s8 %v6841
    %v6843 = vlaneseq
    %v6844 = vshrl.u32 %v6843, 7
    %v6845 = vsub.s32 %v6842, %v6844
    %v6846 = vrot.slane %v6832, %v6845
    %v6847 = vcombine.low %v6839, %v6846
    %6848 = vset.pattern.permute.xlu0 0
    %6849 = vperm.xlu0 %6848, %v5328
    %v6850 = vpop.permute.xlu0 %6849
    %6851 = vset.pattern.permute.xlu0 0
    %6852 = vperm.xlu0 %6851, %v5377
    %v6853 = vpop.permute.xlu0 %6852
    %6854 = vset.pattern.permute.xlu0 0
    %6855 = vperm.xlu0 %6854, %v5426
    %v6856 = vpop.permute.xlu0 %6855
    %6857 = vset.pattern.permute.xlu0 0
    %6858 = vperm.xlu0 %6857, %v5475
    %v6859 = vpop.permute.xlu0 %6858
    %6860 = vset.pattern.permute.xlu0 0
    %6861 = vperm.xlu0 %6860, %v5524
    %v6862 = vpop.permute.xlu0 %6861
    %6863 = vset.pattern.permute.xlu0 0
    %6864 = vperm.xlu0 %6863, %v5573
    %v6865 = vpop.permute.xlu0 %6864
    %6866 = vset.pattern.permute.xlu0 0
    %6867 = vperm.xlu0 %6866, %v5622
    %v6868 = vpop.permute.xlu0 %6867
    %6869 = vset.pattern.permute.xlu0 0
    %6870 = vperm.xlu0 %6869, %v5671
    %v6871 = vpop.permute.xlu0 %6870
    %6872 = vset.pattern.permute.xlu0 0
    %6873 = vperm.xlu0 %6872, %v5720
    %v6874 = vpop.permute.xlu0 %6873
    %6875 = vset.pattern.permute.xlu0 0
    %6876 = vperm.xlu0 %6875, %v5769
    %v6877 = vpop.permute.xlu0 %6876
    %6878 = vset.pattern.permute.xlu0 0
    %6879 = vperm.xlu0 %6878, %v5818
    %v6880 = vpop.permute.xlu0 %6879
    %6881 = vset.pattern.permute.xlu0 0
    %6882 = vperm.xlu0 %6881, %v5867
    %v6883 = vpop.permute.xlu0 %6882
    %6884 = vset.pattern.permute.xlu0 0
    %6885 = vperm.xlu0 %6884, %v5916
    %v6886 = vpop.permute.xlu0 %6885
    %6887 = vset.pattern.permute.xlu0 0
    %6888 = vperm.xlu0 %6887, %v5965
    %v6889 = vpop.permute.xlu0 %6888
    %6890 = vset.pattern.permute.xlu0 0
    %6891 = vperm.xlu0 %6890, %v6014
    %v6892 = vpop.permute.xlu0 %6891
    %6893 = vset.pattern.permute.xlu0 0
    %6894 = vperm.xlu0 %6893, %v6063
    %v6895 = vpop.permute.xlu0 %6894
    %6896 = vset.pattern.permute.xlu0 0
    %6897 = vperm.xlu0 %6896, %v6112
    %v6898 = vpop.permute.xlu0 %6897
    %6899 = vset.pattern.permute.xlu0 0
    %6900 = vperm.xlu0 %6899, %v6161
    %v6901 = vpop.permute.xlu0 %6900
    %6902 = vset.pattern.permute.xlu0 0
    %6903 = vperm.xlu0 %6902, %v6210
    %v6904 = vpop.permute.xlu0 %6903
    %6905 = vset.pattern.permute.xlu0 0
    %6906 = vperm.xlu0 %6905, %v6259
    %v6907 = vpop.permute.xlu0 %6906
    %6908 = vset.pattern.permute.xlu0 0
    %6909 = vperm.xlu0 %6908, %v6308
    %v6910 = vpop.permute.xlu0 %6909
    %6911 = vset.pattern.permute.xlu0 0
    %6912 = vperm.xlu0 %6911, %v6357
    %v6913 = vpop.permute.xlu0 %6912
    %6914 = vset.pattern.permute.xlu0 0
    %6915 = vperm.xlu0 %6914, %v6406
    %v6916 = vpop.permute.xlu0 %6915
    %6917 = vset.pattern.permute.xlu0 0
    %6918 = vperm.xlu0 %6917, %v6455
    %v6919 = vpop.permute.xlu0 %6918
    %6920 = vset.pattern.permute.xlu0 0
    %6921 = vperm.xlu0 %6920, %v6504
    %v6922 = vpop.permute.xlu0 %6921
    %6923 = vset.pattern.permute.xlu0 0
    %6924 = vperm.xlu0 %6923, %v6553
    %v6925 = vpop.permute.xlu0 %6924
    %6926 = vset.pattern.permute.xlu0 0
    %6927 = vperm.xlu0 %6926, %v6602
    %v6928 = vpop.permute.xlu0 %6927
    %6929 = vset.pattern.permute.xlu0 0
    %6930 = vperm.xlu0 %6929, %v6651
    %v6931 = vpop.permute.xlu0 %6930
    %6932 = vset.pattern.permute.xlu0 0
    %6933 = vperm.xlu0 %6932, %v6700
    %v6934 = vpop.permute.xlu0 %6933
    %6935 = vset.pattern.permute.xlu0 0
    %6936 = vperm.xlu0 %6935, %v6749
    %v6937 = vpop.permute.xlu0 %6936
    %6938 = vset.pattern.permute.xlu0 0
    %6939 = vperm.xlu0 %6938, %v6798
    %v6940 = vpop.permute.xlu0 %6939
    %6941 = vset.pattern.permute.xlu0 0
    %6942 = vperm.xlu0 %6941, %v6847
    %v6943 = vpop.permute.xlu0 %6942
    %v6944 = vlaneseq
    %v6945 = vshrl.u32 %v6944, 7
    %v6946 = vsub.s32 %v461, %v6945
    %v6947 = vrot.slane %v6850, %v6946
    %v6948 = vlaneseq
    %v6949 = vshrl.u32 %v6948, 7
    %v6950 = vsub.s32 %v3411, %v6949
    %v6951 = vrot.slane %v6853, %v6950
    %v6952 = vsel %vm3416, %v6951, %v6947
    %v6953 = vlaneseq
    %v6954 = vshrl.u32 %v6953, 7
    %v6955 = vsub.s32 %v3418, %v6954
    %v6956 = vrot.slane %v6856, %v6955
    %v6957 = vsel %vm3423, %v6956, %v6952
    %v6958 = vlaneseq
    %v6959 = vshrl.u32 %v6958, 7
    %v6960 = vsub.s32 %v3425, %v6959
    %v6961 = vrot.slane %v6859, %v6960
    %v6962 = vsel %vm3430, %v6961, %v6957
    %v6963 = vlaneseq
    %v6964 = vshrl.u32 %v6963, 7
    %v6965 = vsub.s32 %v3432, %v6964
    %v6966 = vrot.slane %v6862, %v6965
    %v6967 = vsel %vm3437, %v6966, %v6962
    %v6968 = vlaneseq
    %v6969 = vshrl.u32 %v6968, 7
    %v6970 = vsub.s32 %v3439, %v6969
    %v6971 = vrot.slane %v6865, %v6970
    %v6972 = vsel %vm3444, %v6971, %v6967
    %v6973 = vlaneseq
    %v6974 = vshrl.u32 %v6973, 7
    %v6975 = vsub.s32 %v3446, %v6974
    %v6976 = vrot.slane %v6868, %v6975
    %v6977 = vsel %vm3451, %v6976, %v6972
    %v6978 = vlaneseq
    %v6979 = vshrl.u32 %v6978, 7
    %v6980 = vsub.s32 %v3453, %v6979
    %v6981 = vrot.slane %v6871, %v6980
    %v6982 = vsel %vm3458, %v6981, %v6977
    %v6983 = vlaneseq
    %v6984 = vshrl.u32 %v6983, 7
    %v6985 = vsub.s32 %v3460, %v6984
    %v6986 = vrot.slane %v6874, %v6985
    %v6987 = vsel %vm3465, %v6986, %v6982
    %v6988 = vlaneseq
    %v6989 = vshrl.u32 %v6988, 7
    %v6990 = vsub.s32 %v3467, %v6989
    %v6991 = vrot.slane %v6877, %v6990
    %v6992 = vsel %vm3472, %v6991, %v6987
    %v6993 = vlaneseq
    %v6994 = vshrl.u32 %v6993, 7
    %v6995 = vsub.s32 %v3474, %v6994
    %v6996 = vrot.slane %v6880, %v6995
    %v6997 = vsel %vm3479, %v6996, %v6992
    %v6998 = vlaneseq
    %v6999 = vshrl.u32 %v6998, 7
    %v7000 = vsub.s32 %v3481, %v6999
    %v7001 = vrot.slane %v6883, %v7000
    %v7002 = vsel %vm3486, %v7001, %v6997
    %v7003 = vlaneseq
    %v7004 = vshrl.u32 %v7003, 7
    %v7005 = vsub.s32 %v3488, %v7004
    %v7006 = vrot.slane %v6886, %v7005
    %v7007 = vsel %vm3493, %v7006, %v7002
    %v7008 = vlaneseq
    %v7009 = vshrl.u32 %v7008, 7
    %v7010 = vsub.s32 %v3495, %v7009
    %v7011 = vrot.slane %v6889, %v7010
    %v7012 = vsel %vm3500, %v7011, %v7007
    %v7013 = vlaneseq
    %v7014 = vshrl.u32 %v7013, 7
    %v7015 = vsub.s32 %v3502, %v7014
    %v7016 = vrot.slane %v6892, %v7015
    %v7017 = vsel %vm3507, %v7016, %v7012
    %v7018 = vlaneseq
    %v7019 = vshrl.u32 %v7018, 7
    %v7020 = vsub.s32 %v3509, %v7019
    %v7021 = vrot.slane %v6895, %v7020
    %v7022 = vsel %vm3514, %v7021, %v7017
    %v7023 = vlaneseq
    %v7024 = vshrl.u32 %v7023, 7
    %v7025 = vsub.s32 %v461, %v7024
    %v7026 = vrot.slane %v6898, %v7025
    %v7027 = vlaneseq
    %v7028 = vshrl.u32 %v7027, 7
    %v7029 = vsub.s32 %v3411, %v7028
    %v7030 = vrot.slane %v6901, %v7029
    %v7031 = vsel %vm3416, %v7030, %v7026
    %v7032 = vlaneseq
    %v7033 = vshrl.u32 %v7032, 7
    %v7034 = vsub.s32 %v3418, %v7033
    %v7035 = vrot.slane %v6904, %v7034
    %v7036 = vsel %vm3423, %v7035, %v7031
    %v7037 = vlaneseq
    %v7038 = vshrl.u32 %v7037, 7
    %v7039 = vsub.s32 %v3425, %v7038
    %v7040 = vrot.slane %v6907, %v7039
    %v7041 = vsel %vm3430, %v7040, %v7036
    %v7042 = vlaneseq
    %v7043 = vshrl.u32 %v7042, 7
    %v7044 = vsub.s32 %v3432, %v7043
    %v7045 = vrot.slane %v6910, %v7044
    %v7046 = vsel %vm3437, %v7045, %v7041
    %v7047 = vlaneseq
    %v7048 = vshrl.u32 %v7047, 7
    %v7049 = vsub.s32 %v3439, %v7048
    %v7050 = vrot.slane %v6913, %v7049
    %v7051 = vsel %vm3444, %v7050, %v7046
    %v7052 = vlaneseq
    %v7053 = vshrl.u32 %v7052, 7
    %v7054 = vsub.s32 %v3446, %v7053
    %v7055 = vrot.slane %v6916, %v7054
    %v7056 = vsel %vm3451, %v7055, %v7051
    %v7057 = vlaneseq
    %v7058 = vshrl.u32 %v7057, 7
    %v7059 = vsub.s32 %v3453, %v7058
    %v7060 = vrot.slane %v6919, %v7059
    %v7061 = vsel %vm3458, %v7060, %v7056
    %v7062 = vlaneseq
    %v7063 = vshrl.u32 %v7062, 7
    %v7064 = vsub.s32 %v3460, %v7063
    %v7065 = vrot.slane %v6922, %v7064
    %v7066 = vsel %vm3465, %v7065, %v7061
    %v7067 = vlaneseq
    %v7068 = vshrl.u32 %v7067, 7
    %v7069 = vsub.s32 %v3467, %v7068
    %v7070 = vrot.slane %v6925, %v7069
    %v7071 = vsel %vm3472, %v7070, %v7066
    %v7072 = vlaneseq
    %v7073 = vshrl.u32 %v7072, 7
    %v7074 = vsub.s32 %v3474, %v7073
    %v7075 = vrot.slane %v6928, %v7074
    %v7076 = vsel %vm3479, %v7075, %v7071
    %v7077 = vlaneseq
    %v7078 = vshrl.u32 %v7077, 7
    %v7079 = vsub.s32 %v3481, %v7078
    %v7080 = vrot.slane %v6931, %v7079
    %v7081 = vsel %vm3486, %v7080, %v7076
    %v7082 = vlaneseq
    %v7083 = vshrl.u32 %v7082, 7
    %v7084 = vsub.s32 %v3488, %v7083
    %v7085 = vrot.slane %v6934, %v7084
    %v7086 = vsel %vm3493, %v7085, %v7081
    %v7087 = vlaneseq
    %v7088 = vshrl.u32 %v7087, 7
    %v7089 = vsub.s32 %v3495, %v7088
    %v7090 = vrot.slane %v6937, %v7089
    %v7091 = vsel %vm3500, %v7090, %v7086
    %v7092 = vlaneseq
    %v7093 = vshrl.u32 %v7092, 7
    %v7094 = vsub.s32 %v3502, %v7093
    %v7095 = vrot.slane %v6940, %v7094
    %v7096 = vsel %vm3507, %v7095, %v7091
    %v7097 = vlaneseq
    %v7098 = vshrl.u32 %v7097, 7
    %v7099 = vsub.s32 %v3509, %v7098
    %v7100 = vrot.slane %v6943, %v7099
    %v7101 = vsel %vm3514, %v7100, %v7096
    %v7102 = vcombine.low %v7022, %v7101
    %v7104 = vunpack.c.l.s4 1966171168
    %v7105 = vunpack.c.0.s8 %v7104
    %v7106 = vlaneseq
    %v7107 = vshrl.u32 %v7106, 7
    %v7108 = vsub.s32 %v7105, %v7107
    %v7109 = vrot.slane %v7102, %v7108
    %v7111 = vunpack.c.l.s4 1966171168
    %v7112 = vunpack.c.0.s8 %v7111
    %v7113 = vlaneseq
    %v7114 = vshrl.u32 %v7113, 7
    %v7115 = vsub.s32 %v7112, %v7114
    %v7116 = vrot.slane %v7109, %v7115
    %7118 = vst.msk [vmem:[#allocation11] sm:$0x3] %vm3613, %v7116
    // Predicated region
    $region30: #{tpu_custom_call.1} parent=1 // pred_check
      _
    $region31: #{tpu_custom_call.1} parent=1 // pred_check_branch
      %7120 = sbr.rel (0) target = $region33
    $region32: #{tpu_custom_call.1} parent=1 // pred_region
      %s7122 = ssub.s32 4096, 4096
      %7123 = vsyncadd [#allocation4], %s7122
      %s7124 = sshll.u32 [#allocation8], 4
      %s7125 = int_to_ptr.vmem [resolvable:$true] %s7124
      %7130 = dma.vmem_to_hbm [thread:$0]  %s7125, 4096, %s4, [#allocation4], 128, 128, 8
    $region33: #{tpu_custom_call.1} parent=1 // pred_fallthru
      _
    // Predicated region
    $region34: #{tpu_custom_call.1} parent=1 // pred_check
      _
    $region35: #{tpu_custom_call.1} parent=1 // pred_check_branch
      %7132 = sbr.rel (0) target = $region37
    $region36: #{tpu_custom_call.1} parent=1 // pred_region
      %s7134 = ssub.s32 32, 32
      %7135 = vsyncadd [#allocation10], %s7134
      %s7137 = sshll.u32 [#allocation9], 4
      %s7138 = int_to_ptr.vmem [resolvable:$true] %s7137
      %7140 = dma.vmem_to_hbm [thread:$0]  %s7138, 32, %s5, [#allocation10]
    $region37: #{tpu_custom_call.1} parent=1 // pred_fallthru
      _
    // Predicated region
    $region38: #{tpu_custom_call.1} parent=1 // pred_check
      _
    $region39: #{tpu_custom_call.1} parent=1 // pred_check_branch
      %7142 = sbr.rel (0) target = $region41
    $region40: #{tpu_custom_call.1} parent=1 // pred_region
      %s7144 = ssub.s32 32, 32
      %7145 = vsyncadd [#allocation10], %s7144
      %s7147 = sshll.u32 [#allocation11], 4
      %s7148 = int_to_ptr.vmem [resolvable:$true] %s7147
      %7150 = dma.vmem_to_hbm [thread:$0]  %s7148, 32, %s6, [#allocation10]
    $region41: #{tpu_custom_call.1} parent=1 // pred_fallthru
      _
    // Predicated region
    $region42: #{tpu_custom_call.1} parent=1 // pred_check
      _
    $region43: #{tpu_custom_call.1} parent=1 // pred_check_branch
      %7152 = sbr.rel (0) target = $region45
    $region44: #{tpu_custom_call.1} parent=1 // pred_region
      %7153 = dma.done [#allocation4], 4096
    $region45: #{tpu_custom_call.1} parent=1 // pred_fallthru
      _
    // Predicated region
    $region46: #{tpu_custom_call.1} parent=1 // pred_check
      _
    $region47: #{tpu_custom_call.1} parent=1 // pred_check_branch
      %7155 = sbr.rel (0) target = $region49
    $region48: #{tpu_custom_call.1} parent=1 // pred_region
      %7156 = dma.done [#allocation10], 32
    $region49: #{tpu_custom_call.1} parent=1 // pred_fallthru
      _
    // Predicated region
    $region50: #{tpu_custom_call.1} parent=1 // pred_check
      _
    $region51: #{tpu_custom_call.1} parent=1 // pred_check_branch
      %7158 = sbr.rel (0) target = $region53
    $region52: #{tpu_custom_call.1} parent=1 // pred_region
      %7159 = dma.done [#allocation10], 32
    $region53: #{tpu_custom_call.1} parent=1 // pred_fallthru
      _
    %7160 = vsyncpa [#allocation3], 1
    %7161 = vsyncpa [#allocation6], 1
    %7162 = vsyncpa [#allocation4], 1
    %7163 = vsyncpa [#allocation10], 1

</llo_original>
